<compile_context>
chip_gen: v6e
topology: v6e:2x2x1
jax: 0.10.0
libtpu: 0.0.40
codegen_flags: <defaults>
</compile_context>

<pallas_src>
import functools
import math

import jax
import jax.numpy as jnp
from jax.experimental import pallas as pl
from jax.experimental.pallas import tpu as pltpu

KH = KW = 3  # 3x3 convolution, stride=1, padding=1


def _fused_conv_add_kernel(x1_ref, x2_ref, w_ref, b_ref, o_ref, pf_ref, *, W, pad):
    """One batch element of conv(x1,w1)+b1 + conv(x2,w2)+b2 (fused as one conv).

    x1_ref, x2_ref: (1, Cin, H*W)        channel-major, flattened spatial
    w_ref:          (Cout, 2*Cin*9)      fused weights, column = ci*9 + ky*3 + kx
    b_ref:          (Cout, 1)            b1 + b2
    o_ref:          (1, Cout, H*W)       lane-dense output
    pf_ref:         (2, Cin, pad+H*W+pad) zero-padded flat scratch (VMEM)
    """
    cin_each = x1_ref.shape[1]                      # 3
    cout, hw = o_ref.shape[1], o_ref.shape[2]       # 8, H*W
    pw = pf_ref.shape[2]

    # --- build the zero-padded, channel-major flat scratch ------------------
    pf_ref[:, :, 0:pad] = jnp.zeros((2, cin_each, pad), jnp.float32)
    pf_ref[:, :, pad + hw:pw] = jnp.zeros((2, cin_each, pw - pad - hw), jnp.float32)
    pf_ref[0, :, pad:pad + hw] = x1_ref[0].astype(jnp.float32)
    pf_ref[1, :, pad:pad + hw] = x2_ref[0].astype(jnp.float32)

    # --- hoisted weight / bias loads -----------------------------------------
    w = w_ref[...].astype(jnp.float32)              # (Cout, 2*Cin*9)
    b = b_ref[...].astype(jnp.float32)              # (Cout, 1)

    # x coordinate of every flattened output position (for edge masks)
    col = jax.lax.broadcasted_iota(jnp.int32, (1, hw), 1) % W

    acc = jnp.broadcast_to(b, (cout, hw))           # both biases, added once

    # Direct convolution on the VPU.  For tap (ky, kx) the inputs needed at
    # flattened output position p = y*W + x are the scratch slice starting at
    # pad + W*(ky-1) + (kx-1).  Vertical out-of-range rows fall into the zero
    # halo; horizontal wraparound only affects column 0 (kx=0) / W-1 (kx=2)
    # and is masked once per kx group.
    for kx in range(KW):
        part = jnp.zeros((cout, hw), jnp.float32)
        for ky in range(KH):
            start = pad + W * (ky - 1) + (kx - 1)
            for g in range(2):                      # 0 -> x1/w1, 1 -> x2/w2
                for c in range(cin_each):
                    idx = (g * cin_each + c) * (KH * KW) + ky * KW + kx
                    patch = pf_ref[g, c:c + 1, start:start + hw]   # (1, H*W)
                    part = part + w[:, idx:idx + 1] * patch
        if kx == 0:
            part = jnp.where(col != 0, part, 0.0)
        elif kx == KW - 1:
            part = jnp.where(col != W - 1, part, 0.0)
        acc = acc + part

    o_ref[0] = acc.astype(o_ref.dtype)


@jax.jit
def conv_conv_add(x1_nchw, x2_nchw, w1_oihw, w2_oihw, b1, b2):
    """v3 = conv1(x1) + conv2(x2); NCHW in / NCHW out (PyTorch layout)."""
    N, Cin, H, W = x1_nchw.shape
    Cout = w1_oihw.shape[0]
    HW = H * W
    PAD = 128                       # flat halo, >= W+1, keeps interior lane-aligned
    PW = PAD + HW + PAD

    # Free reshapes (NCHW is already channel-major, row-major spatial).
    x1_flat = x1_nchw.reshape(N, Cin, HW)
    x2_flat = x2_nchw.reshape(N, Cin, HW)

    # Fuse the two convs: concat weights along input channels, add the biases.
    w_all = jnp.concatenate([w1_oihw, w2_oihw], axis=1).reshape(
        Cout, 2 * Cin * KH * KW).astype(jnp.float32)
    b_all = (b1 + b2).reshape(Cout, 1).astype(jnp.float32)

    kernel = functools.partial(_fused_conv_add_kernel, W=W, pad=PAD)

    out_flat = pl.pallas_call(
        kernel,
        out_shape=jax.ShapeDtypeStruct((N, Cout, HW), x1_nchw.dtype),
        grid_spec=pltpu.PrefetchScalarGridSpec(
            num_scalar_prefetch=0,
            grid=(N,),                               # one grid step per batch element
            in_specs=[
                pl.BlockSpec((1, Cin, HW), lambda n: (n, 0, 0)),
                pl.BlockSpec((1, Cin, HW), lambda n: (n, 0, 0)),
                pl.BlockSpec((Cout, 2 * Cin * KH * KW), lambda n: (0, 0)),
                pl.BlockSpec((Cout, 1), lambda n: (0, 0)),
            ],
            out_specs=pl.BlockSpec((1, Cout, HW), lambda n: (n, 0, 0)),
            scratch_shapes=[pltpu.VMEM((2, Cin, PW), jnp.float32)],
        ),
        compiler_params=pltpu.CompilerParams(
            dimension_semantics=("parallel",)),      # batch shards across cores (v7x)
    )(x1_flat, x2_flat, w_all, b_all)

    # Free reshape back to NCHW.
    return out_flat.reshape(N, Cout, H, W)


def _reference(x1, x2, w1, w2, b1, b2):
    """Pure-JAX reference (lax conv) for correctness checking."""
    dn = jax.lax.conv_dimension_numbers(x1.shape, w1.shape,
                                        ("NCHW", "OIHW", "NCHW"))
    v1 = jax.lax.conv_general_dilated(
        x1, w1, window_strides=(1, 1), padding=((1, 1), (1, 1)),
        dimension_numbers=dn) + b1.reshape(1, -1, 1, 1)
    v2 = jax.lax.conv_general_dilated(
        x2, w2, window_strides=(1, 1), padding=((1, 1), (1, 1)),
        dimension_numbers=dn) + b2.reshape(1, -1, 1, 1)
    return v1 + v2


if __name__ == "__main__":
    key = jax.random.PRNGKey(0)
    k_x1, k_x2, k_w1, k_b1, k_w2, k_b2 = jax.random.split(key, 6)

    N, Cin, H, W, Cout = 1, 3, 32, 32, 8

    x1 = jax.random.normal(k_x1, (N, Cin, H, W), dtype=jnp.float32)
    x2 = jax.random.normal(k_x2, (N, Cin, H, W), dtype=jnp.float32)

    # Deterministic Conv2d-style init (uniform with kaiming-ish bound).
    fan_in = Cin * KH * KW
    bound = 1.0 / math.sqrt(fan_in)
    w1 = jax.random.uniform(k_w1, (Cout, Cin, KH, KW), jnp.float32, -bound, bound)
    b1 = jax.random.uniform(k_b1, (Cout,), jnp.float32, -bound, bound)
    w2 = jax.random.uniform(k_w2, (Cout, Cin, KH, KW), jnp.float32, -bound, bound)
    b2 = jax.random.uniform(k_b2, (Cout,), jnp.float32, -bound, bound)

    out = jax.block_until_ready(conv_conv_add(x1, x2, w1, w2, b1, b2))
    ref = jax.block_until_ready(_reference(x1, x2, w1, w2, b1, b2))

    assert out.shape == (N, Cout, H, W)
    assert jnp.allclose(out, ref, atol=1e-4, rtol=1e-4), "mismatch vs reference"

    print("KERNEL_OK")
</pallas_src>

<mosaic_0001>
module attributes {stable_mosaic.version = 11 : i64} {
  func.func @_fused_conv_add_kernel(%arg0: i32, %arg1: memref<1x3x1024xf32, #tpu.memory_space<vmem>>, %arg2: memref<1x3x1024xf32, #tpu.memory_space<vmem>>, %arg3: memref<8x54xf32, #tpu.memory_space<vmem>>, %arg4: memref<8x1xf32, #tpu.memory_space<vmem>>, %arg5: memref<1x8x1024xf32, #tpu.memory_space<vmem>>, %arg6: memref<2x3x1280xf32, #tpu.memory_space<vmem>>) attributes {dimension_semantics = [#tpu.dimension_semantics<parallel>], iteration_bounds = array<i64: 1>, scalar_prefetch = 0 : i64, scratch_operands = 1 : i64, tpu.core_type = #tpu.core_type<tc>, window_params = [{transform_indices = @transform_0, window_bounds = array<i64: 1, 3, 1024>}, {transform_indices = @transform_1, window_bounds = array<i64: 1, 3, 1024>}, {pipeline_mode = #tpu.pipeline_mode<synchronous>, transform_indices = @transform_2, window_bounds = array<i64: 8, 54>}, {pipeline_mode = #tpu.pipeline_mode<synchronous>, transform_indices = @transform_3, window_bounds = array<i64: 8, 1>}, {transform_indices = @transform_4, window_bounds = array<i64: 1, 8, 1024>}]} {
    %cst = arith.constant 0.000000e+00 : f32
    %0 = vector.broadcast %cst : f32 to vector<2x3x128xf32>
    %c0 = arith.constant 0 : index
    %c0_0 = arith.constant 0 : index
    %c0_1 = arith.constant 0 : index
    %1 = vector.load %arg6[%c0, %c0_0, %c0_1] : memref<2x3x1280xf32, #tpu.memory_space<vmem>>, vector<2x3x128xf32>
    tpu.vector_store %arg6[%c0, %c0_0, %c0_1], %0 {strides = array<i32>} : memref<2x3x1280xf32, #tpu.memory_space<vmem>>, vector<2x3x128xf32>,
    %cst_2 = arith.constant 0.000000e+00 : f32
    %2 = vector.broadcast %cst_2 : f32 to vector<2x3x128xf32>
    %c0_3 = arith.constant 0 : index
    %c0_4 = arith.constant 0 : index
    %c1152 = arith.constant 1152 : index
    %3 = vector.load %arg6[%c0_3, %c0_4, %c1152] : memref<2x3x1280xf32, #tpu.memory_space<vmem>>, vector<2x3x128xf32>
    tpu.vector_store %arg6[%c0_3, %c0_4, %c1152], %2 {strides = array<i32>} : memref<2x3x1280xf32, #tpu.memory_space<vmem>>, vector<2x3x128xf32>,
    %c0_5 = arith.constant 0 : index
    %c0_6 = arith.constant 0 : index
    %c0_7 = arith.constant 0 : index
    %4 = vector.load %arg1[%c0_5, %c0_6, %c0_7] : memref<1x3x1024xf32, #tpu.memory_space<vmem>>, vector<1x3x1024xf32>
    %5 = vector.shape_cast %4 : vector<1x3x1024xf32> to vector<3x1024xf32>
    %c0_8 = arith.constant 0 : index
    %c0_9 = arith.constant 0 : index
    %c128 = arith.constant 128 : index
    %6 = vector.load %arg6[%c0_8, %c0_9, %c128] : memref<2x3x1280xf32, #tpu.memory_space<vmem>>, vector<1x3x1024xf32>
    %7 = vector.shape_cast %6 : vector<1x3x1024xf32> to vector<3x1024xf32>
    %8 = vector.shape_cast %5 : vector<3x1024xf32> to vector<1x3x1024xf32>
    tpu.vector_store %arg6[%c0_8, %c0_9, %c128], %8 {strides = array<i32>} : memref<2x3x1280xf32, #tpu.memory_space<vmem>>, vector<1x3x1024xf32>,
    %c0_10 = arith.constant 0 : index
    %c0_11 = arith.constant 0 : index
    %c0_12 = arith.constant 0 : index
    %9 = vector.load %arg2[%c0_10, %c0_11, %c0_12] : memref<1x3x1024xf32, #tpu.memory_space<vmem>>, vector<1x3x1024xf32>
    %10 = vector.shape_cast %9 : vector<1x3x1024xf32> to vector<3x1024xf32>
    %c1 = arith.constant 1 : index
    %c0_13 = arith.constant 0 : index
    %c128_14 = arith.constant 128 : index
    %11 = vector.load %arg6[%c1, %c0_13, %c128_14] : memref<2x3x1280xf32, #tpu.memory_space<vmem>>, vector<1x3x1024xf32>
    %12 = vector.shape_cast %11 : vector<1x3x1024xf32> to vector<3x1024xf32>
    %13 = vector.shape_cast %10 : vector<3x1024xf32> to vector<1x3x1024xf32>
    tpu.vector_store %arg6[%c1, %c0_13, %c128_14], %13 {strides = array<i32>} : memref<2x3x1280xf32, #tpu.memory_space<vmem>>, vector<1x3x1024xf32>,
    %c0_15 = arith.constant 0 : index
    %c0_16 = arith.constant 0 : index
    %14 = vector.load %arg3[%c0_15, %c0_16] : memref<8x54xf32, #tpu.memory_space<vmem>>, vector<8x54xf32>
    %c0_17 = arith.constant 0 : index
    %c0_18 = arith.constant 0 : index
    %15 = vector.load %arg4[%c0_17, %c0_18] : memref<8x1xf32, #tpu.memory_space<vmem>>, vector<8x1xf32>
    %16 = tpu.iota {dimensions = array<i32: 1>} : vector<1x1024xi32>
    %c32_i32 = arith.constant 32 : i32
    %c0_i32 = arith.constant 0 : i32
    %17 = arith.cmpi eq, %c32_i32, %c0_i32 : i32
    %c1_i32 = arith.constant 1 : i32
    %18 = arith.select %17, %c1_i32, %c32_i32 : i32
    %19 = vector.broadcast %18 : i32 to vector<1x1024xi32>
    %20 = arith.remsi %16, %19 : vector<1x1024xi32>
    %c0_i32_19 = arith.constant 0 : i32
    %21 = vector.broadcast %c0_i32_19 : i32 to vector<1x1024xi32>
    %22 = arith.cmpi ne, %20, %21 : vector<1x1024xi32>
    %c0_i32_20 = arith.constant 0 : i32
    %23 = vector.broadcast %c0_i32_20 : i32 to vector<1x1024xi32>
    %24 = arith.cmpi slt, %20, %23 : vector<1x1024xi32>
    %c0_i32_21 = arith.constant 0 : i32
    %25 = arith.cmpi slt, %18, %c0_i32_21 : i32
    %26 = vector.broadcast %25 : i1 to vector<1x1024xi1>
    %27 = vector.broadcast %26 : vector<1x1024xi1> to vector<1x1024xi1>
    %28 = arith.xori %24, %27 : vector<1x1024xi1>
    %29 = arith.andi %28, %22 : vector<1x1024xi1>
    %30 = vector.broadcast %18 : i32 to vector<1x1024xi32>
    %31 = arith.addi %20, %30 : vector<1x1024xi32>
    %32 = arith.select %29, %31, %20 : vector<1x1024xi1>, vector<1x1024xi32>
    %33 = vector.shape_cast %15 : vector<8x1xf32> to vector<8x1xf32>
    %34 = vector.broadcast %33 : vector<8x1xf32> to vector<8x1024xf32>
    %cst_22 = arith.constant 0.000000e+00 : f32
    %35 = vector.broadcast %cst_22 : f32 to vector<8x1024xf32>
    %c0_23 = arith.constant 0 : index
    %c0_24 = arith.constant 0 : index
    %c95 = arith.constant 95 : index
    %36 = vector.load %arg6[%c0_23, %c0_24, %c95] : memref<2x3x1280xf32, #tpu.memory_space<vmem>>, vector<1x1x1024xf32>
    %37 = vector.shape_cast %36 : vector<1x1x1024xf32> to vector<1x1024xf32>
    %38 = vector.extract_strided_slice %14 {offsets = [0, 0], sizes = [8, 1], strides = [1, 1]} : vector<8x54xf32> to vector<8x1xf32>
    %39 = vector.broadcast %38 : vector<8x1xf32> to vector<8x1024xf32>
    %40 = vector.broadcast %37 : vector<1x1024xf32> to vector<8x1024xf32>
    %41 = arith.mulf %39, %40 : vector<8x1024xf32>
    %42 = arith.addf %35, %41 : vector<8x1024xf32>
    %c0_25 = arith.constant 0 : index
    %c1_26 = arith.constant 1 : index
    %c95_27 = arith.constant 95 : index
    %43 = vector.load %arg6[%c0_25, %c1_26, %c95_27] : memref<2x3x1280xf32, #tpu.memory_space<vmem>>, vector<1x1x1024xf32>
    %44 = vector.shape_cast %43 : vector<1x1x1024xf32> to vector<1x1024xf32>
    %45 = vector.extract_strided_slice %14 {offsets = [0, 9], sizes = [8, 1], strides = [1, 1]} : vector<8x54xf32> to vector<8x1xf32>
    %46 = vector.broadcast %45 : vector<8x1xf32> to vector<8x1024xf32>
    %47 = vector.broadcast %44 : vector<1x1024xf32> to vector<8x1024xf32>
    %48 = arith.mulf %46, %47 : vector<8x1024xf32>
    %49 = arith.addf %42, %48 : vector<8x1024xf32>
    %c0_28 = arith.constant 0 : index
    %c2 = arith.constant 2 : index
    %c95_29 = arith.constant 95 : index
    %50 = vector.load %arg6[%c0_28, %c2, %c95_29] : memref<2x3x1280xf32, #tpu.memory_space<vmem>>, vector<1x1x1024xf32>
    %51 = vector.shape_cast %50 : vector<1x1x1024xf32> to vector<1x1024xf32>
    %52 = vector.extract_strided_slice %14 {offsets = [0, 18], sizes = [8, 1], strides = [1, 1]} : vector<8x54xf32> to vector<8x1xf32>
    %53 = vector.broadcast %52 : vector<8x1xf32> to vector<8x1024xf32>
    %54 = vector.broadcast %51 : vector<1x1024xf32> to vector<8x1024xf32>
    %55 = arith.mulf %53, %54 : vector<8x1024xf32>
    %56 = arith.addf %49, %55 : vector<8x1024xf32>
    %c1_30 = arith.constant 1 : index
    %c0_31 = arith.constant 0 : index
    %c95_32 = arith.constant 95 : index
    %57 = vector.load %arg6[%c1_30, %c0_31, %c95_32] : memref<2x3x1280xf32, #tpu.memory_space<vmem>>, vector<1x1x1024xf32>
    %58 = vector.shape_cast %57 : vector<1x1x1024xf32> to vector<1x1024xf32>
    %59 = vector.extract_strided_slice %14 {offsets = [0, 27], sizes = [8, 1], strides = [1, 1]} : vector<8x54xf32> to vector<8x1xf32>
    %60 = vector.broadcast %59 : vector<8x1xf32> to vector<8x1024xf32>
    %61 = vector.broadcast %58 : vector<1x1024xf32> to vector<8x1024xf32>
    %62 = arith.mulf %60, %61 : vector<8x1024xf32>
    %63 = arith.addf %56, %62 : vector<8x1024xf32>
    %c1_33 = arith.constant 1 : index
    %c1_34 = arith.constant 1 : index
    %c95_35 = arith.constant 95 : index
    %64 = vector.load %arg6[%c1_33, %c1_34, %c95_35] : memref<2x3x1280xf32, #tpu.memory_space<vmem>>, vector<1x1x1024xf32>
    %65 = vector.shape_cast %64 : vector<1x1x1024xf32> to vector<1x1024xf32>
    %66 = vector.extract_strided_slice %14 {offsets = [0, 36], sizes = [8, 1], strides = [1, 1]} : vector<8x54xf32> to vector<8x1xf32>
    %67 = vector.broadcast %66 : vector<8x1xf32> to vector<8x1024xf32>
    %68 = vector.broadcast %65 : vector<1x1024xf32> to vector<8x1024xf32>
    %69 = arith.mulf %67, %68 : vector<8x1024xf32>
    %70 = arith.addf %63, %69 : vector<8x1024xf32>
    %c1_36 = arith.constant 1 : index
    %c2_37 = arith.constant 2 : index
    %c95_38 = arith.constant 95 : index
    %71 = vector.load %arg6[%c1_36, %c2_37, %c95_38] : memref<2x3x1280xf32, #tpu.memory_space<vmem>>, vector<1x1x1024xf32>
    %72 = vector.shape_cast %71 : vector<1x1x1024xf32> to vector<1x1024xf32>
    %73 = vector.extract_strided_slice %14 {offsets = [0, 45], sizes = [8, 1], strides = [1, 1]} : vector<8x54xf32> to vector<8x1xf32>
    %74 = vector.broadcast %73 : vector<8x1xf32> to vector<8x1024xf32>
    %75 = vector.broadcast %72 : vector<1x1024xf32> to vector<8x1024xf32>
    %76 = arith.mulf %74, %75 : vector<8x1024xf32>
    %77 = arith.addf %70, %76 : vector<8x1024xf32>
    %c0_39 = arith.constant 0 : index
    %c0_40 = arith.constant 0 : index
    %c127 = arith.constant 127 : index
    %78 = vector.load %arg6[%c0_39, %c0_40, %c127] : memref<2x3x1280xf32, #tpu.memory_space<vmem>>, vector<1x1x1024xf32>
    %79 = vector.shape_cast %78 : vector<1x1x1024xf32> to vector<1x1024xf32>
    %80 = vector.extract_strided_slice %14 {offsets = [0, 3], sizes = [8, 1], strides = [1, 1]} : vector<8x54xf32> to vector<8x1xf32>
    %81 = vector.broadcast %80 : vector<8x1xf32> to vector<8x1024xf32>
    %82 = vector.broadcast %79 : vector<1x1024xf32> to vector<8x1024xf32>
    %83 = arith.mulf %81, %82 : vector<8x1024xf32>
    %84 = arith.addf %77, %83 : vector<8x1024xf32>
    %c0_41 = arith.constant 0 : index
    %c1_42 = arith.constant 1 : index
    %c127_43 = arith.constant 127 : index
    %85 = vector.load %arg6[%c0_41, %c1_42, %c127_43] : memref<2x3x1280xf32, #tpu.memory_space<vmem>>, vector<1x1x1024xf32>
    %86 = vector.shape_cast %85 : vector<1x1x1024xf32> to vector<1x1024xf32>
    %87 = vector.extract_strided_slice %14 {offsets = [0, 12], sizes = [8, 1], strides = [1, 1]} : vector<8x54xf32> to vector<8x1xf32>
    %88 = vector.broadcast %87 : vector<8x1xf32> to vector<8x1024xf32>
    %89 = vector.broadcast %86 : vector<1x1024xf32> to vector<8x1024xf32>
    %90 = arith.mulf %88, %89 : vector<8x1024xf32>
    %91 = arith.addf %84, %90 : vector<8x1024xf32>
    %c0_44 = arith.constant 0 : index
    %c2_45 = arith.constant 2 : index
    %c127_46 = arith.constant 127 : index
    %92 = vector.load %arg6[%c0_44, %c2_45, %c127_46] : memref<2x3x1280xf32, #tpu.memory_space<vmem>>, vector<1x1x1024xf32>
    %93 = vector.shape_cast %92 : vector<1x1x1024xf32> to vector<1x1024xf32>
    %94 = vector.extract_strided_slice %14 {offsets = [0, 21], sizes = [8, 1], strides = [1, 1]} : vector<8x54xf32> to vector<8x1xf32>
    %95 = vector.broadcast %94 : vector<8x1xf32> to vector<8x1024xf32>
    %96 = vector.broadcast %93 : vector<1x1024xf32> to vector<8x1024xf32>
    %97 = arith.mulf %95, %96 : vector<8x1024xf32>
    %98 = arith.addf %91, %97 : vector<8x1024xf32>
    %c1_47 = arith.constant 1 : index
    %c0_48 = arith.constant 0 : index
    %c127_49 = arith.constant 127 : index
    %99 = vector.load %arg6[%c1_47, %c0_48, %c127_49] : memref<2x3x1280xf32, #tpu.memory_space<vmem>>, vector<1x1x1024xf32>
    %100 = vector.shape_cast %99 : vector<1x1x1024xf32> to vector<1x1024xf32>
    %101 = vector.extract_strided_slice %14 {offsets = [0, 30], sizes = [8, 1], strides = [1, 1]} : vector<8x54xf32> to vector<8x1xf32>
    %102 = vector.broadcast %101 : vector<8x1xf32> to vector<8x1024xf32>
    %103 = vector.broadcast %100 : vector<1x1024xf32> to vector<8x1024xf32>
    %104 = arith.mulf %102, %103 : vector<8x1024xf32>
    %105 = arith.addf %98, %104 : vector<8x1024xf32>
    %c1_50 = arith.constant 1 : index
    %c1_51 = arith.constant 1 : index
    %c127_52 = arith.constant 127 : index
    %106 = vector.load %arg6[%c1_50, %c1_51, %c127_52] : memref<2x3x1280xf32, #tpu.memory_space<vmem>>, vector<1x1x1024xf32>
    %107 = vector.shape_cast %106 : vector<1x1x1024xf32> to vector<1x1024xf32>
    %108 = vector.extract_strided_slice %14 {offsets = [0, 39], sizes = [8, 1], strides = [1, 1]} : vector<8x54xf32> to vector<8x1xf32>
    %109 = vector.broadcast %108 : vector<8x1xf32> to vector<8x1024xf32>
    %110 = vector.broadcast %107 : vector<1x1024xf32> to vector<8x1024xf32>
    %111 = arith.mulf %109, %110 : vector<8x1024xf32>
    %112 = arith.addf %105, %111 : vector<8x1024xf32>
    %c1_53 = arith.constant 1 : index
    %c2_54 = arith.constant 2 : index
    %c127_55 = arith.constant 127 : index
    %113 = vector.load %arg6[%c1_53, %c2_54, %c127_55] : memref<2x3x1280xf32, #tpu.memory_space<vmem>>, vector<1x1x1024xf32>
    %114 = vector.shape_cast %113 : vector<1x1x1024xf32> to vector<1x1024xf32>
    %115 = vector.extract_strided_slice %14 {offsets = [0, 48], sizes = [8, 1], strides = [1, 1]} : vector<8x54xf32> to vector<8x1xf32>
    %116 = vector.broadcast %115 : vector<8x1xf32> to vector<8x1024xf32>
    %117 = vector.broadcast %114 : vector<1x1024xf32> to vector<8x1024xf32>
    %118 = arith.mulf %116, %117 : vector<8x1024xf32>
    %119 = arith.addf %112, %118 : vector<8x1024xf32>
    %c0_56 = arith.constant 0 : index
    %c0_57 = arith.constant 0 : index
    %c159 = arith.constant 159 : index
    %120 = vector.load %arg6[%c0_56, %c0_57, %c159] : memref<2x3x1280xf32, #tpu.memory_space<vmem>>, vector<1x1x1024xf32>
    %121 = vector.shape_cast %120 : vector<1x1x1024xf32> to vector<1x1024xf32>
    %122 = vector.extract_strided_slice %14 {offsets = [0, 6], sizes = [8, 1], strides = [1, 1]} : vector<8x54xf32> to vector<8x1xf32>
    %123 = vector.broadcast %122 : vector<8x1xf32> to vector<8x1024xf32>
    %124 = vector.broadcast %121 : vector<1x1024xf32> to vector<8x1024xf32>
    %125 = arith.mulf %123, %124 : vector<8x1024xf32>
    %126 = arith.addf %119, %125 : vector<8x1024xf32>
    %c0_58 = arith.constant 0 : index
    %c1_59 = arith.constant 1 : index
    %c159_60 = arith.constant 159 : index
    %127 = vector.load %arg6[%c0_58, %c1_59, %c159_60] : memref<2x3x1280xf32, #tpu.memory_space<vmem>>, vector<1x1x1024xf32>
    %128 = vector.shape_cast %127 : vector<1x1x1024xf32> to vector<1x1024xf32>
    %129 = vector.extract_strided_slice %14 {offsets = [0, 15], sizes = [8, 1], strides = [1, 1]} : vector<8x54xf32> to vector<8x1xf32>
    %130 = vector.broadcast %129 : vector<8x1xf32> to vector<8x1024xf32>
    %131 = vector.broadcast %128 : vector<1x1024xf32> to vector<8x1024xf32>
    %132 = arith.mulf %130, %131 : vector<8x1024xf32>
    %133 = arith.addf %126, %132 : vector<8x1024xf32>
    %c0_61 = arith.constant 0 : index
    %c2_62 = arith.constant 2 : index
    %c159_63 = arith.constant 159 : index
    %134 = vector.load %arg6[%c0_61, %c2_62, %c159_63] : memref<2x3x1280xf32, #tpu.memory_space<vmem>>, vector<1x1x1024xf32>
    %135 = vector.shape_cast %134 : vector<1x1x1024xf32> to vector<1x1024xf32>
    %136 = vector.extract_strided_slice %14 {offsets = [0, 24], sizes = [8, 1], strides = [1, 1]} : vector<8x54xf32> to vector<8x1xf32>
    %137 = vector.broadcast %136 : vector<8x1xf32> to vector<8x1024xf32>
    %138 = vector.broadcast %135 : vector<1x1024xf32> to vector<8x1024xf32>
    %139 = arith.mulf %137, %138 : vector<8x1024xf32>
    %140 = arith.addf %133, %139 : vector<8x1024xf32>
    %c1_64 = arith.constant 1 : index
    %c0_65 = arith.constant 0 : index
    %c159_66 = arith.constant 159 : index
    %141 = vector.load %arg6[%c1_64, %c0_65, %c159_66] : memref<2x3x1280xf32, #tpu.memory_space<vmem>>, vector<1x1x1024xf32>
    %142 = vector.shape_cast %141 : vector<1x1x1024xf32> to vector<1x1024xf32>
    %143 = vector.extract_strided_slice %14 {offsets = [0, 33], sizes = [8, 1], strides = [1, 1]} : vector<8x54xf32> to vector<8x1xf32>
    %144 = vector.broadcast %143 : vector<8x1xf32> to vector<8x1024xf32>
    %145 = vector.broadcast %142 : vector<1x1024xf32> to vector<8x1024xf32>
    %146 = arith.mulf %144, %145 : vector<8x1024xf32>
    %147 = arith.addf %140, %146 : vector<8x1024xf32>
    %c1_67 = arith.constant 1 : index
    %c1_68 = arith.constant 1 : index
    %c159_69 = arith.constant 159 : index
    %148 = vector.load %arg6[%c1_67, %c1_68, %c159_69] : memref<2x3x1280xf32, #tpu.memory_space<vmem>>, vector<1x1x1024xf32>
    %149 = vector.shape_cast %148 : vector<1x1x1024xf32> to vector<1x1024xf32>
    %150 = vector.extract_strided_slice %14 {offsets = [0, 42], sizes = [8, 1], strides = [1, 1]} : vector<8x54xf32> to vector<8x1xf32>
    %151 = vector.broadcast %150 : vector<8x1xf32> to vector<8x1024xf32>
    %152 = vector.broadcast %149 : vector<1x1024xf32> to vector<8x1024xf32>
    %153 = arith.mulf %151, %152 : vector<8x1024xf32>
    %154 = arith.addf %147, %153 : vector<8x1024xf32>
    %c1_70 = arith.constant 1 : index
    %c2_71 = arith.constant 2 : index
    %c159_72 = arith.constant 159 : index
    %155 = vector.load %arg6[%c1_70, %c2_71, %c159_72] : memref<2x3x1280xf32, #tpu.memory_space<vmem>>, vector<1x1x1024xf32>
    %156 = vector.shape_cast %155 : vector<1x1x1024xf32> to vector<1x1024xf32>
    %157 = vector.extract_strided_slice %14 {offsets = [0, 51], sizes = [8, 1], strides = [1, 1]} : vector<8x54xf32> to vector<8x1xf32>
    %158 = vector.broadcast %157 : vector<8x1xf32> to vector<8x1024xf32>
    %159 = vector.broadcast %156 : vector<1x1024xf32> to vector<8x1024xf32>
    %160 = arith.mulf %158, %159 : vector<8x1024xf32>
    %161 = arith.addf %154, %160 : vector<8x1024xf32>
    %c0_i32_73 = arith.constant 0 : i32
    %162 = vector.broadcast %c0_i32_73 : i32 to vector<1x1024xi32>
    %163 = arith.cmpi ne, %32, %162 : vector<1x1024xi32>
    %cst_74 = arith.constant 0.000000e+00 : f32
    %164 = vector.shape_cast %163 : vector<1x1024xi1> to vector<1x1024xi1>
    %165 = vector.broadcast %164 : vector<1x1024xi1> to vector<8x1024xi1>
    %166 = vector.broadcast %cst_74 : f32 to vector<8x1024xf32>
    %167 = arith.select %165, %161, %166 : vector<8x1024xi1>, vector<8x1024xf32>
    %168 = arith.addf %34, %167 : vector<8x1024xf32>
    %cst_75 = arith.constant 0.000000e+00 : f32
    %169 = vector.broadcast %cst_75 : f32 to vector<8x1024xf32>
    %c0_76 = arith.constant 0 : index
    %c0_77 = arith.constant 0 : index
    %c96 = arith.constant 96 : index
    %170 = vector.load %arg6[%c0_76, %c0_77, %c96] : memref<2x3x1280xf32, #tpu.memory_space<vmem>>, vector<1x1x1024xf32>
    %171 = vector.shape_cast %170 : vector<1x1x1024xf32> to vector<1x1024xf32>
    %172 = vector.extract_strided_slice %14 {offsets = [0, 1], sizes = [8, 1], strides = [1, 1]} : vector<8x54xf32> to vector<8x1xf32>
    %173 = vector.broadcast %172 : vector<8x1xf32> to vector<8x1024xf32>
    %174 = vector.broadcast %171 : vector<1x1024xf32> to vector<8x1024xf32>
    %175 = arith.mulf %173, %174 : vector<8x1024xf32>
    %176 = arith.addf %169, %175 : vector<8x1024xf32>
    %c0_78 = arith.constant 0 : index
    %c1_79 = arith.constant 1 : index
    %c96_80 = arith.constant 96 : index
    %177 = vector.load %arg6[%c0_78, %c1_79, %c96_80] : memref<2x3x1280xf32, #tpu.memory_space<vmem>>, vector<1x1x1024xf32>
    %178 = vector.shape_cast %177 : vector<1x1x1024xf32> to vector<1x1024xf32>
    %179 = vector.extract_strided_slice %14 {offsets = [0, 10], sizes = [8, 1], strides = [1, 1]} : vector<8x54xf32> to vector<8x1xf32>
    %180 = vector.broadcast %179 : vector<8x1xf32> to vector<8x1024xf32>
    %181 = vector.broadcast %178 : vector<1x1024xf32> to vector<8x1024xf32>
    %182 = arith.mulf %180, %181 : vector<8x1024xf32>
    %183 = arith.addf %176, %182 : vector<8x1024xf32>
    %c0_81 = arith.constant 0 : index
    %c2_82 = arith.constant 2 : index
    %c96_83 = arith.constant 96 : index
    %184 = vector.load %arg6[%c0_81, %c2_82, %c96_83] : memref<2x3x1280xf32, #tpu.memory_space<vmem>>, vector<1x1x1024xf32>
    %185 = vector.shape_cast %184 : vector<1x1x1024xf32> to vector<1x1024xf32>
    %186 = vector.extract_strided_slice %14 {offsets = [0, 19], sizes = [8, 1], strides = [1, 1]} : vector<8x54xf32> to vector<8x1xf32>
    %187 = vector.broadcast %186 : vector<8x1xf32> to vector<8x1024xf32>
    %188 = vector.broadcast %185 : vector<1x1024xf32> to vector<8x1024xf32>
    %189 = arith.mulf %187, %188 : vector<8x1024xf32>
    %190 = arith.addf %183, %189 : vector<8x1024xf32>
    %c1_84 = arith.constant 1 : index
    %c0_85 = arith.constant 0 : index
    %c96_86 = arith.constant 96 : index
    %191 = vector.load %arg6[%c1_84, %c0_85, %c96_86] : memref<2x3x1280xf32, #tpu.memory_space<vmem>>, vector<1x1x1024xf32>
    %192 = vector.shape_cast %191 : vector<1x1x1024xf32> to vector<1x1024xf32>
    %193 = vector.extract_strided_slice %14 {offsets = [0, 28], sizes = [8, 1], strides = [1, 1]} : vector<8x54xf32> to vector<8x1xf32>
    %194 = vector.broadcast %193 : vector<8x1xf32> to vector<8x1024xf32>
    %195 = vector.broadcast %192 : vector<1x1024xf32> to vector<8x1024xf32>
    %196 = arith.mulf %194, %195 : vector<8x1024xf32>
    %197 = arith.addf %190, %196 : vector<8x1024xf32>
    %c1_87 = arith.constant 1 : index
    %c1_88 = arith.constant 1 : index
    %c96_89 = arith.constant 96 : index
    %198 = vector.load %arg6[%c1_87, %c1_88, %c96_89] : memref<2x3x1280xf32, #tpu.memory_space<vmem>>, vector<1x1x1024xf32>
    %199 = vector.shape_cast %198 : vector<1x1x1024xf32> to vector<1x1024xf32>
    %200 = vector.extract_strided_slice %14 {offsets = [0, 37], sizes = [8, 1], strides = [1, 1]} : vector<8x54xf32> to vector<8x1xf32>
    %201 = vector.broadcast %200 : vector<8x1xf32> to vector<8x1024xf32>
    %202 = vector.broadcast %199 : vector<1x1024xf32> to vector<8x1024xf32>
    %203 = arith.mulf %201, %202 : vector<8x1024xf32>
    %204 = arith.addf %197, %203 : vector<8x1024xf32>
    %c1_90 = arith.constant 1 : index
    %c2_91 = arith.constant 2 : index
    %c96_92 = arith.constant 96 : index
    %205 = vector.load %arg6[%c1_90, %c2_91, %c96_92] : memref<2x3x1280xf32, #tpu.memory_space<vmem>>, vector<1x1x1024xf32>
    %206 = vector.shape_cast %205 : vector<1x1x1024xf32> to vector<1x1024xf32>
    %207 = vector.extract_strided_slice %14 {offsets = [0, 46], sizes = [8, 1], strides = [1, 1]} : vector<8x54xf32> to vector<8x1xf32>
    %208 = vector.broadcast %207 : vector<8x1xf32> to vector<8x1024xf32>
    %209 = vector.broadcast %206 : vector<1x1024xf32> to vector<8x1024xf32>
    %210 = arith.mulf %208, %209 : vector<8x1024xf32>
    %211 = arith.addf %204, %210 : vector<8x1024xf32>
    %c0_93 = arith.constant 0 : index
    %c0_94 = arith.constant 0 : index
    %c128_95 = arith.constant 128 : index
    %212 = vector.load %arg6[%c0_93, %c0_94, %c128_95] : memref<2x3x1280xf32, #tpu.memory_space<vmem>>, vector<1x1x1024xf32>
    %213 = vector.shape_cast %212 : vector<1x1x1024xf32> to vector<1x1024xf32>
    %214 = vector.extract_strided_slice %14 {offsets = [0, 4], sizes = [8, 1], strides = [1, 1]} : vector<8x54xf32> to vector<8x1xf32>
    %215 = vector.broadcast %214 : vector<8x1xf32> to vector<8x1024xf32>
    %216 = vector.broadcast %213 : vector<1x1024xf32> to vector<8x1024xf32>
    %217 = arith.mulf %215, %216 : vector<8x1024xf32>
    %218 = arith.addf %211, %217 : vector<8x1024xf32>
    %c0_96 = arith.constant 0 : index
    %c1_97 = arith.constant 1 : index
    %c128_98 = arith.constant 128 : index
    %219 = vector.load %arg6[%c0_96, %c1_97, %c128_98] : memref<2x3x1280xf32, #tpu.memory_space<vmem>>, vector<1x1x1024xf32>
    %220 = vector.shape_cast %219 : vector<1x1x1024xf32> to vector<1x1024xf32>
    %221 = vector.extract_strided_slice %14 {offsets = [0, 13], sizes = [8, 1], strides = [1, 1]} : vector<8x54xf32> to vector<8x1xf32>
    %222 = vector.broadcast %221 : vector<8x1xf32> to vector<8x1024xf32>
    %223 = vector.broadcast %220 : vector<1x1024xf32> to vector<8x1024xf32>
    %224 = arith.mulf %222, %223 : vector<8x1024xf32>
    %225 = arith.addf %218, %224 : vector<8x1024xf32>
    %c0_99 = arith.constant 0 : index
    %c2_100 = arith.constant 2 : index
    %c128_101 = arith.constant 128 : index
    %226 = vector.load %arg6[%c0_99, %c2_100, %c128_101] : memref<2x3x1280xf32, #tpu.memory_space<vmem>>, vector<1x1x1024xf32>
    %227 = vector.shape_cast %226 : vector<1x1x1024xf32> to vector<1x1024xf32>
    %228 = vector.extract_strided_slice %14 {offsets = [0, 22], sizes = [8, 1], strides = [1, 1]} : vector<8x54xf32> to vector<8x1xf32>
    %229 = vector.broadcast %228 : vector<8x1xf32> to vector<8x1024xf32>
    %230 = vector.broadcast %227 : vector<1x1024xf32> to vector<8x1024xf32>
    %231 = arith.mulf %229, %230 : vector<8x1024xf32>
    %232 = arith.addf %225, %231 : vector<8x1024xf32>
    %c1_102 = arith.constant 1 : index
    %c0_103 = arith.constant 0 : index
    %c128_104 = arith.constant 128 : index
    %233 = vector.load %arg6[%c1_102, %c0_103, %c128_104] : memref<2x3x1280xf32, #tpu.memory_space<vmem>>, vector<1x1x1024xf32>
    %234 = vector.shape_cast %233 : vector<1x1x1024xf32> to vector<1x1024xf32>
    %235 = vector.extract_strided_slice %14 {offsets = [0, 31], sizes = [8, 1], strides = [1, 1]} : vector<8x54xf32> to vector<8x1xf32>
    %236 = vector.broadcast %235 : vector<8x1xf32> to vector<8x1024xf32>
    %237 = vector.broadcast %234 : vector<1x1024xf32> to vector<8x1024xf32>
    %238 = arith.mulf %236, %237 : vector<8x1024xf32>
    %239 = arith.addf %232, %238 : vector<8x1024xf32>
    %c1_105 = arith.constant 1 : index
    %c1_106 = arith.constant 1 : index
    %c128_107 = arith.constant 128 : index
    %240 = vector.load %arg6[%c1_105, %c1_106, %c128_107] : memref<2x3x1280xf32, #tpu.memory_space<vmem>>, vector<1x1x1024xf32>
    %241 = vector.shape_cast %240 : vector<1x1x1024xf32> to vector<1x1024xf32>
    %242 = vector.extract_strided_slice %14 {offsets = [0, 40], sizes = [8, 1], strides = [1, 1]} : vector<8x54xf32> to vector<8x1xf32>
    %243 = vector.broadcast %242 : vector<8x1xf32> to vector<8x1024xf32>
    %244 = vector.broadcast %241 : vector<1x1024xf32> to vector<8x1024xf32>
    %245 = arith.mulf %243, %244 : vector<8x1024xf32>
    %246 = arith.addf %239, %245 : vector<8x1024xf32>
    %c1_108 = arith.constant 1 : index
    %c2_109 = arith.constant 2 : index
    %c128_110 = arith.constant 128 : index
    %247 = vector.load %arg6[%c1_108, %c2_109, %c128_110] : memref<2x3x1280xf32, #tpu.memory_space<vmem>>, vector<1x1x1024xf32>
    %248 = vector.shape_cast %247 : vector<1x1x1024xf32> to vector<1x1024xf32>
    %249 = vector.extract_strided_slice %14 {offsets = [0, 49], sizes = [8, 1], strides = [1, 1]} : vector<8x54xf32> to vector<8x1xf32>
    %250 = vector.broadcast %249 : vector<8x1xf32> to vector<8x1024xf32>
    %251 = vector.broadcast %248 : vector<1x1024xf32> to vector<8x1024xf32>
    %252 = arith.mulf %250, %251 : vector<8x1024xf32>
    %253 = arith.addf %246, %252 : vector<8x1024xf32>
    %c0_111 = arith.constant 0 : index
    %c0_112 = arith.constant 0 : index
    %c160 = arith.constant 160 : index
    %254 = vector.load %arg6[%c0_111, %c0_112, %c160] : memref<2x3x1280xf32, #tpu.memory_space<vmem>>, vector<1x1x1024xf32>
    %255 = vector.shape_cast %254 : vector<1x1x1024xf32> to vector<1x1024xf32>
    %256 = vector.extract_strided_slice %14 {offsets = [0, 7], sizes = [8, 1], strides = [1, 1]} : vector<8x54xf32> to vector<8x1xf32>
    %257 = vector.broadcast %256 : vector<8x1xf32> to vector<8x1024xf32>
    %258 = vector.broadcast %255 : vector<1x1024xf32> to vector<8x1024xf32>
    %259 = arith.mulf %257, %258 : vector<8x1024xf32>
    %260 = arith.addf %253, %259 : vector<8x1024xf32>
    %c0_113 = arith.constant 0 : index
    %c1_114 = arith.constant 1 : index
    %c160_115 = arith.constant 160 : index
    %261 = vector.load %arg6[%c0_113, %c1_114, %c160_115] : memref<2x3x1280xf32, #tpu.memory_space<vmem>>, vector<1x1x1024xf32>
    %262 = vector.shape_cast %261 : vector<1x1x1024xf32> to vector<1x1024xf32>
    %263 = vector.extract_strided_slice %14 {offsets = [0, 16], sizes = [8, 1], strides = [1, 1]} : vector<8x54xf32> to vector<8x1xf32>
    %264 = vector.broadcast %263 : vector<8x1xf32> to vector<8x1024xf32>
    %265 = vector.broadcast %262 : vector<1x1024xf32> to vector<8x1024xf32>
    %266 = arith.mulf %264, %265 : vector<8x1024xf32>
    %267 = arith.addf %260, %266 : vector<8x1024xf32>
    %c0_116 = arith.constant 0 : index
    %c2_117 = arith.constant 2 : index
    %c160_118 = arith.constant 160 : index
    %268 = vector.load %arg6[%c0_116, %c2_117, %c160_118] : memref<2x3x1280xf32, #tpu.memory_space<vmem>>, vector<1x1x1024xf32>
    %269 = vector.shape_cast %268 : vector<1x1x1024xf32> to vector<1x1024xf32>
    %270 = vector.extract_strided_slice %14 {offsets = [0, 25], sizes = [8, 1], strides = [1, 1]} : vector<8x54xf32> to vector<8x1xf32>
    %271 = vector.broadcast %270 : vector<8x1xf32> to vector<8x1024xf32>
    %272 = vector.broadcast %269 : vector<1x1024xf32> to vector<8x1024xf32>
    %273 = arith.mulf %271, %272 : vector<8x1024xf32>
    %274 = arith.addf %267, %273 : vector<8x1024xf32>
    %c1_119 = arith.constant 1 : index
    %c0_120 = arith.constant 0 : index
    %c160_121 = arith.constant 160 : index
    %275 = vector.load %arg6[%c1_119, %c0_120, %c160_121] : memref<2x3x1280xf32, #tpu.memory_space<vmem>>, vector<1x1x1024xf32>
    %276 = vector.shape_cast %275 : vector<1x1x1024xf32> to vector<1x1024xf32>
    %277 = vector.extract_strided_slice %14 {offsets = [0, 34], sizes = [8, 1], strides = [1, 1]} : vector<8x54xf32> to vector<8x1xf32>
    %278 = vector.broadcast %277 : vector<8x1xf32> to vector<8x1024xf32>
    %279 = vector.broadcast %276 : vector<1x1024xf32> to vector<8x1024xf32>
    %280 = arith.mulf %278, %279 : vector<8x1024xf32>
    %281 = arith.addf %274, %280 : vector<8x1024xf32>
    %c1_122 = arith.constant 1 : index
    %c1_123 = arith.constant 1 : index
    %c160_124 = arith.constant 160 : index
    %282 = vector.load %arg6[%c1_122, %c1_123, %c160_124] : memref<2x3x1280xf32, #tpu.memory_space<vmem>>, vector<1x1x1024xf32>
    %283 = vector.shape_cast %282 : vector<1x1x1024xf32> to vector<1x1024xf32>
    %284 = vector.extract_strided_slice %14 {offsets = [0, 43], sizes = [8, 1], strides = [1, 1]} : vector<8x54xf32> to vector<8x1xf32>
    %285 = vector.broadcast %284 : vector<8x1xf32> to vector<8x1024xf32>
    %286 = vector.broadcast %283 : vector<1x1024xf32> to vector<8x1024xf32>
    %287 = arith.mulf %285, %286 : vector<8x1024xf32>
    %288 = arith.addf %281, %287 : vector<8x1024xf32>
    %c1_125 = arith.constant 1 : index
    %c2_126 = arith.constant 2 : index
    %c160_127 = arith.constant 160 : index
    %289 = vector.load %arg6[%c1_125, %c2_126, %c160_127] : memref<2x3x1280xf32, #tpu.memory_space<vmem>>, vector<1x1x1024xf32>
    %290 = vector.shape_cast %289 : vector<1x1x1024xf32> to vector<1x1024xf32>
    %291 = vector.extract_strided_slice %14 {offsets = [0, 52], sizes = [8, 1], strides = [1, 1]} : vector<8x54xf32> to vector<8x1xf32>
    %292 = vector.broadcast %291 : vector<8x1xf32> to vector<8x1024xf32>
    %293 = vector.broadcast %290 : vector<1x1024xf32> to vector<8x1024xf32>
    %294 = arith.mulf %292, %293 : vector<8x1024xf32>
    %295 = arith.addf %288, %294 : vector<8x1024xf32>
    %296 = arith.addf %168, %295 : vector<8x1024xf32>
    %cst_128 = arith.constant 0.000000e+00 : f32
    %297 = vector.broadcast %cst_128 : f32 to vector<8x1024xf32>
    %c0_129 = arith.constant 0 : index
    %c0_130 = arith.constant 0 : index
    %c97 = arith.constant 97 : index
    %298 = vector.load %arg6[%c0_129, %c0_130, %c97] : memref<2x3x1280xf32, #tpu.memory_space<vmem>>, vector<1x1x1024xf32>
    %299 = vector.shape_cast %298 : vector<1x1x1024xf32> to vector<1x1024xf32>
    %300 = vector.extract_strided_slice %14 {offsets = [0, 2], sizes = [8, 1], strides = [1, 1]} : vector<8x54xf32> to vector<8x1xf32>
    %301 = vector.broadcast %300 : vector<8x1xf32> to vector<8x1024xf32>
    %302 = vector.broadcast %299 : vector<1x1024xf32> to vector<8x1024xf32>
    %303 = arith.mulf %301, %302 : vector<8x1024xf32>
    %304 = arith.addf %297, %303 : vector<8x1024xf32>
    %c0_131 = arith.constant 0 : index
    %c1_132 = arith.constant 1 : index
    %c97_133 = arith.constant 97 : index
    %305 = vector.load %arg6[%c0_131, %c1_132, %c97_133] : memref<2x3x1280xf32, #tpu.memory_space<vmem>>, vector<1x1x1024xf32>
    %306 = vector.shape_cast %305 : vector<1x1x1024xf32> to vector<1x1024xf32>
    %307 = vector.extract_strided_slice %14 {offsets = [0, 11], sizes = [8, 1], strides = [1, 1]} : vector<8x54xf32> to vector<8x1xf32>
    %308 = vector.broadcast %307 : vector<8x1xf32> to vector<8x1024xf32>
    %309 = vector.broadcast %306 : vector<1x1024xf32> to vector<8x1024xf32>
    %310 = arith.mulf %308, %309 : vector<8x1024xf32>
    %311 = arith.addf %304, %310 : vector<8x1024xf32>
    %c0_134 = arith.constant 0 : index
    %c2_135 = arith.constant 2 : index
    %c97_136 = arith.constant 97 : index
    %312 = vector.load %arg6[%c0_134, %c2_135, %c97_136] : memref<2x3x1280xf32, #tpu.memory_space<vmem>>, vector<1x1x1024xf32>
    %313 = vector.shape_cast %312 : vector<1x1x1024xf32> to vector<1x1024xf32>
    %314 = vector.extract_strided_slice %14 {offsets = [0, 20], sizes = [8, 1], strides = [1, 1]} : vector<8x54xf32> to vector<8x1xf32>
    %315 = vector.broadcast %314 : vector<8x1xf32> to vector<8x1024xf32>
    %316 = vector.broadcast %313 : vector<1x1024xf32> to vector<8x1024xf32>
    %317 = arith.mulf %315, %316 : vector<8x1024xf32>
    %318 = arith.addf %311, %317 : vector<8x1024xf32>
    %c1_137 = arith.constant 1 : index
    %c0_138 = arith.constant 0 : index
    %c97_139 = arith.constant 97 : index
    %319 = vector.load %arg6[%c1_137, %c0_138, %c97_139] : memref<2x3x1280xf32, #tpu.memory_space<vmem>>, vector<1x1x1024xf32>
    %320 = vector.shape_cast %319 : vector<1x1x1024xf32> to vector<1x1024xf32>
    %321 = vector.extract_strided_slice %14 {offsets = [0, 29], sizes = [8, 1], strides = [1, 1]} : vector<8x54xf32> to vector<8x1xf32>
    %322 = vector.broadcast %321 : vector<8x1xf32> to vector<8x1024xf32>
    %323 = vector.broadcast %320 : vector<1x1024xf32> to vector<8x1024xf32>
    %324 = arith.mulf %322, %323 : vector<8x1024xf32>
    %325 = arith.addf %318, %324 : vector<8x1024xf32>
    %c1_140 = arith.constant 1 : index
    %c1_141 = arith.constant 1 : index
    %c97_142 = arith.constant 97 : index
    %326 = vector.load %arg6[%c1_140, %c1_141, %c97_142] : memref<2x3x1280xf32, #tpu.memory_space<vmem>>, vector<1x1x1024xf32>
    %327 = vector.shape_cast %326 : vector<1x1x1024xf32> to vector<1x1024xf32>
    %328 = vector.extract_strided_slice %14 {offsets = [0, 38], sizes = [8, 1], strides = [1, 1]} : vector<8x54xf32> to vector<8x1xf32>
    %329 = vector.broadcast %328 : vector<8x1xf32> to vector<8x1024xf32>
    %330 = vector.broadcast %327 : vector<1x1024xf32> to vector<8x1024xf32>
    %331 = arith.mulf %329, %330 : vector<8x1024xf32>
    %332 = arith.addf %325, %331 : vector<8x1024xf32>
    %c1_143 = arith.constant 1 : index
    %c2_144 = arith.constant 2 : index
    %c97_145 = arith.constant 97 : index
    %333 = vector.load %arg6[%c1_143, %c2_144, %c97_145] : memref<2x3x1280xf32, #tpu.memory_space<vmem>>, vector<1x1x1024xf32>
    %334 = vector.shape_cast %333 : vector<1x1x1024xf32> to vector<1x1024xf32>
    %335 = vector.extract_strided_slice %14 {offsets = [0, 47], sizes = [8, 1], strides = [1, 1]} : vector<8x54xf32> to vector<8x1xf32>
    %336 = vector.broadcast %335 : vector<8x1xf32> to vector<8x1024xf32>
    %337 = vector.broadcast %334 : vector<1x1024xf32> to vector<8x1024xf32>
    %338 = arith.mulf %336, %337 : vector<8x1024xf32>
    %339 = arith.addf %332, %338 : vector<8x1024xf32>
    %c0_146 = arith.constant 0 : index
    %c0_147 = arith.constant 0 : index
    %c129 = arith.constant 129 : index
    %340 = vector.load %arg6[%c0_146, %c0_147, %c129] : memref<2x3x1280xf32, #tpu.memory_space<vmem>>, vector<1x1x1024xf32>
    %341 = vector.shape_cast %340 : vector<1x1x1024xf32> to vector<1x1024xf32>
    %342 = vector.extract_strided_slice %14 {offsets = [0, 5], sizes = [8, 1], strides = [1, 1]} : vector<8x54xf32> to vector<8x1xf32>
    %343 = vector.broadcast %342 : vector<8x1xf32> to vector<8x1024xf32>
    %344 = vector.broadcast %341 : vector<1x1024xf32> to vector<8x1024xf32>
    %345 = arith.mulf %343, %344 : vector<8x1024xf32>
    %346 = arith.addf %339, %345 : vector<8x1024xf32>
    %c0_148 = arith.constant 0 : index
    %c1_149 = arith.constant 1 : index
    %c129_150 = arith.constant 129 : index
    %347 = vector.load %arg6[%c0_148, %c1_149, %c129_150] : memref<2x3x1280xf32, #tpu.memory_space<vmem>>, vector<1x1x1024xf32>
    %348 = vector.shape_cast %347 : vector<1x1x1024xf32> to vector<1x1024xf32>
    %349 = vector.extract_strided_slice %14 {offsets = [0, 14], sizes = [8, 1], strides = [1, 1]} : vector<8x54xf32> to vector<8x1xf32>
    %350 = vector.broadcast %349 : vector<8x1xf32> to vector<8x1024xf32>
    %351 = vector.broadcast %348 : vector<1x1024xf32> to vector<8x1024xf32>
    %352 = arith.mulf %350, %351 : vector<8x1024xf32>
    %353 = arith.addf %346, %352 : vector<8x1024xf32>
    %c0_151 = arith.constant 0 : index
    %c2_152 = arith.constant 2 : index
    %c129_153 = arith.constant 129 : index
    %354 = vector.load %arg6[%c0_151, %c2_152, %c129_153] : memref<2x3x1280xf32, #tpu.memory_space<vmem>>, vector<1x1x1024xf32>
    %355 = vector.shape_cast %354 : vector<1x1x1024xf32> to vector<1x1024xf32>
    %356 = vector.extract_strided_slice %14 {offsets = [0, 23], sizes = [8, 1], strides = [1, 1]} : vector<8x54xf32> to vector<8x1xf32>
    %357 = vector.broadcast %356 : vector<8x1xf32> to vector<8x1024xf32>
    %358 = vector.broadcast %355 : vector<1x1024xf32> to vector<8x1024xf32>
    %359 = arith.mulf %357, %358 : vector<8x1024xf32>
    %360 = arith.addf %353, %359 : vector<8x1024xf32>
    %c1_154 = arith.constant 1 : index
    %c0_155 = arith.constant 0 : index
    %c129_156 = arith.constant 129 : index
    %361 = vector.load %arg6[%c1_154, %c0_155, %c129_156] : memref<2x3x1280xf32, #tpu.memory_space<vmem>>, vector<1x1x1024xf32>
    %362 = vector.shape_cast %361 : vector<1x1x1024xf32> to vector<1x1024xf32>
    %363 = vector.extract_strided_slice %14 {offsets = [0, 32], sizes = [8, 1], strides = [1, 1]} : vector<8x54xf32> to vector<8x1xf32>
    %364 = vector.broadcast %363 : vector<8x1xf32> to vector<8x1024xf32>
    %365 = vector.broadcast %362 : vector<1x1024xf32> to vector<8x1024xf32>
    %366 = arith.mulf %364, %365 : vector<8x1024xf32>
    %367 = arith.addf %360, %366 : vector<8x1024xf32>
    %c1_157 = arith.constant 1 : index
    %c1_158 = arith.constant 1 : index
    %c129_159 = arith.constant 129 : index
    %368 = vector.load %arg6[%c1_157, %c1_158, %c129_159] : memref<2x3x1280xf32, #tpu.memory_space<vmem>>, vector<1x1x1024xf32>
    %369 = vector.shape_cast %368 : vector<1x1x1024xf32> to vector<1x1024xf32>
    %370 = vector.extract_strided_slice %14 {offsets = [0, 41], sizes = [8, 1], strides = [1, 1]} : vector<8x54xf32> to vector<8x1xf32>
    %371 = vector.broadcast %370 : vector<8x1xf32> to vector<8x1024xf32>
    %372 = vector.broadcast %369 : vector<1x1024xf32> to vector<8x1024xf32>
    %373 = arith.mulf %371, %372 : vector<8x1024xf32>
    %374 = arith.addf %367, %373 : vector<8x1024xf32>
    %c1_160 = arith.constant 1 : index
    %c2_161 = arith.constant 2 : index
    %c129_162 = arith.constant 129 : index
    %375 = vector.load %arg6[%c1_160, %c2_161, %c129_162] : memref<2x3x1280xf32, #tpu.memory_space<vmem>>, vector<1x1x1024xf32>
    %376 = vector.shape_cast %375 : vector<1x1x1024xf32> to vector<1x1024xf32>
    %377 = vector.extract_strided_slice %14 {offsets = [0, 50], sizes = [8, 1], strides = [1, 1]} : vector<8x54xf32> to vector<8x1xf32>
    %378 = vector.broadcast %377 : vector<8x1xf32> to vector<8x1024xf32>
    %379 = vector.broadcast %376 : vector<1x1024xf32> to vector<8x1024xf32>
    %380 = arith.mulf %378, %379 : vector<8x1024xf32>
    %381 = arith.addf %374, %380 : vector<8x1024xf32>
    %c0_163 = arith.constant 0 : index
    %c0_164 = arith.constant 0 : index
    %c161 = arith.constant 161 : index
    %382 = vector.load %arg6[%c0_163, %c0_164, %c161] : memref<2x3x1280xf32, #tpu.memory_space<vmem>>, vector<1x1x1024xf32>
    %383 = vector.shape_cast %382 : vector<1x1x1024xf32> to vector<1x1024xf32>
    %384 = vector.extract_strided_slice %14 {offsets = [0, 8], sizes = [8, 1], strides = [1, 1]} : vector<8x54xf32> to vector<8x1xf32>
    %385 = vector.broadcast %384 : vector<8x1xf32> to vector<8x1024xf32>
    %386 = vector.broadcast %383 : vector<1x1024xf32> to vector<8x1024xf32>
    %387 = arith.mulf %385, %386 : vector<8x1024xf32>
    %388 = arith.addf %381, %387 : vector<8x1024xf32>
    %c0_165 = arith.constant 0 : index
    %c1_166 = arith.constant 1 : index
    %c161_167 = arith.constant 161 : index
    %389 = vector.load %arg6[%c0_165, %c1_166, %c161_167] : memref<2x3x1280xf32, #tpu.memory_space<vmem>>, vector<1x1x1024xf32>
    %390 = vector.shape_cast %389 : vector<1x1x1024xf32> to vector<1x1024xf32>
    %391 = vector.extract_strided_slice %14 {offsets = [0, 17], sizes = [8, 1], strides = [1, 1]} : vector<8x54xf32> to vector<8x1xf32>
    %392 = vector.broadcast %391 : vector<8x1xf32> to vector<8x1024xf32>
    %393 = vector.broadcast %390 : vector<1x1024xf32> to vector<8x1024xf32>
    %394 = arith.mulf %392, %393 : vector<8x1024xf32>
    %395 = arith.addf %388, %394 : vector<8x1024xf32>
    %c0_168 = arith.constant 0 : index
    %c2_169 = arith.constant 2 : index
    %c161_170 = arith.constant 161 : index
    %396 = vector.load %arg6[%c0_168, %c2_169, %c161_170] : memref<2x3x1280xf32, #tpu.memory_space<vmem>>, vector<1x1x1024xf32>
    %397 = vector.shape_cast %396 : vector<1x1x1024xf32> to vector<1x1024xf32>
    %398 = vector.extract_strided_slice %14 {offsets = [0, 26], sizes = [8, 1], strides = [1, 1]} : vector<8x54xf32> to vector<8x1xf32>
    %399 = vector.broadcast %398 : vector<8x1xf32> to vector<8x1024xf32>
    %400 = vector.broadcast %397 : vector<1x1024xf32> to vector<8x1024xf32>
    %401 = arith.mulf %399, %400 : vector<8x1024xf32>
    %402 = arith.addf %395, %401 : vector<8x1024xf32>
    %c1_171 = arith.constant 1 : index
    %c0_172 = arith.constant 0 : index
    %c161_173 = arith.constant 161 : index
    %403 = vector.load %arg6[%c1_171, %c0_172, %c161_173] : memref<2x3x1280xf32, #tpu.memory_space<vmem>>, vector<1x1x1024xf32>
    %404 = vector.shape_cast %403 : vector<1x1x1024xf32> to vector<1x1024xf32>
    %405 = vector.extract_strided_slice %14 {offsets = [0, 35], sizes = [8, 1], strides = [1, 1]} : vector<8x54xf32> to vector<8x1xf32>
    %406 = vector.broadcast %405 : vector<8x1xf32> to vector<8x1024xf32>
    %407 = vector.broadcast %404 : vector<1x1024xf32> to vector<8x1024xf32>
    %408 = arith.mulf %406, %407 : vector<8x1024xf32>
    %409 = arith.addf %402, %408 : vector<8x1024xf32>
    %c1_174 = arith.constant 1 : index
    %c1_175 = arith.constant 1 : index
    %c161_176 = arith.constant 161 : index
    %410 = vector.load %arg6[%c1_174, %c1_175, %c161_176] : memref<2x3x1280xf32, #tpu.memory_space<vmem>>, vector<1x1x1024xf32>
    %411 = vector.shape_cast %410 : vector<1x1x1024xf32> to vector<1x1024xf32>
    %412 = vector.extract_strided_slice %14 {offsets = [0, 44], sizes = [8, 1], strides = [1, 1]} : vector<8x54xf32> to vector<8x1xf32>
    %413 = vector.broadcast %412 : vector<8x1xf32> to vector<8x1024xf32>
    %414 = vector.broadcast %411 : vector<1x1024xf32> to vector<8x1024xf32>
    %415 = arith.mulf %413, %414 : vector<8x1024xf32>
    %416 = arith.addf %409, %415 : vector<8x1024xf32>
    %c1_177 = arith.constant 1 : index
    %c2_178 = arith.constant 2 : index
    %c161_179 = arith.constant 161 : index
    %417 = vector.load %arg6[%c1_177, %c2_178, %c161_179] : memref<2x3x1280xf32, #tpu.memory_space<vmem>>, vector<1x1x1024xf32>
    %418 = vector.shape_cast %417 : vector<1x1x1024xf32> to vector<1x1024xf32>
    %419 = vector.extract_strided_slice %14 {offsets = [0, 53], sizes = [8, 1], strides = [1, 1]} : vector<8x54xf32> to vector<8x1xf32>
    %420 = vector.broadcast %419 : vector<8x1xf32> to vector<8x1024xf32>
    %421 = vector.broadcast %418 : vector<1x1024xf32> to vector<8x1024xf32>
    %422 = arith.mulf %420, %421 : vector<8x1024xf32>
    %423 = arith.addf %416, %422 : vector<8x1024xf32>
    %c31_i32 = arith.constant 31 : i32
    %424 = vector.broadcast %c31_i32 : i32 to vector<1x1024xi32>
    %425 = arith.cmpi ne, %32, %424 : vector<1x1024xi32>
    %cst_180 = arith.constant 0.000000e+00 : f32
    %426 = vector.shape_cast %425 : vector<1x1024xi1> to vector<1x1024xi1>
    %427 = vector.broadcast %426 : vector<1x1024xi1> to vector<8x1024xi1>
    %428 = vector.broadcast %cst_180 : f32 to vector<8x1024xf32>
    %429 = arith.select %427, %423, %428 : vector<8x1024xi1>, vector<8x1024xf32>
    %430 = arith.addf %296, %429 : vector<8x1024xf32>
    %c0_181 = arith.constant 0 : index
    %c0_182 = arith.constant 0 : index
    %c0_183 = arith.constant 0 : index
    %431 = vector.load %arg5[%c0_181, %c0_182, %c0_183] : memref<1x8x1024xf32, #tpu.memory_space<vmem>>, vector<1x8x1024xf32>
    %432 = vector.shape_cast %431 : vector<1x8x1024xf32> to vector<8x1024xf32>
    %433 = vector.shape_cast %430 : vector<8x1024xf32> to vector<1x8x1024xf32>
    tpu.vector_store %arg5[%c0_181, %c0_182, %c0_183], %433 {strides = array<i32>} : memref<1x8x1024xf32, #tpu.memory_space<vmem>>, vector<1x8x1024xf32>,
    return
  }
  func.func @transform_0(%arg0: i32) -> (i32, i32, i32) {
    %c0_i32 = arith.constant 0 : i32
    %c0_i32_0 = arith.constant 0 : i32
    %c0_i32_1 = arith.constant 0 : i32
    return %arg0, %c0_i32, %c0_i32_0 : i32, i32, i32
  }
  func.func @transform_1(%arg0: i32) -> (i32, i32, i32) {
    %c0_i32 = arith.constant 0 : i32
    %c0_i32_0 = arith.constant 0 : i32
    %c0_i32_1 = arith.constant 0 : i32
    return %arg0, %c0_i32, %c0_i32_0 : i32, i32, i32
  }
  func.func @transform_2(%arg0: i32) -> (i32, i32) {
    %c0_i32 = arith.constant 0 : i32
    %c0_i32_0 = arith.constant 0 : i32
    %c0_i32_1 = arith.constant 0 : i32
    return %c0_i32, %c0_i32_0 : i32, i32
  }
  func.func @transform_3(%arg0: i32) -> (i32, i32) {
    %c0_i32 = arith.constant 0 : i32
    %c0_i32_0 = arith.constant 0 : i32
    %c0_i32_1 = arith.constant 0 : i32
    return %c0_i32, %c0_i32_0 : i32, i32
  }
  func.func @transform_4(%arg0: i32) -> (i32, i32, i32) {
    %c0_i32 = arith.constant 0 : i32
    %c0_i32_0 = arith.constant 0 : i32
    %c0_i32_1 = arith.constant 0 : i32
    return %arg0, %c0_i32, %c0_i32_0 : i32, i32, i32
  }
}

</mosaic_0001>

<llo_original>
// kernel: conv_conv_add.1
$region0: #{conv_conv_add.1}
  #allocation0 [shape = 'u32[]', space=smem, size = 0x4, offset = 0x4, fixed_abs, tag = 'smem constant byte address 0x4 - core index']
  #allocation1 [shape = 'u32[144,128]{1,0:T(1,128)}', space=vmem, size = 0x12000, scoped, tag = 'internal scratch']
  #allocation2 [shape = 'f32[2,3,1280]{2,1,0:T(4,128)}', space=vmem, size = 0xa000, scoped, tag = 'scratch operand']
  %s0 = inlined_call_operand.vmem [shape: f32[1,3,1024], index: 0, kind: input, shape index: {}]
  %s1 = inlined_call_operand.vmem [shape: f32[1,3,1024], index: 1, kind: input, shape index: {}]
  %s2 = inlined_call_operand.vmem [shape: f32[8,54], index: 2, kind: input, shape index: {}]
  %s3 = inlined_call_operand.vmem [shape: f32[8,1], index: 3, kind: input, shape index: {}]
  %s4 = inlined_call_operand.vmem [shape: f32[1,8,1024], index: 4, kind: output, shape index: {}]
  %s5 = sld [smem:[#allocation0]]
  $region26: #{conv_conv_add.1} parent=0
    _
  %s7 = ssub.s32 1, %s5
  %s8 = scalar_select 0, %s7, %s5
  // Predicated region
  $region2: #{conv_conv_add.1} parent=0 // pred_check
    _
  $region3: #{conv_conv_add.1} parent=0 // pred_check_branch
    %10 = sbr.rel (0) target = $region5
  $region4: #{conv_conv_add.1} parent=0 // pred_region
    _
  $region5: #{conv_conv_add.1} parent=0 // pred_fallthru
    _
  // Predicated region
  $region6: #{conv_conv_add.1} parent=0 // pred_check
    _
  $region7: #{conv_conv_add.1} parent=0 // pred_check_branch
    %12 = sbr.rel (0) target = $region9
  $region8: #{conv_conv_add.1} parent=0 // pred_region
    _
  $region9: #{conv_conv_add.1} parent=0 // pred_fallthru
    _
  // Predicated region
  $region10: #{conv_conv_add.1} parent=0 // pred_check
    _
  $region11: #{conv_conv_add.1} parent=0 // pred_check_branch
    %14 = sbr.rel (0) target = $region13
  $region12: #{conv_conv_add.1} parent=0 // pred_region
    _
  $region13: #{conv_conv_add.1} parent=0 // pred_fallthru
    _
  // Predicated region
  $region14: #{conv_conv_add.1} parent=0 // pred_check
    _
  $region15: #{conv_conv_add.1} parent=0 // pred_check_branch
    %16 = sbr.rel (0) target = $region17
  $region16: #{conv_conv_add.1} parent=0 // pred_region
    _
  $region17: #{conv_conv_add.1} parent=0 // pred_fallthru
    _
  %17 = vst [vmem:[#allocation2] sm:$0x7] 0.0
  %18 = vst [vmem:[#allocation2 + $0x28] sm:$0x7] 0.0
  %19 = vst [vmem:[#allocation2 + $0x24] sm:$0x7] 0.0
  %20 = vst [vmem:[#allocation2 + $0x4c] sm:$0x7] 0.0
  %v21 = vld [vmem:[%s0] sm:$0x77]
  %v22 = vld [vmem:[%s0 + $0x8] sm:$0x77]
  %v23 = vld [vmem:[%s0 + $0x10] sm:$0x77]
  %v24 = vld [vmem:[%s0 + $0x18] sm:$0x77]
  %25 = vst [vmem:[#allocation2 + $0x4] sm:$0x77] %v21
  %26 = vst [vmem:[#allocation2 + $0xc] sm:$0x77] %v22
  %27 = vst [vmem:[#allocation2 + $0x14] sm:$0x77] %v23
  %28 = vst [vmem:[#allocation2 + $0x1c] sm:$0x77] %v24
  %v29 = vld [vmem:[%s1] sm:$0x77]
  %v30 = vld [vmem:[%s1 + $0x8] sm:$0x77]
  %v31 = vld [vmem:[%s1 + $0x10] sm:$0x77]
  %v32 = vld [vmem:[%s1 + $0x18] sm:$0x77]
  %s33 = scalar_lea.vmem [#allocation2], 40
  %34 = vst [vmem:[%s33 + $0x4] sm:$0x77] %v29
  %35 = vst [vmem:[%s33 + $0xc] sm:$0x77] %v30
  %36 = vst [vmem:[%s33 + $0x14] sm:$0x77] %v31
  %37 = vst [vmem:[%s33 + $0x1c] sm:$0x77] %v32
  %v38 = vld [vmem:[%s2] sm:$0xff]
  %v39 = vld [vmem:[%s3] sm:$0xff]
  %v40 = vlaneseq
  %v41 = vand.u32 %v40, 127
  %v42 = vadd.s32 %v41, 128
  %v43 = vadd.s32 %v41, 256
  %v44 = vadd.s32 %v41, 384
  %v45 = vadd.s32 %v41, 512
  %v46 = vadd.s32 %v41, 640
  %v47 = vadd.s32 %v41, 768
  %v48 = vadd.s32 %v41, 896
  %vm49 = vcmp.lt.s32.totalorder %v41, 0
  %v50 = vsub.s32 0, %v41
  %v51 = vsel %vm49, %v50, %v41
  %v52 = vshrl.u32 %v51, 5
  %v53 = vand.u32 %v51, 31
  %v54 = vsub.s32 0, %v53
  %v55 = vsel %vm49, %v54, %v53
  %vm56 = vcmp.lt.s32.totalorder %v42, 0
  %v57 = vsub.s32 0, %v42
  %v58 = vsel %vm56, %v57, %v42
  %v59 = vshrl.u32 %v58, 5
  %v60 = vand.u32 %v58, 31
  %v61 = vsub.s32 0, %v60
  %v62 = vsel %vm56, %v61, %v60
  %vm63 = vcmp.lt.s32.totalorder %v43, 0
  %v64 = vsub.s32 0, %v43
  %v65 = vsel %vm63, %v64, %v43
  %v66 = vshrl.u32 %v65, 5
  %v67 = vand.u32 %v65, 31
  %v68 = vsub.s32 0, %v67
  %v69 = vsel %vm63, %v68, %v67
  %vm70 = vcmp.lt.s32.totalorder %v44, 0
  %v71 = vsub.s32 0, %v44
  %v72 = vsel %vm70, %v71, %v44
  %v73 = vshrl.u32 %v72, 5
  %v74 = vand.u32 %v72, 31
  %v75 = vsub.s32 0, %v74
  %v76 = vsel %vm70, %v75, %v74
  %vm77 = vcmp.lt.s32.totalorder %v45, 0
  %v78 = vsub.s32 0, %v45
  %v79 = vsel %vm77, %v78, %v45
  %v80 = vshrl.u32 %v79, 5
  %v81 = vand.u32 %v79, 31
  %v82 = vsub.s32 0, %v81
  %v83 = vsel %vm77, %v82, %v81
  %vm84 = vcmp.lt.s32.totalorder %v46, 0
  %v85 = vsub.s32 0, %v46
  %v86 = vsel %vm84, %v85, %v46
  %v87 = vshrl.u32 %v86, 5
  %v88 = vand.u32 %v86, 31
  %v89 = vsub.s32 0, %v88
  %v90 = vsel %vm84, %v89, %v88
  %vm91 = vcmp.lt.s32.totalorder %v47, 0
  %v92 = vsub.s32 0, %v47
  %v93 = vsel %vm91, %v92, %v47
  %v94 = vshrl.u32 %v93, 5
  %v95 = vand.u32 %v93, 31
  %v96 = vsub.s32 0, %v95
  %v97 = vsel %vm91, %v96, %v95
  %vm98 = vcmp.lt.s32.totalorder %v48, 0
  %v99 = vsub.s32 0, %v48
  %v100 = vsel %vm98, %v99, %v48
  %v101 = vshrl.u32 %v100, 5
  %v102 = vand.u32 %v100, 31
  %v103 = vsub.s32 0, %v102
  %v104 = vsel %vm98, %v103, %v102
  %vm105 = vcmp.ne.s32.totalorder %v55, 0
  %vm106 = vcmp.ne.s32.totalorder %v62, 0
  %vm107 = vcmp.ne.s32.totalorder %v69, 0
  %vm108 = vcmp.ne.s32.totalorder %v76, 0
  %vm109 = vcmp.ne.s32.totalorder %v83, 0
  %vm110 = vcmp.ne.s32.totalorder %v90, 0
  %vm111 = vcmp.ne.s32.totalorder %v97, 0
  %vm112 = vcmp.ne.s32.totalorder %v104, 0
  %vm113 = vcmp.lt.s32.totalorder %v55, 0
  %vm114 = vcmp.lt.s32.totalorder %v62, 0
  %vm115 = vcmp.lt.s32.totalorder %v69, 0
  %vm116 = vcmp.lt.s32.totalorder %v76, 0
  %vm117 = vcmp.lt.s32.totalorder %v83, 0
  %vm118 = vcmp.lt.s32.totalorder %v90, 0
  %vm119 = vcmp.lt.s32.totalorder %v97, 0
  %vm120 = vcmp.lt.s32.totalorder %v104, 0
  %vm121 = vmand %vm113, %vm105
  %vm122 = vmand %vm114, %vm106
  %vm123 = vmand %vm115, %vm107
  %vm124 = vmand %vm116, %vm108
  %vm125 = vmand %vm117, %vm109
  %vm126 = vmand %vm118, %vm110
  %vm127 = vmand %vm119, %vm111
  %vm128 = vmand %vm120, %vm112
  %v129 = vadd.s32 %v55, 32
  %v130 = vadd.s32 %v62, 32
  %v131 = vadd.s32 %v69, 32
  %v132 = vadd.s32 %v76, 32
  %v133 = vadd.s32 %v83, 32
  %v134 = vadd.s32 %v90, 32
  %v135 = vadd.s32 %v97, 32
  %v136 = vadd.s32 %v104, 32
  %v137 = vsel %vm121, %v129, %v55
  %v138 = vsel %vm122, %v130, %v62
  %v139 = vsel %vm123, %v131, %v69
  %v140 = vsel %vm124, %v132, %v76
  %v141 = vsel %vm125, %v133, %v83
  %v142 = vsel %vm126, %v134, %v90
  %v143 = vsel %vm127, %v135, %v97
  %v144 = vsel %vm128, %v136, %v104
  %146 = vset.pattern.permute.xlu0 0
  %147 = vperm.xlu0 %146, %v39
  %v148 = vpop.permute.xlu0 %147
  %v150 = vld [vmem:[#allocation2] ss:$4 sm:$0xff]
  %s151 = scalar_lea.vmem [#allocation2], 32
  %v152 = vld [vmem:[%s151] ss:$4 sm:$0x1]
  %154 = vset.pattern.permute.xlu0 0
  %155 = vperm.xlu0 %154, %v38
  %v156 = vpop.permute.xlu0 %155
  %v160 = vlaneseq
  %v161 = vshrl.u32 %v160, 7
  %v162 = vsub.s32 0, %v161
  %v163 = vrot.slane %v150, %v162
  %v164 = vlaneseq
  %v165 = vshrl.u32 %v164, 7
  %v166 = vsub.s32 1, %v165
  %v167 = vrot.slane %v150, %v166
  %v168 = vlaneseq
  %v169 = vshrl.u32 %v168, 7
  %v170 = vsub.s32 2, %v169
  %v171 = vrot.slane %v150, %v170
  %v172 = vlaneseq
  %v173 = vshrl.u32 %v172, 7
  %v174 = vsub.s32 3, %v173
  %v175 = vrot.slane %v150, %v174
  %v176 = vlaneseq
  %v177 = vshrl.u32 %v176, 7
  %v178 = vsub.s32 4, %v177
  %v179 = vrot.slane %v150, %v178
  %v180 = vlaneseq
  %v181 = vshrl.u32 %v180, 7
  %v182 = vsub.s32 5, %v181
  %v183 = vrot.slane %v150, %v182
  %v184 = vlaneseq
  %v185 = vshrl.u32 %v184, 7
  %v186 = vsub.s32 6, %v185
  %v187 = vrot.slane %v150, %v186
  %v188 = vlaneseq
  %v189 = vshrl.u32 %v188, 7
  %v190 = vsub.s32 7, %v189
  %v191 = vrot.slane %v150, %v190
  %v192 = vlaneseq
  %v193 = vshrl.u32 %v192, 7
  %v194 = vsub.s32 0, %v193
  %v195 = vrot.slane %v152, %v194
  %v205 = vmul.f32 %v156, %v163
  %v206 = vmul.f32 %v156, %v167
  %v207 = vmul.f32 %v156, %v171
  %v208 = vmul.f32 %v156, %v175
  %v209 = vmul.f32 %v156, %v179
  %v210 = vmul.f32 %v156, %v183
  %v211 = vmul.f32 %v156, %v187
  %v212 = vmul.f32 %v156, %v191
  %v213 = vmul.f32 %v156, %v195
  %v214 = vadd.f32 %v205, 0.0
  %v215 = vadd.f32 %v206, 0.0
  %v216 = vadd.f32 %v207, 0.0
  %v217 = vadd.f32 %v208, 0.0
  %v218 = vadd.f32 %v209, 0.0
  %v219 = vadd.f32 %v210, 0.0
  %v220 = vadd.f32 %v211, 0.0
  %v221 = vadd.f32 %v212, 0.0
  %v222 = vadd.f32 %v213, 0.0
  %s223 = scalar_lea.vmem [#allocation2], 1
  %v224 = vld [vmem:[%s223] ss:$4 sm:$0xff]
  %s225 = scalar_lea.vmem [#allocation2], 33
  %v226 = vld [vmem:[%s225] ss:$4 sm:$0x1]
  %227 = vset.pattern.permute.xlu0 9
  %228 = vperm.xlu0 %227, %v38
  %v229 = vpop.permute.xlu0 %228
  %v233 = vlaneseq
  %v234 = vshrl.u32 %v233, 7
  %v235 = vsub.s32 0, %v234
  %v236 = vrot.slane %v224, %v235
  %v237 = vlaneseq
  %v238 = vshrl.u32 %v237, 7
  %v239 = vsub.s32 1, %v238
  %v240 = vrot.slane %v224, %v239
  %v241 = vlaneseq
  %v242 = vshrl.u32 %v241, 7
  %v243 = vsub.s32 2, %v242
  %v244 = vrot.slane %v224, %v243
  %v245 = vlaneseq
  %v246 = vshrl.u32 %v245, 7
  %v247 = vsub.s32 3, %v246
  %v248 = vrot.slane %v224, %v247
  %v249 = vlaneseq
  %v250 = vshrl.u32 %v249, 7
  %v251 = vsub.s32 4, %v250
  %v252 = vrot.slane %v224, %v251
  %v253 = vlaneseq
  %v254 = vshrl.u32 %v253, 7
  %v255 = vsub.s32 5, %v254
  %v256 = vrot.slane %v224, %v255
  %v257 = vlaneseq
  %v258 = vshrl.u32 %v257, 7
  %v259 = vsub.s32 6, %v258
  %v260 = vrot.slane %v224, %v259
  %v261 = vlaneseq
  %v262 = vshrl.u32 %v261, 7
  %v263 = vsub.s32 7, %v262
  %v264 = vrot.slane %v224, %v263
  %v265 = vlaneseq
  %v266 = vshrl.u32 %v265, 7
  %v267 = vsub.s32 0, %v266
  %v268 = vrot.slane %v226, %v267
  %v278 = vmul.f32 %v229, %v236
  %v279 = vmul.f32 %v229, %v240
  %v280 = vmul.f32 %v229, %v244
  %v281 = vmul.f32 %v229, %v248
  %v282 = vmul.f32 %v229, %v252
  %v283 = vmul.f32 %v229, %v256
  %v284 = vmul.f32 %v229, %v260
  %v285 = vmul.f32 %v229, %v264
  %v286 = vmul.f32 %v229, %v268
  %v287 = vadd.f32 %v214, %v278
  %v288 = vadd.f32 %v215, %v279
  %v289 = vadd.f32 %v216, %v280
  %v290 = vadd.f32 %v217, %v281
  %v291 = vadd.f32 %v218, %v282
  %v292 = vadd.f32 %v219, %v283
  %v293 = vadd.f32 %v220, %v284
  %v294 = vadd.f32 %v221, %v285
  %v295 = vadd.f32 %v222, %v286
  %s296 = scalar_lea.vmem [#allocation2], 2
  %v297 = vld [vmem:[%s296] ss:$4 sm:$0xff]
  %s298 = scalar_lea.vmem [#allocation2], 34
  %v299 = vld [vmem:[%s298] ss:$4 sm:$0x1]
  %300 = vset.pattern.permute.xlu0 18
  %301 = vperm.xlu0 %300, %v38
  %v302 = vpop.permute.xlu0 %301
  %v306 = vlaneseq
  %v307 = vshrl.u32 %v306, 7
  %v308 = vsub.s32 0, %v307
  %v309 = vrot.slane %v297, %v308
  %v310 = vlaneseq
  %v311 = vshrl.u32 %v310, 7
  %v312 = vsub.s32 1, %v311
  %v313 = vrot.slane %v297, %v312
  %v314 = vlaneseq
  %v315 = vshrl.u32 %v314, 7
  %v316 = vsub.s32 2, %v315
  %v317 = vrot.slane %v297, %v316
  %v318 = vlaneseq
  %v319 = vshrl.u32 %v318, 7
  %v320 = vsub.s32 3, %v319
  %v321 = vrot.slane %v297, %v320
  %v322 = vlaneseq
  %v323 = vshrl.u32 %v322, 7
  %v324 = vsub.s32 4, %v323
  %v325 = vrot.slane %v297, %v324
  %v326 = vlaneseq
  %v327 = vshrl.u32 %v326, 7
  %v328 = vsub.s32 5, %v327
  %v329 = vrot.slane %v297, %v328
  %v330 = vlaneseq
  %v331 = vshrl.u32 %v330, 7
  %v332 = vsub.s32 6, %v331
  %v333 = vrot.slane %v297, %v332
  %v334 = vlaneseq
  %v335 = vshrl.u32 %v334, 7
  %v336 = vsub.s32 7, %v335
  %v337 = vrot.slane %v297, %v336
  %v338 = vlaneseq
  %v339 = vshrl.u32 %v338, 7
  %v340 = vsub.s32 0, %v339
  %v341 = vrot.slane %v299, %v340
  %v351 = vmul.f32 %v302, %v309
  %v352 = vmul.f32 %v302, %v313
  %v353 = vmul.f32 %v302, %v317
  %v354 = vmul.f32 %v302, %v321
  %v355 = vmul.f32 %v302, %v325
  %v356 = vmul.f32 %v302, %v329
  %v357 = vmul.f32 %v302, %v333
  %v358 = vmul.f32 %v302, %v337
  %v359 = vmul.f32 %v302, %v341
  %v360 = vadd.f32 %v287, %v351
  %v361 = vadd.f32 %v288, %v352
  %v362 = vadd.f32 %v289, %v353
  %v363 = vadd.f32 %v290, %v354
  %v364 = vadd.f32 %v291, %v355
  %v365 = vadd.f32 %v292, %v356
  %v366 = vadd.f32 %v293, %v357
  %v367 = vadd.f32 %v294, %v358
  %v368 = vadd.f32 %v295, %v359
  %v369 = vld [vmem:[%s33] ss:$4 sm:$0xff]
  %s370 = scalar_lea.vmem %s33, 32 [#allocation2]
  %v371 = vld [vmem:[%s370] ss:$4 sm:$0x1]
  %372 = vset.pattern.permute.xlu0 27
  %373 = vperm.xlu0 %372, %v38
  %v374 = vpop.permute.xlu0 %373
  %v378 = vlaneseq
  %v379 = vshrl.u32 %v378, 7
  %v380 = vsub.s32 0, %v379
  %v381 = vrot.slane %v369, %v380
  %v382 = vlaneseq
  %v383 = vshrl.u32 %v382, 7
  %v384 = vsub.s32 1, %v383
  %v385 = vrot.slane %v369, %v384
  %v386 = vlaneseq
  %v387 = vshrl.u32 %v386, 7
  %v388 = vsub.s32 2, %v387
  %v389 = vrot.slane %v369, %v388
  %v390 = vlaneseq
  %v391 = vshrl.u32 %v390, 7
  %v392 = vsub.s32 3, %v391
  %v393 = vrot.slane %v369, %v392
  %v394 = vlaneseq
  %v395 = vshrl.u32 %v394, 7
  %v396 = vsub.s32 4, %v395
  %v397 = vrot.slane %v369, %v396
  %v398 = vlaneseq
  %v399 = vshrl.u32 %v398, 7
  %v400 = vsub.s32 5, %v399
  %v401 = vrot.slane %v369, %v400
  %v402 = vlaneseq
  %v403 = vshrl.u32 %v402, 7
  %v404 = vsub.s32 6, %v403
  %v405 = vrot.slane %v369, %v404
  %v406 = vlaneseq
  %v407 = vshrl.u32 %v406, 7
  %v408 = vsub.s32 7, %v407
  %v409 = vrot.slane %v369, %v408
  %v410 = vlaneseq
  %v411 = vshrl.u32 %v410, 7
  %v412 = vsub.s32 0, %v411
  %v413 = vrot.slane %v371, %v412
  %v423 = vmul.f32 %v374, %v381
  %v424 = vmul.f32 %v374, %v385
  %v425 = vmul.f32 %v374, %v389
  %v426 = vmul.f32 %v374, %v393
  %v427 = vmul.f32 %v374, %v397
  %v428 = vmul.f32 %v374, %v401
  %v429 = vmul.f32 %v374, %v405
  %v430 = vmul.f32 %v374, %v409
  %v431 = vmul.f32 %v374, %v413
  %v432 = vadd.f32 %v360, %v423
  %v433 = vadd.f32 %v361, %v424
  %v434 = vadd.f32 %v362, %v425
  %v435 = vadd.f32 %v363, %v426
  %v436 = vadd.f32 %v364, %v427
  %v437 = vadd.f32 %v365, %v428
  %v438 = vadd.f32 %v366, %v429
  %v439 = vadd.f32 %v367, %v430
  %v440 = vadd.f32 %v368, %v431
  %s441 = scalar_lea.vmem %s33, 1 [#allocation2]
  %v442 = vld [vmem:[%s441] ss:$4 sm:$0xff]
  %s443 = scalar_lea.vmem %s33, 33 [#allocation2]
  %v444 = vld [vmem:[%s443] ss:$4 sm:$0x1]
  %445 = vset.pattern.permute.xlu0 36
  %446 = vperm.xlu0 %445, %v38
  %v447 = vpop.permute.xlu0 %446
  %v451 = vlaneseq
  %v452 = vshrl.u32 %v451, 7
  %v453 = vsub.s32 0, %v452
  %v454 = vrot.slane %v442, %v453
  %v455 = vlaneseq
  %v456 = vshrl.u32 %v455, 7
  %v457 = vsub.s32 1, %v456
  %v458 = vrot.slane %v442, %v457
  %v459 = vlaneseq
  %v460 = vshrl.u32 %v459, 7
  %v461 = vsub.s32 2, %v460
  %v462 = vrot.slane %v442, %v461
  %v463 = vlaneseq
  %v464 = vshrl.u32 %v463, 7
  %v465 = vsub.s32 3, %v464
  %v466 = vrot.slane %v442, %v465
  %v467 = vlaneseq
  %v468 = vshrl.u32 %v467, 7
  %v469 = vsub.s32 4, %v468
  %v470 = vrot.slane %v442, %v469
  %v471 = vlaneseq
  %v472 = vshrl.u32 %v471, 7
  %v473 = vsub.s32 5, %v472
  %v474 = vrot.slane %v442, %v473
  %v475 = vlaneseq
  %v476 = vshrl.u32 %v475, 7
  %v477 = vsub.s32 6, %v476
  %v478 = vrot.slane %v442, %v477
  %v479 = vlaneseq
  %v480 = vshrl.u32 %v479, 7
  %v481 = vsub.s32 7, %v480
  %v482 = vrot.slane %v442, %v481
  %v483 = vlaneseq
  %v484 = vshrl.u32 %v483, 7
  %v485 = vsub.s32 0, %v484
  %v486 = vrot.slane %v444, %v485
  %v496 = vmul.f32 %v447, %v454
  %v497 = vmul.f32 %v447, %v458
  %v498 = vmul.f32 %v447, %v462
  %v499 = vmul.f32 %v447, %v466
  %v500 = vmul.f32 %v447, %v470
  %v501 = vmul.f32 %v447, %v474
  %v502 = vmul.f32 %v447, %v478
  %v503 = vmul.f32 %v447, %v482
  %v504 = vmul.f32 %v447, %v486
  %v505 = vadd.f32 %v432, %v496
  %v506 = vadd.f32 %v433, %v497
  %v507 = vadd.f32 %v434, %v498
  %v508 = vadd.f32 %v435, %v499
  %v509 = vadd.f32 %v436, %v500
  %v510 = vadd.f32 %v437, %v501
  %v511 = vadd.f32 %v438, %v502
  %v512 = vadd.f32 %v439, %v503
  %v513 = vadd.f32 %v440, %v504
  %s514 = scalar_lea.vmem %s33, 2 [#allocation2]
  %v515 = vld [vmem:[%s514] ss:$4 sm:$0xff]
  %s516 = scalar_lea.vmem %s33, 34 [#allocation2]
  %v517 = vld [vmem:[%s516] ss:$4 sm:$0x1]
  %518 = vset.pattern.permute.xlu0 45
  %519 = vperm.xlu0 %518, %v38
  %v520 = vpop.permute.xlu0 %519
  %v524 = vlaneseq
  %v525 = vshrl.u32 %v524, 7
  %v526 = vsub.s32 0, %v525
  %v527 = vrot.slane %v515, %v526
  %v528 = vlaneseq
  %v529 = vshrl.u32 %v528, 7
  %v530 = vsub.s32 1, %v529
  %v531 = vrot.slane %v515, %v530
  %v532 = vlaneseq
  %v533 = vshrl.u32 %v532, 7
  %v534 = vsub.s32 2, %v533
  %v535 = vrot.slane %v515, %v534
  %v536 = vlaneseq
  %v537 = vshrl.u32 %v536, 7
  %v538 = vsub.s32 3, %v537
  %v539 = vrot.slane %v515, %v538
  %v540 = vlaneseq
  %v541 = vshrl.u32 %v540, 7
  %v542 = vsub.s32 4, %v541
  %v543 = vrot.slane %v515, %v542
  %v544 = vlaneseq
  %v545 = vshrl.u32 %v544, 7
  %v546 = vsub.s32 5, %v545
  %v547 = vrot.slane %v515, %v546
  %v548 = vlaneseq
  %v549 = vshrl.u32 %v548, 7
  %v550 = vsub.s32 6, %v549
  %v551 = vrot.slane %v515, %v550
  %v552 = vlaneseq
  %v553 = vshrl.u32 %v552, 7
  %v554 = vsub.s32 7, %v553
  %v555 = vrot.slane %v515, %v554
  %v556 = vlaneseq
  %v557 = vshrl.u32 %v556, 7
  %v558 = vsub.s32 0, %v557
  %v559 = vrot.slane %v517, %v558
  %v569 = vmul.f32 %v520, %v527
  %v570 = vmul.f32 %v520, %v531
  %v571 = vmul.f32 %v520, %v535
  %v572 = vmul.f32 %v520, %v539
  %v573 = vmul.f32 %v520, %v543
  %v574 = vmul.f32 %v520, %v547
  %v575 = vmul.f32 %v520, %v551
  %v576 = vmul.f32 %v520, %v555
  %v577 = vmul.f32 %v520, %v559
  %v578 = vadd.f32 %v505, %v569
  %v579 = vadd.f32 %v506, %v570
  %v580 = vadd.f32 %v507, %v571
  %v581 = vadd.f32 %v508, %v572
  %v582 = vadd.f32 %v509, %v573
  %v583 = vadd.f32 %v510, %v574
  %v584 = vadd.f32 %v511, %v575
  %v585 = vadd.f32 %v512, %v576
  %v586 = vadd.f32 %v513, %v577
  %587 = vset.pattern.permute.xlu0 3
  %588 = vperm.xlu0 %587, %v38
  %v589 = vpop.permute.xlu0 %588
  %v591 = vmul.f32 %v589, %v163
  %v592 = vmul.f32 %v589, %v167
  %v593 = vmul.f32 %v589, %v171
  %v594 = vmul.f32 %v589, %v175
  %v595 = vmul.f32 %v589, %v179
  %v596 = vmul.f32 %v589, %v183
  %v597 = vmul.f32 %v589, %v187
  %v598 = vmul.f32 %v589, %v191
  %v599 = vmul.f32 %v589, %v195
  %609 = vrot.lane.b32.xlu0 %v591, 96
  %v610 = vpop.permute.xlu0 %609
  %611 = vrot.lane.b32.xlu0 %v592, 96
  %v612 = vpop.permute.xlu0 %611
  %613 = vrot.lane.b32.xlu0 %v593, 96
  %v614 = vpop.permute.xlu0 %613
  %615 = vrot.lane.b32.xlu0 %v594, 96
  %v616 = vpop.permute.xlu0 %615
  %617 = vrot.lane.b32.xlu0 %v595, 96
  %v618 = vpop.permute.xlu0 %617
  %619 = vrot.lane.b32.xlu0 %v596, 96
  %v620 = vpop.permute.xlu0 %619
  %621 = vrot.lane.b32.xlu0 %v597, 96
  %v622 = vpop.permute.xlu0 %621
  %623 = vrot.lane.b32.xlu0 %v598, 96
  %v624 = vpop.permute.xlu0 %623
  %625 = vrot.lane.b32.xlu0 %v599, 96
  %v626 = vpop.permute.xlu0 %625
  %vm627 = vcmask 785408
  %v628 = vsel %vm627, %v610, %v612
  %v629 = vsel %vm627, %v612, %v614
  %v630 = vsel %vm627, %v614, %v616
  %v631 = vsel %vm627, %v616, %v618
  %v632 = vsel %vm627, %v618, %v620
  %v633 = vsel %vm627, %v620, %v622
  %v634 = vsel %vm627, %v622, %v624
  %v635 = vsel %vm627, %v624, %v626
  %v645 = vadd.f32 %v578, %v628
  %v646 = vadd.f32 %v579, %v629
  %v647 = vadd.f32 %v580, %v630
  %v648 = vadd.f32 %v581, %v631
  %v649 = vadd.f32 %v582, %v632
  %v650 = vadd.f32 %v583, %v633
  %v651 = vadd.f32 %v584, %v634
  %v652 = vadd.f32 %v585, %v635
  %v653 = vadd.f32 %v586, %v626
  %654 = vset.pattern.permute.xlu0 12
  %655 = vperm.xlu0 %654, %v38
  %v656 = vpop.permute.xlu0 %655
  %v658 = vmul.f32 %v656, %v236
  %v659 = vmul.f32 %v656, %v240
  %v660 = vmul.f32 %v656, %v244
  %v661 = vmul.f32 %v656, %v248
  %v662 = vmul.f32 %v656, %v252
  %v663 = vmul.f32 %v656, %v256
  %v664 = vmul.f32 %v656, %v260
  %v665 = vmul.f32 %v656, %v264
  %v666 = vmul.f32 %v656, %v268
  %676 = vrot.lane.b32.xlu0 %v658, 96
  %v677 = vpop.permute.xlu0 %676
  %678 = vrot.lane.b32.xlu0 %v659, 96
  %v679 = vpop.permute.xlu0 %678
  %680 = vrot.lane.b32.xlu0 %v660, 96
  %v681 = vpop.permute.xlu0 %680
  %682 = vrot.lane.b32.xlu0 %v661, 96
  %v683 = vpop.permute.xlu0 %682
  %684 = vrot.lane.b32.xlu0 %v662, 96
  %v685 = vpop.permute.xlu0 %684
  %686 = vrot.lane.b32.xlu0 %v663, 96
  %v687 = vpop.permute.xlu0 %686
  %688 = vrot.lane.b32.xlu0 %v664, 96
  %v689 = vpop.permute.xlu0 %688
  %690 = vrot.lane.b32.xlu0 %v665, 96
  %v691 = vpop.permute.xlu0 %690
  %692 = vrot.lane.b32.xlu0 %v666, 96
  %v693 = vpop.permute.xlu0 %692
  %v694 = vsel %vm627, %v677, %v679
  %v695 = vsel %vm627, %v679, %v681
  %v696 = vsel %vm627, %v681, %v683
  %v697 = vsel %vm627, %v683, %v685
  %v698 = vsel %vm627, %v685, %v687
  %v699 = vsel %vm627, %v687, %v689
  %v700 = vsel %vm627, %v689, %v691
  %v701 = vsel %vm627, %v691, %v693
  %v711 = vadd.f32 %v645, %v694
  %v712 = vadd.f32 %v646, %v695
  %v713 = vadd.f32 %v647, %v696
  %v714 = vadd.f32 %v648, %v697
  %v715 = vadd.f32 %v649, %v698
  %v716 = vadd.f32 %v650, %v699
  %v717 = vadd.f32 %v651, %v700
  %v718 = vadd.f32 %v652, %v701
  %v719 = vadd.f32 %v653, %v693
  %720 = vset.pattern.permute.xlu0 21
  %721 = vperm.xlu0 %720, %v38
  %v722 = vpop.permute.xlu0 %721
  %v724 = vmul.f32 %v722, %v309
  %v725 = vmul.f32 %v722, %v313
  %v726 = vmul.f32 %v722, %v317
  %v727 = vmul.f32 %v722, %v321
  %v728 = vmul.f32 %v722, %v325
  %v729 = vmul.f32 %v722, %v329
  %v730 = vmul.f32 %v722, %v333
  %v731 = vmul.f32 %v722, %v337
  %v732 = vmul.f32 %v722, %v341
  %742 = vrot.lane.b32.xlu0 %v724, 96
  %v743 = vpop.permute.xlu0 %742
  %744 = vrot.lane.b32.xlu0 %v725, 96
  %v745 = vpop.permute.xlu0 %744
  %746 = vrot.lane.b32.xlu0 %v726, 96
  %v747 = vpop.permute.xlu0 %746
  %748 = vrot.lane.b32.xlu0 %v727, 96
  %v749 = vpop.permute.xlu0 %748
  %750 = vrot.lane.b32.xlu0 %v728, 96
  %v751 = vpop.permute.xlu0 %750
  %752 = vrot.lane.b32.xlu0 %v729, 96
  %v753 = vpop.permute.xlu0 %752
  %754 = vrot.lane.b32.xlu0 %v730, 96
  %v755 = vpop.permute.xlu0 %754
  %756 = vrot.lane.b32.xlu0 %v731, 96
  %v757 = vpop.permute.xlu0 %756
  %758 = vrot.lane.b32.xlu0 %v732, 96
  %v759 = vpop.permute.xlu0 %758
  %v760 = vsel %vm627, %v743, %v745
  %v761 = vsel %vm627, %v745, %v747
  %v762 = vsel %vm627, %v747, %v749
  %v763 = vsel %vm627, %v749, %v751
  %v764 = vsel %vm627, %v751, %v753
  %v765 = vsel %vm627, %v753, %v755
  %v766 = vsel %vm627, %v755, %v757
  %v767 = vsel %vm627, %v757, %v759
  %v777 = vadd.f32 %v711, %v760
  %v778 = vadd.f32 %v712, %v761
  %v779 = vadd.f32 %v713, %v762
  %v780 = vadd.f32 %v714, %v763
  %v781 = vadd.f32 %v715, %v764
  %v782 = vadd.f32 %v716, %v765
  %v783 = vadd.f32 %v717, %v766
  %v784 = vadd.f32 %v718, %v767
  %v785 = vadd.f32 %v719, %v759
  %786 = vset.pattern.permute.xlu0 30
  %787 = vperm.xlu0 %786, %v38
  %v788 = vpop.permute.xlu0 %787
  %v790 = vmul.f32 %v788, %v381
  %v791 = vmul.f32 %v788, %v385
  %v792 = vmul.f32 %v788, %v389
  %v793 = vmul.f32 %v788, %v393
  %v794 = vmul.f32 %v788, %v397
  %v795 = vmul.f32 %v788, %v401
  %v796 = vmul.f32 %v788, %v405
  %v797 = vmul.f32 %v788, %v409
  %v798 = vmul.f32 %v788, %v413
  %808 = vrot.lane.b32.xlu0 %v790, 96
  %v809 = vpop.permute.xlu0 %808
  %810 = vrot.lane.b32.xlu0 %v791, 96
  %v811 = vpop.permute.xlu0 %810
  %812 = vrot.lane.b32.xlu0 %v792, 96
  %v813 = vpop.permute.xlu0 %812
  %814 = vrot.lane.b32.xlu0 %v793, 96
  %v815 = vpop.permute.xlu0 %814
  %816 = vrot.lane.b32.xlu0 %v794, 96
  %v817 = vpop.permute.xlu0 %816
  %818 = vrot.lane.b32.xlu0 %v795, 96
  %v819 = vpop.permute.xlu0 %818
  %820 = vrot.lane.b32.xlu0 %v796, 96
  %v821 = vpop.permute.xlu0 %820
  %822 = vrot.lane.b32.xlu0 %v797, 96
  %v823 = vpop.permute.xlu0 %822
  %824 = vrot.lane.b32.xlu0 %v798, 96
  %v825 = vpop.permute.xlu0 %824
  %v826 = vsel %vm627, %v809, %v811
  %v827 = vsel %vm627, %v811, %v813
  %v828 = vsel %vm627, %v813, %v815
  %v829 = vsel %vm627, %v815, %v817
  %v830 = vsel %vm627, %v817, %v819
  %v831 = vsel %vm627, %v819, %v821
  %v832 = vsel %vm627, %v821, %v823
  %v833 = vsel %vm627, %v823, %v825
  %v843 = vadd.f32 %v777, %v826
  %v844 = vadd.f32 %v778, %v827
  %v845 = vadd.f32 %v779, %v828
  %v846 = vadd.f32 %v780, %v829
  %v847 = vadd.f32 %v781, %v830
  %v848 = vadd.f32 %v782, %v831
  %v849 = vadd.f32 %v783, %v832
  %v850 = vadd.f32 %v784, %v833
  %v851 = vadd.f32 %v785, %v825
  %852 = vset.pattern.permute.xlu0 39
  %853 = vperm.xlu0 %852, %v38
  %v854 = vpop.permute.xlu0 %853
  %v856 = vmul.f32 %v854, %v454
  %v857 = vmul.f32 %v854, %v458
  %v858 = vmul.f32 %v854, %v462
  %v859 = vmul.f32 %v854, %v466
  %v860 = vmul.f32 %v854, %v470
  %v861 = vmul.f32 %v854, %v474
  %v862 = vmul.f32 %v854, %v478
  %v863 = vmul.f32 %v854, %v482
  %v864 = vmul.f32 %v854, %v486
  %874 = vrot.lane.b32.xlu0 %v856, 96
  %v875 = vpop.permute.xlu0 %874
  %876 = vrot.lane.b32.xlu0 %v857, 96
  %v877 = vpop.permute.xlu0 %876
  %878 = vrot.lane.b32.xlu0 %v858, 96
  %v879 = vpop.permute.xlu0 %878
  %880 = vrot.lane.b32.xlu0 %v859, 96
  %v881 = vpop.permute.xlu0 %880
  %882 = vrot.lane.b32.xlu0 %v860, 96
  %v883 = vpop.permute.xlu0 %882
  %884 = vrot.lane.b32.xlu0 %v861, 96
  %v885 = vpop.permute.xlu0 %884
  %886 = vrot.lane.b32.xlu0 %v862, 96
  %v887 = vpop.permute.xlu0 %886
  %888 = vrot.lane.b32.xlu0 %v863, 96
  %v889 = vpop.permute.xlu0 %888
  %890 = vrot.lane.b32.xlu0 %v864, 96
  %v891 = vpop.permute.xlu0 %890
  %v892 = vsel %vm627, %v875, %v877
  %v893 = vsel %vm627, %v877, %v879
  %v894 = vsel %vm627, %v879, %v881
  %v895 = vsel %vm627, %v881, %v883
  %v896 = vsel %vm627, %v883, %v885
  %v897 = vsel %vm627, %v885, %v887
  %v898 = vsel %vm627, %v887, %v889
  %v899 = vsel %vm627, %v889, %v891
  %v909 = vadd.f32 %v843, %v892
  %v910 = vadd.f32 %v844, %v893
  %v911 = vadd.f32 %v845, %v894
  %v912 = vadd.f32 %v846, %v895
  %v913 = vadd.f32 %v847, %v896
  %v914 = vadd.f32 %v848, %v897
  %v915 = vadd.f32 %v849, %v898
  %v916 = vadd.f32 %v850, %v899
  %v917 = vadd.f32 %v851, %v891
  %918 = vset.pattern.permute.xlu0 48
  %919 = vperm.xlu0 %918, %v38
  %v920 = vpop.permute.xlu0 %919
  %v922 = vmul.f32 %v920, %v527
  %v923 = vmul.f32 %v920, %v531
  %v924 = vmul.f32 %v920, %v535
  %v925 = vmul.f32 %v920, %v539
  %v926 = vmul.f32 %v920, %v543
  %v927 = vmul.f32 %v920, %v547
  %v928 = vmul.f32 %v920, %v551
  %v929 = vmul.f32 %v920, %v555
  %v930 = vmul.f32 %v920, %v559
  %940 = vrot.lane.b32.xlu0 %v922, 96
  %v941 = vpop.permute.xlu0 %940
  %942 = vrot.lane.b32.xlu0 %v923, 96
  %v943 = vpop.permute.xlu0 %942
  %944 = vrot.lane.b32.xlu0 %v924, 96
  %v945 = vpop.permute.xlu0 %944
  %946 = vrot.lane.b32.xlu0 %v925, 96
  %v947 = vpop.permute.xlu0 %946
  %948 = vrot.lane.b32.xlu0 %v926, 96
  %v949 = vpop.permute.xlu0 %948
  %950 = vrot.lane.b32.xlu0 %v927, 96
  %v951 = vpop.permute.xlu0 %950
  %952 = vrot.lane.b32.xlu0 %v928, 96
  %v953 = vpop.permute.xlu0 %952
  %954 = vrot.lane.b32.xlu0 %v929, 96
  %v955 = vpop.permute.xlu0 %954
  %956 = vrot.lane.b32.xlu0 %v930, 96
  %v957 = vpop.permute.xlu0 %956
  %v958 = vsel %vm627, %v941, %v943
  %v959 = vsel %vm627, %v943, %v945
  %v960 = vsel %vm627, %v945, %v947
  %v961 = vsel %vm627, %v947, %v949
  %v962 = vsel %vm627, %v949, %v951
  %v963 = vsel %vm627, %v951, %v953
  %v964 = vsel %vm627, %v953, %v955
  %v965 = vsel %vm627, %v955, %v957
  %v975 = vadd.f32 %v909, %v958
  %v976 = vadd.f32 %v910, %v959
  %v977 = vadd.f32 %v911, %v960
  %v978 = vadd.f32 %v912, %v961
  %v979 = vadd.f32 %v913, %v962
  %v980 = vadd.f32 %v914, %v963
  %v981 = vadd.f32 %v915, %v964
  %v982 = vadd.f32 %v916, %v965
  %v983 = vadd.f32 %v917, %v957
  %s984 = scalar_lea.vmem [#allocation2], 4
  %v985 = vld [vmem:[%s984] ss:$4 sm:$0xff]
  %s986 = scalar_lea.vmem [#allocation2], 36
  %v987 = vld [vmem:[%s986] ss:$4 sm:$0x1]
  %988 = vset.pattern.permute.xlu0 6
  %989 = vperm.xlu0 %988, %v38
  %v990 = vpop.permute.xlu0 %989
  %v994 = vlaneseq
  %v995 = vshrl.u32 %v994, 7
  %v996 = vsub.s32 0, %v995
  %v997 = vrot.slane %v985, %v996
  %v998 = vlaneseq
  %v999 = vshrl.u32 %v998, 7
  %v1000 = vsub.s32 1, %v999
  %v1001 = vrot.slane %v985, %v1000
  %v1002 = vlaneseq
  %v1003 = vshrl.u32 %v1002, 7
  %v1004 = vsub.s32 2, %v1003
  %v1005 = vrot.slane %v985, %v1004
  %v1006 = vlaneseq
  %v1007 = vshrl.u32 %v1006, 7
  %v1008 = vsub.s32 3, %v1007
  %v1009 = vrot.slane %v985, %v1008
  %v1010 = vlaneseq
  %v1011 = vshrl.u32 %v1010, 7
  %v1012 = vsub.s32 4, %v1011
  %v1013 = vrot.slane %v985, %v1012
  %v1014 = vlaneseq
  %v1015 = vshrl.u32 %v1014, 7
  %v1016 = vsub.s32 5, %v1015
  %v1017 = vrot.slane %v985, %v1016
  %v1018 = vlaneseq
  %v1019 = vshrl.u32 %v1018, 7
  %v1020 = vsub.s32 6, %v1019
  %v1021 = vrot.slane %v985, %v1020
  %v1022 = vlaneseq
  %v1023 = vshrl.u32 %v1022, 7
  %v1024 = vsub.s32 7, %v1023
  %v1025 = vrot.slane %v985, %v1024
  %v1026 = vlaneseq
  %v1027 = vshrl.u32 %v1026, 7
  %v1028 = vsub.s32 0, %v1027
  %v1029 = vrot.slane %v987, %v1028
  %v1039 = vmul.f32 %v990, %v997
  %v1040 = vmul.f32 %v990, %v1001
  %v1041 = vmul.f32 %v990, %v1005
  %v1042 = vmul.f32 %v990, %v1009
  %v1043 = vmul.f32 %v990, %v1013
  %v1044 = vmul.f32 %v990, %v1017
  %v1045 = vmul.f32 %v990, %v1021
  %v1046 = vmul.f32 %v990, %v1025
  %v1047 = vmul.f32 %v990, %v1029
  %1057 = vrot.lane.b32.xlu0 %v1039, 64
  %v1058 = vpop.permute.xlu0 %1057
  %1059 = vrot.lane.b32.xlu0 %v1040, 64
  %v1060 = vpop.permute.xlu0 %1059
  %1061 = vrot.lane.b32.xlu0 %v1041, 64
  %v1062 = vpop.permute.xlu0 %1061
  %1063 = vrot.lane.b32.xlu0 %v1042, 64
  %v1064 = vpop.permute.xlu0 %1063
  %1065 = vrot.lane.b32.xlu0 %v1043, 64
  %v1066 = vpop.permute.xlu0 %1065
  %1067 = vrot.lane.b32.xlu0 %v1044, 64
  %v1068 = vpop.permute.xlu0 %1067
  %1069 = vrot.lane.b32.xlu0 %v1045, 64
  %v1070 = vpop.permute.xlu0 %1069
  %1071 = vrot.lane.b32.xlu0 %v1046, 64
  %v1072 = vpop.permute.xlu0 %1071
  %1073 = vrot.lane.b32.xlu0 %v1047, 64
  %v1074 = vpop.permute.xlu0 %1073
  %vm1075 = vcmask 523264
  %v1076 = vsel %vm1075, %v1058, %v1060
  %v1077 = vsel %vm1075, %v1060, %v1062
  %v1078 = vsel %vm1075, %v1062, %v1064
  %v1079 = vsel %vm1075, %v1064, %v1066
  %v1080 = vsel %vm1075, %v1066, %v1068
  %v1081 = vsel %vm1075, %v1068, %v1070
  %v1082 = vsel %vm1075, %v1070, %v1072
  %v1083 = vsel %vm1075, %v1072, %v1074
  %v1093 = vadd.f32 %v975, %v1058
  %v1094 = vadd.f32 %v976, %v1076
  %v1095 = vadd.f32 %v977, %v1077
  %v1096 = vadd.f32 %v978, %v1078
  %v1097 = vadd.f32 %v979, %v1079
  %v1098 = vadd.f32 %v980, %v1080
  %v1099 = vadd.f32 %v981, %v1081
  %v1100 = vadd.f32 %v982, %v1082
  %v1101 = vadd.f32 %v983, %v1083
  %s1102 = scalar_lea.vmem [#allocation2], 5
  %v1103 = vld [vmem:[%s1102] ss:$4 sm:$0xff]
  %s1104 = scalar_lea.vmem [#allocation2], 37
  %v1105 = vld [vmem:[%s1104] ss:$4 sm:$0x1]
  %1106 = vset.pattern.permute.xlu0 15
  %1107 = vperm.xlu0 %1106, %v38
  %v1108 = vpop.permute.xlu0 %1107
  %v1112 = vlaneseq
  %v1113 = vshrl.u32 %v1112, 7
  %v1114 = vsub.s32 0, %v1113
  %v1115 = vrot.slane %v1103, %v1114
  %v1116 = vlaneseq
  %v1117 = vshrl.u32 %v1116, 7
  %v1118 = vsub.s32 1, %v1117
  %v1119 = vrot.slane %v1103, %v1118
  %v1120 = vlaneseq
  %v1121 = vshrl.u32 %v1120, 7
  %v1122 = vsub.s32 2, %v1121
  %v1123 = vrot.slane %v1103, %v1122
  %v1124 = vlaneseq
  %v1125 = vshrl.u32 %v1124, 7
  %v1126 = vsub.s32 3, %v1125
  %v1127 = vrot.slane %v1103, %v1126
  %v1128 = vlaneseq
  %v1129 = vshrl.u32 %v1128, 7
  %v1130 = vsub.s32 4, %v1129
  %v1131 = vrot.slane %v1103, %v1130
  %v1132 = vlaneseq
  %v1133 = vshrl.u32 %v1132, 7
  %v1134 = vsub.s32 5, %v1133
  %v1135 = vrot.slane %v1103, %v1134
  %v1136 = vlaneseq
  %v1137 = vshrl.u32 %v1136, 7
  %v1138 = vsub.s32 6, %v1137
  %v1139 = vrot.slane %v1103, %v1138
  %v1140 = vlaneseq
  %v1141 = vshrl.u32 %v1140, 7
  %v1142 = vsub.s32 7, %v1141
  %v1143 = vrot.slane %v1103, %v1142
  %v1144 = vlaneseq
  %v1145 = vshrl.u32 %v1144, 7
  %v1146 = vsub.s32 0, %v1145
  %v1147 = vrot.slane %v1105, %v1146
  %v1157 = vmul.f32 %v1108, %v1115
  %v1158 = vmul.f32 %v1108, %v1119
  %v1159 = vmul.f32 %v1108, %v1123
  %v1160 = vmul.f32 %v1108, %v1127
  %v1161 = vmul.f32 %v1108, %v1131
  %v1162 = vmul.f32 %v1108, %v1135
  %v1163 = vmul.f32 %v1108, %v1139
  %v1164 = vmul.f32 %v1108, %v1143
  %v1165 = vmul.f32 %v1108, %v1147
  %1175 = vrot.lane.b32.xlu0 %v1157, 64
  %v1176 = vpop.permute.xlu0 %1175
  %1177 = vrot.lane.b32.xlu0 %v1158, 64
  %v1178 = vpop.permute.xlu0 %1177
  %1179 = vrot.lane.b32.xlu0 %v1159, 64
  %v1180 = vpop.permute.xlu0 %1179
  %1181 = vrot.lane.b32.xlu0 %v1160, 64
  %v1182 = vpop.permute.xlu0 %1181
  %1183 = vrot.lane.b32.xlu0 %v1161, 64
  %v1184 = vpop.permute.xlu0 %1183
  %1185 = vrot.lane.b32.xlu0 %v1162, 64
  %v1186 = vpop.permute.xlu0 %1185
  %1187 = vrot.lane.b32.xlu0 %v1163, 64
  %v1188 = vpop.permute.xlu0 %1187
  %1189 = vrot.lane.b32.xlu0 %v1164, 64
  %v1190 = vpop.permute.xlu0 %1189
  %1191 = vrot.lane.b32.xlu0 %v1165, 64
  %v1192 = vpop.permute.xlu0 %1191
  %v1193 = vsel %vm1075, %v1176, %v1178
  %v1194 = vsel %vm1075, %v1178, %v1180
  %v1195 = vsel %vm1075, %v1180, %v1182
  %v1196 = vsel %vm1075, %v1182, %v1184
  %v1197 = vsel %vm1075, %v1184, %v1186
  %v1198 = vsel %vm1075, %v1186, %v1188
  %v1199 = vsel %vm1075, %v1188, %v1190
  %v1200 = vsel %vm1075, %v1190, %v1192
  %v1210 = vadd.f32 %v1093, %v1176
  %v1211 = vadd.f32 %v1094, %v1193
  %v1212 = vadd.f32 %v1095, %v1194
  %v1213 = vadd.f32 %v1096, %v1195
  %v1214 = vadd.f32 %v1097, %v1196
  %v1215 = vadd.f32 %v1098, %v1197
  %v1216 = vadd.f32 %v1099, %v1198
  %v1217 = vadd.f32 %v1100, %v1199
  %v1218 = vadd.f32 %v1101, %v1200
  %s1219 = scalar_lea.vmem [#allocation2], 6
  %v1220 = vld [vmem:[%s1219] ss:$4 sm:$0xff]
  %s1221 = scalar_lea.vmem [#allocation2], 38
  %v1222 = vld [vmem:[%s1221] ss:$4 sm:$0x1]
  %1223 = vset.pattern.permute.xlu0 24
  %1224 = vperm.xlu0 %1223, %v38
  %v1225 = vpop.permute.xlu0 %1224
  %v1229 = vlaneseq
  %v1230 = vshrl.u32 %v1229, 7
  %v1231 = vsub.s32 0, %v1230
  %v1232 = vrot.slane %v1220, %v1231
  %v1233 = vlaneseq
  %v1234 = vshrl.u32 %v1233, 7
  %v1235 = vsub.s32 1, %v1234
  %v1236 = vrot.slane %v1220, %v1235
  %v1237 = vlaneseq
  %v1238 = vshrl.u32 %v1237, 7
  %v1239 = vsub.s32 2, %v1238
  %v1240 = vrot.slane %v1220, %v1239
  %v1241 = vlaneseq
  %v1242 = vshrl.u32 %v1241, 7
  %v1243 = vsub.s32 3, %v1242
  %v1244 = vrot.slane %v1220, %v1243
  %v1245 = vlaneseq
  %v1246 = vshrl.u32 %v1245, 7
  %v1247 = vsub.s32 4, %v1246
  %v1248 = vrot.slane %v1220, %v1247
  %v1249 = vlaneseq
  %v1250 = vshrl.u32 %v1249, 7
  %v1251 = vsub.s32 5, %v1250
  %v1252 = vrot.slane %v1220, %v1251
  %v1253 = vlaneseq
  %v1254 = vshrl.u32 %v1253, 7
  %v1255 = vsub.s32 6, %v1254
  %v1256 = vrot.slane %v1220, %v1255
  %v1257 = vlaneseq
  %v1258 = vshrl.u32 %v1257, 7
  %v1259 = vsub.s32 7, %v1258
  %v1260 = vrot.slane %v1220, %v1259
  %v1261 = vlaneseq
  %v1262 = vshrl.u32 %v1261, 7
  %v1263 = vsub.s32 0, %v1262
  %v1264 = vrot.slane %v1222, %v1263
  %v1274 = vmul.f32 %v1225, %v1232
  %v1275 = vmul.f32 %v1225, %v1236
  %v1276 = vmul.f32 %v1225, %v1240
  %v1277 = vmul.f32 %v1225, %v1244
  %v1278 = vmul.f32 %v1225, %v1248
  %v1279 = vmul.f32 %v1225, %v1252
  %v1280 = vmul.f32 %v1225, %v1256
  %v1281 = vmul.f32 %v1225, %v1260
  %v1282 = vmul.f32 %v1225, %v1264
  %1292 = vrot.lane.b32.xlu0 %v1274, 64
  %v1293 = vpop.permute.xlu0 %1292
  %1294 = vrot.lane.b32.xlu0 %v1275, 64
  %v1295 = vpop.permute.xlu0 %1294
  %1296 = vrot.lane.b32.xlu0 %v1276, 64
  %v1297 = vpop.permute.xlu0 %1296
  %1298 = vrot.lane.b32.xlu0 %v1277, 64
  %v1299 = vpop.permute.xlu0 %1298
  %1300 = vrot.lane.b32.xlu0 %v1278, 64
  %v1301 = vpop.permute.xlu0 %1300
  %1302 = vrot.lane.b32.xlu0 %v1279, 64
  %v1303 = vpop.permute.xlu0 %1302
  %1304 = vrot.lane.b32.xlu0 %v1280, 64
  %v1305 = vpop.permute.xlu0 %1304
  %1306 = vrot.lane.b32.xlu0 %v1281, 64
  %v1307 = vpop.permute.xlu0 %1306
  %1308 = vrot.lane.b32.xlu0 %v1282, 64
  %v1309 = vpop.permute.xlu0 %1308
  %v1310 = vsel %vm1075, %v1293, %v1295
  %v1311 = vsel %vm1075, %v1295, %v1297
  %v1312 = vsel %vm1075, %v1297, %v1299
  %v1313 = vsel %vm1075, %v1299, %v1301
  %v1314 = vsel %vm1075, %v1301, %v1303
  %v1315 = vsel %vm1075, %v1303, %v1305
  %v1316 = vsel %vm1075, %v1305, %v1307
  %v1317 = vsel %vm1075, %v1307, %v1309
  %v1327 = vadd.f32 %v1210, %v1293
  %v1328 = vadd.f32 %v1211, %v1310
  %v1329 = vadd.f32 %v1212, %v1311
  %v1330 = vadd.f32 %v1213, %v1312
  %v1331 = vadd.f32 %v1214, %v1313
  %v1332 = vadd.f32 %v1215, %v1314
  %v1333 = vadd.f32 %v1216, %v1315
  %v1334 = vadd.f32 %v1217, %v1316
  %v1335 = vadd.f32 %v1218, %v1317
  %s1336 = scalar_lea.vmem %s33, 4 [#allocation2]
  %v1337 = vld [vmem:[%s1336] ss:$4 sm:$0xff]
  %s1338 = scalar_lea.vmem %s33, 36 [#allocation2]
  %v1339 = vld [vmem:[%s1338] ss:$4 sm:$0x1]
  %1340 = vset.pattern.permute.xlu0 33
  %1341 = vperm.xlu0 %1340, %v38
  %v1342 = vpop.permute.xlu0 %1341
  %v1346 = vlaneseq
  %v1347 = vshrl.u32 %v1346, 7
  %v1348 = vsub.s32 0, %v1347
  %v1349 = vrot.slane %v1337, %v1348
  %v1350 = vlaneseq
  %v1351 = vshrl.u32 %v1350, 7
  %v1352 = vsub.s32 1, %v1351
  %v1353 = vrot.slane %v1337, %v1352
  %v1354 = vlaneseq
  %v1355 = vshrl.u32 %v1354, 7
  %v1356 = vsub.s32 2, %v1355
  %v1357 = vrot.slane %v1337, %v1356
  %v1358 = vlaneseq
  %v1359 = vshrl.u32 %v1358, 7
  %v1360 = vsub.s32 3, %v1359
  %v1361 = vrot.slane %v1337, %v1360
  %v1362 = vlaneseq
  %v1363 = vshrl.u32 %v1362, 7
  %v1364 = vsub.s32 4, %v1363
  %v1365 = vrot.slane %v1337, %v1364
  %v1366 = vlaneseq
  %v1367 = vshrl.u32 %v1366, 7
  %v1368 = vsub.s32 5, %v1367
  %v1369 = vrot.slane %v1337, %v1368
  %v1370 = vlaneseq
  %v1371 = vshrl.u32 %v1370, 7
  %v1372 = vsub.s32 6, %v1371
  %v1373 = vrot.slane %v1337, %v1372
  %v1374 = vlaneseq
  %v1375 = vshrl.u32 %v1374, 7
  %v1376 = vsub.s32 7, %v1375
  %v1377 = vrot.slane %v1337, %v1376
  %v1378 = vlaneseq
  %v1379 = vshrl.u32 %v1378, 7
  %v1380 = vsub.s32 0, %v1379
  %v1381 = vrot.slane %v1339, %v1380
  %v1391 = vmul.f32 %v1342, %v1349
  %v1392 = vmul.f32 %v1342, %v1353
  %v1393 = vmul.f32 %v1342, %v1357
  %v1394 = vmul.f32 %v1342, %v1361
  %v1395 = vmul.f32 %v1342, %v1365
  %v1396 = vmul.f32 %v1342, %v1369
  %v1397 = vmul.f32 %v1342, %v1373
  %v1398 = vmul.f32 %v1342, %v1377
  %v1399 = vmul.f32 %v1342, %v1381
  %1409 = vrot.lane.b32.xlu0 %v1391, 64
  %v1410 = vpop.permute.xlu0 %1409
  %1411 = vrot.lane.b32.xlu0 %v1392, 64
  %v1412 = vpop.permute.xlu0 %1411
  %1413 = vrot.lane.b32.xlu0 %v1393, 64
  %v1414 = vpop.permute.xlu0 %1413
  %1415 = vrot.lane.b32.xlu0 %v1394, 64
  %v1416 = vpop.permute.xlu0 %1415
  %1417 = vrot.lane.b32.xlu0 %v1395, 64
  %v1418 = vpop.permute.xlu0 %1417
  %1419 = vrot.lane.b32.xlu0 %v1396, 64
  %v1420 = vpop.permute.xlu0 %1419
  %1421 = vrot.lane.b32.xlu0 %v1397, 64
  %v1422 = vpop.permute.xlu0 %1421
  %1423 = vrot.lane.b32.xlu0 %v1398, 64
  %v1424 = vpop.permute.xlu0 %1423
  %1425 = vrot.lane.b32.xlu0 %v1399, 64
  %v1426 = vpop.permute.xlu0 %1425
  %v1427 = vsel %vm1075, %v1410, %v1412
  %v1428 = vsel %vm1075, %v1412, %v1414
  %v1429 = vsel %vm1075, %v1414, %v1416
  %v1430 = vsel %vm1075, %v1416, %v1418
  %v1431 = vsel %vm1075, %v1418, %v1420
  %v1432 = vsel %vm1075, %v1420, %v1422
  %v1433 = vsel %vm1075, %v1422, %v1424
  %v1434 = vsel %vm1075, %v1424, %v1426
  %v1444 = vadd.f32 %v1327, %v1410
  %v1445 = vadd.f32 %v1328, %v1427
  %v1446 = vadd.f32 %v1329, %v1428
  %v1447 = vadd.f32 %v1330, %v1429
  %v1448 = vadd.f32 %v1331, %v1430
  %v1449 = vadd.f32 %v1332, %v1431
  %v1450 = vadd.f32 %v1333, %v1432
  %v1451 = vadd.f32 %v1334, %v1433
  %v1452 = vadd.f32 %v1335, %v1434
  %s1453 = scalar_lea.vmem %s33, 5 [#allocation2]
  %v1454 = vld [vmem:[%s1453] ss:$4 sm:$0xff]
  %s1455 = scalar_lea.vmem %s33, 37 [#allocation2]
  %v1456 = vld [vmem:[%s1455] ss:$4 sm:$0x1]
  %1457 = vset.pattern.permute.xlu0 42
  %1458 = vperm.xlu0 %1457, %v38
  %v1459 = vpop.permute.xlu0 %1458
  %v1463 = vlaneseq
  %v1464 = vshrl.u32 %v1463, 7
  %v1465 = vsub.s32 0, %v1464
  %v1466 = vrot.slane %v1454, %v1465
  %v1467 = vlaneseq
  %v1468 = vshrl.u32 %v1467, 7
  %v1469 = vsub.s32 1, %v1468
  %v1470 = vrot.slane %v1454, %v1469
  %v1471 = vlaneseq
  %v1472 = vshrl.u32 %v1471, 7
  %v1473 = vsub.s32 2, %v1472
  %v1474 = vrot.slane %v1454, %v1473
  %v1475 = vlaneseq
  %v1476 = vshrl.u32 %v1475, 7
  %v1477 = vsub.s32 3, %v1476
  %v1478 = vrot.slane %v1454, %v1477
  %v1479 = vlaneseq
  %v1480 = vshrl.u32 %v1479, 7
  %v1481 = vsub.s32 4, %v1480
  %v1482 = vrot.slane %v1454, %v1481
  %v1483 = vlaneseq
  %v1484 = vshrl.u32 %v1483, 7
  %v1485 = vsub.s32 5, %v1484
  %v1486 = vrot.slane %v1454, %v1485
  %v1487 = vlaneseq
  %v1488 = vshrl.u32 %v1487, 7
  %v1489 = vsub.s32 6, %v1488
  %v1490 = vrot.slane %v1454, %v1489
  %v1491 = vlaneseq
  %v1492 = vshrl.u32 %v1491, 7
  %v1493 = vsub.s32 7, %v1492
  %v1494 = vrot.slane %v1454, %v1493
  %v1495 = vlaneseq
  %v1496 = vshrl.u32 %v1495, 7
  %v1497 = vsub.s32 0, %v1496
  %v1498 = vrot.slane %v1456, %v1497
  %v1508 = vmul.f32 %v1459, %v1466
  %v1509 = vmul.f32 %v1459, %v1470
  %v1510 = vmul.f32 %v1459, %v1474
  %v1511 = vmul.f32 %v1459, %v1478
  %v1512 = vmul.f32 %v1459, %v1482
  %v1513 = vmul.f32 %v1459, %v1486
  %v1514 = vmul.f32 %v1459, %v1490
  %v1515 = vmul.f32 %v1459, %v1494
  %v1516 = vmul.f32 %v1459, %v1498
  %1526 = vrot.lane.b32.xlu0 %v1508, 64
  %v1527 = vpop.permute.xlu0 %1526
  %1528 = vrot.lane.b32.xlu0 %v1509, 64
  %v1529 = vpop.permute.xlu0 %1528
  %1530 = vrot.lane.b32.xlu0 %v1510, 64
  %v1531 = vpop.permute.xlu0 %1530
  %1532 = vrot.lane.b32.xlu0 %v1511, 64
  %v1533 = vpop.permute.xlu0 %1532
  %1534 = vrot.lane.b32.xlu0 %v1512, 64
  %v1535 = vpop.permute.xlu0 %1534
  %1536 = vrot.lane.b32.xlu0 %v1513, 64
  %v1537 = vpop.permute.xlu0 %1536
  %1538 = vrot.lane.b32.xlu0 %v1514, 64
  %v1539 = vpop.permute.xlu0 %1538
  %1540 = vrot.lane.b32.xlu0 %v1515, 64
  %v1541 = vpop.permute.xlu0 %1540
  %1542 = vrot.lane.b32.xlu0 %v1516, 64
  %v1543 = vpop.permute.xlu0 %1542
  %v1544 = vsel %vm1075, %v1527, %v1529
  %v1545 = vsel %vm1075, %v1529, %v1531
  %v1546 = vsel %vm1075, %v1531, %v1533
  %v1547 = vsel %vm1075, %v1533, %v1535
  %v1548 = vsel %vm1075, %v1535, %v1537
  %v1549 = vsel %vm1075, %v1537, %v1539
  %v1550 = vsel %vm1075, %v1539, %v1541
  %v1551 = vsel %vm1075, %v1541, %v1543
  %v1561 = vadd.f32 %v1444, %v1527
  %v1562 = vadd.f32 %v1445, %v1544
  %v1563 = vadd.f32 %v1446, %v1545
  %v1564 = vadd.f32 %v1447, %v1546
  %v1565 = vadd.f32 %v1448, %v1547
  %v1566 = vadd.f32 %v1449, %v1548
  %v1567 = vadd.f32 %v1450, %v1549
  %v1568 = vadd.f32 %v1451, %v1550
  %v1569 = vadd.f32 %v1452, %v1551
  %s1570 = scalar_lea.vmem %s33, 6 [#allocation2]
  %v1571 = vld [vmem:[%s1570] ss:$4 sm:$0xff]
  %s1572 = scalar_lea.vmem %s33, 38 [#allocation2]
  %v1573 = vld [vmem:[%s1572] ss:$4 sm:$0x1]
  %1574 = vset.pattern.permute.xlu0 51
  %1575 = vperm.xlu0 %1574, %v38
  %v1576 = vpop.permute.xlu0 %1575
  %v1580 = vlaneseq
  %v1581 = vshrl.u32 %v1580, 7
  %v1582 = vsub.s32 0, %v1581
  %v1583 = vrot.slane %v1571, %v1582
  %v1584 = vlaneseq
  %v1585 = vshrl.u32 %v1584, 7
  %v1586 = vsub.s32 1, %v1585
  %v1587 = vrot.slane %v1571, %v1586
  %v1588 = vlaneseq
  %v1589 = vshrl.u32 %v1588, 7
  %v1590 = vsub.s32 2, %v1589
  %v1591 = vrot.slane %v1571, %v1590
  %v1592 = vlaneseq
  %v1593 = vshrl.u32 %v1592, 7
  %v1594 = vsub.s32 3, %v1593
  %v1595 = vrot.slane %v1571, %v1594
  %v1596 = vlaneseq
  %v1597 = vshrl.u32 %v1596, 7
  %v1598 = vsub.s32 4, %v1597
  %v1599 = vrot.slane %v1571, %v1598
  %v1600 = vlaneseq
  %v1601 = vshrl.u32 %v1600, 7
  %v1602 = vsub.s32 5, %v1601
  %v1603 = vrot.slane %v1571, %v1602
  %v1604 = vlaneseq
  %v1605 = vshrl.u32 %v1604, 7
  %v1606 = vsub.s32 6, %v1605
  %v1607 = vrot.slane %v1571, %v1606
  %v1608 = vlaneseq
  %v1609 = vshrl.u32 %v1608, 7
  %v1610 = vsub.s32 7, %v1609
  %v1611 = vrot.slane %v1571, %v1610
  %v1612 = vlaneseq
  %v1613 = vshrl.u32 %v1612, 7
  %v1614 = vsub.s32 0, %v1613
  %v1615 = vrot.slane %v1573, %v1614
  %v1625 = vmul.f32 %v1576, %v1583
  %v1626 = vmul.f32 %v1576, %v1587
  %v1627 = vmul.f32 %v1576, %v1591
  %v1628 = vmul.f32 %v1576, %v1595
  %v1629 = vmul.f32 %v1576, %v1599
  %v1630 = vmul.f32 %v1576, %v1603
  %v1631 = vmul.f32 %v1576, %v1607
  %v1632 = vmul.f32 %v1576, %v1611
  %v1633 = vmul.f32 %v1576, %v1615
  %1643 = vrot.lane.b32.xlu0 %v1625, 64
  %v1644 = vpop.permute.xlu0 %1643
  %1645 = vrot.lane.b32.xlu0 %v1626, 64
  %v1646 = vpop.permute.xlu0 %1645
  %1647 = vrot.lane.b32.xlu0 %v1627, 64
  %v1648 = vpop.permute.xlu0 %1647
  %1649 = vrot.lane.b32.xlu0 %v1628, 64
  %v1650 = vpop.permute.xlu0 %1649
  %1651 = vrot.lane.b32.xlu0 %v1629, 64
  %v1652 = vpop.permute.xlu0 %1651
  %1653 = vrot.lane.b32.xlu0 %v1630, 64
  %v1654 = vpop.permute.xlu0 %1653
  %1655 = vrot.lane.b32.xlu0 %v1631, 64
  %v1656 = vpop.permute.xlu0 %1655
  %1657 = vrot.lane.b32.xlu0 %v1632, 64
  %v1658 = vpop.permute.xlu0 %1657
  %1659 = vrot.lane.b32.xlu0 %v1633, 64
  %v1660 = vpop.permute.xlu0 %1659
  %v1661 = vsel %vm1075, %v1644, %v1646
  %v1662 = vsel %vm1075, %v1646, %v1648
  %v1663 = vsel %vm1075, %v1648, %v1650
  %v1664 = vsel %vm1075, %v1650, %v1652
  %v1665 = vsel %vm1075, %v1652, %v1654
  %v1666 = vsel %vm1075, %v1654, %v1656
  %v1667 = vsel %vm1075, %v1656, %v1658
  %v1668 = vsel %vm1075, %v1658, %v1660
  %v1678 = vadd.f32 %v1561, %v1644
  %v1679 = vadd.f32 %v1562, %v1661
  %v1680 = vadd.f32 %v1563, %v1662
  %v1681 = vadd.f32 %v1564, %v1663
  %v1682 = vadd.f32 %v1565, %v1664
  %v1683 = vadd.f32 %v1566, %v1665
  %v1684 = vadd.f32 %v1567, %v1666
  %v1685 = vadd.f32 %v1568, %v1667
  %v1686 = vadd.f32 %v1569, %v1668
  %vm1687 = vcmp.ne.s32.totalorder %v137, 0
  %vm1688 = vcmp.ne.s32.totalorder %v138, 0
  %vm1689 = vcmp.ne.s32.totalorder %v139, 0
  %vm1690 = vcmp.ne.s32.totalorder %v140, 0
  %vm1691 = vcmp.ne.s32.totalorder %v141, 0
  %vm1692 = vcmp.ne.s32.totalorder %v142, 0
  %vm1693 = vcmp.ne.s32.totalorder %v143, 0
  %vm1694 = vcmp.ne.s32.totalorder %v144, 0
  %v1695 = vsel %vm1687, 1, 0
  %v1696 = vsel %vm1688, 1, 0
  %v1697 = vsel %vm1689, 1, 0
  %v1698 = vsel %vm1690, 1, 0
  %v1699 = vsel %vm1691, 1, 0
  %v1700 = vsel %vm1692, 1, 0
  %v1701 = vsel %vm1693, 1, 0
  %v1702 = vsel %vm1694, 1, 0
  %vm1703 = vcmp.eq.s32.totalorder %v1695, 1
  %vm1704 = vcmp.eq.s32.totalorder %v1696, 1
  %vm1705 = vcmp.eq.s32.totalorder %v1697, 1
  %vm1706 = vcmp.eq.s32.totalorder %v1698, 1
  %vm1707 = vcmp.eq.s32.totalorder %v1699, 1
  %vm1708 = vcmp.eq.s32.totalorder %v1700, 1
  %vm1709 = vcmp.eq.s32.totalorder %v1701, 1
  %vm1710 = vcmp.eq.s32.totalorder %v1702, 1
  %1720 = vrot.lane.b32.xlu0 %v1678, 33
  %v1721 = vpop.permute.xlu0 %1720
  %1722 = vrot.lane.b32.xlu0 %v1679, 33
  %v1723 = vpop.permute.xlu0 %1722
  %1724 = vrot.lane.b32.xlu0 %v1680, 33
  %v1725 = vpop.permute.xlu0 %1724
  %1726 = vrot.lane.b32.xlu0 %v1681, 33
  %v1727 = vpop.permute.xlu0 %1726
  %1728 = vrot.lane.b32.xlu0 %v1682, 33
  %v1729 = vpop.permute.xlu0 %1728
  %1730 = vrot.lane.b32.xlu0 %v1683, 33
  %v1731 = vpop.permute.xlu0 %1730
  %1732 = vrot.lane.b32.xlu0 %v1684, 33
  %v1733 = vpop.permute.xlu0 %1732
  %1734 = vrot.lane.b32.xlu0 %v1685, 33
  %v1735 = vpop.permute.xlu0 %1734
  %1736 = vrot.lane.b32.xlu0 %v1686, 33
  %v1737 = vpop.permute.xlu0 %1736
  %vm1738 = vcmask 269312
  %v1739 = vsel %vm1738, %v1721, %v1723
  %v1740 = vsel %vm1738, %v1723, %v1725
  %v1741 = vsel %vm1738, %v1725, %v1727
  %v1742 = vsel %vm1738, %v1727, %v1729
  %v1743 = vsel %vm1738, %v1729, %v1731
  %v1744 = vsel %vm1738, %v1731, %v1733
  %v1745 = vsel %vm1738, %v1733, %v1735
  %v1746 = vsel %vm1738, %v1735, %v1737
  %v1755 = vsel %vm1703, %v1739, 0.0
  %v1756 = vsel %vm1704, %v1740, 0.0
  %v1757 = vsel %vm1705, %v1741, 0.0
  %v1758 = vsel %vm1706, %v1742, 0.0
  %v1759 = vsel %vm1707, %v1743, 0.0
  %v1760 = vsel %vm1708, %v1744, 0.0
  %v1761 = vsel %vm1709, %v1745, 0.0
  %v1762 = vsel %vm1710, %v1746, 0.0
  %v1763 = vadd.f32 %v148, %v1755
  %v1764 = vadd.f32 %v148, %v1756
  %v1765 = vadd.f32 %v148, %v1757
  %v1766 = vadd.f32 %v148, %v1758
  %v1767 = vadd.f32 %v148, %v1759
  %v1768 = vadd.f32 %v148, %v1760
  %v1769 = vadd.f32 %v148, %v1761
  %v1770 = vadd.f32 %v148, %v1762
  %1771 = vset.pattern.permute.xlu0 1
  %1772 = vperm.xlu0 %1771, %v38
  %v1773 = vpop.permute.xlu0 %1772
  %v1775 = vmul.f32 %v1773, %v163
  %v1776 = vmul.f32 %v1773, %v167
  %v1777 = vmul.f32 %v1773, %v171
  %v1778 = vmul.f32 %v1773, %v175
  %v1779 = vmul.f32 %v1773, %v179
  %v1780 = vmul.f32 %v1773, %v183
  %v1781 = vmul.f32 %v1773, %v187
  %v1782 = vmul.f32 %v1773, %v191
  %v1783 = vmul.f32 %v1773, %v195
  %v1784 = vadd.f32 %v1775, 0.0
  %v1785 = vadd.f32 %v1776, 0.0
  %v1786 = vadd.f32 %v1777, 0.0
  %v1787 = vadd.f32 %v1778, 0.0
  %v1788 = vadd.f32 %v1779, 0.0
  %v1789 = vadd.f32 %v1780, 0.0
  %v1790 = vadd.f32 %v1781, 0.0
  %v1791 = vadd.f32 %v1782, 0.0
  %v1792 = vadd.f32 %v1783, 0.0
  %1793 = vset.pattern.permute.xlu0 10
  %1794 = vperm.xlu0 %1793, %v38
  %v1795 = vpop.permute.xlu0 %1794
  %v1797 = vmul.f32 %v1795, %v236
  %v1798 = vmul.f32 %v1795, %v240
  %v1799 = vmul.f32 %v1795, %v244
  %v1800 = vmul.f32 %v1795, %v248
  %v1801 = vmul.f32 %v1795, %v252
  %v1802 = vmul.f32 %v1795, %v256
  %v1803 = vmul.f32 %v1795, %v260
  %v1804 = vmul.f32 %v1795, %v264
  %v1805 = vmul.f32 %v1795, %v268
  %v1806 = vadd.f32 %v1784, %v1797
  %v1807 = vadd.f32 %v1785, %v1798
  %v1808 = vadd.f32 %v1786, %v1799
  %v1809 = vadd.f32 %v1787, %v1800
  %v1810 = vadd.f32 %v1788, %v1801
  %v1811 = vadd.f32 %v1789, %v1802
  %v1812 = vadd.f32 %v1790, %v1803
  %v1813 = vadd.f32 %v1791, %v1804
  %v1814 = vadd.f32 %v1792, %v1805
  %1815 = vset.pattern.permute.xlu0 19
  %1816 = vperm.xlu0 %1815, %v38
  %v1817 = vpop.permute.xlu0 %1816
  %v1819 = vmul.f32 %v1817, %v309
  %v1820 = vmul.f32 %v1817, %v313
  %v1821 = vmul.f32 %v1817, %v317
  %v1822 = vmul.f32 %v1817, %v321
  %v1823 = vmul.f32 %v1817, %v325
  %v1824 = vmul.f32 %v1817, %v329
  %v1825 = vmul.f32 %v1817, %v333
  %v1826 = vmul.f32 %v1817, %v337
  %v1827 = vmul.f32 %v1817, %v341
  %v1828 = vadd.f32 %v1806, %v1819
  %v1829 = vadd.f32 %v1807, %v1820
  %v1830 = vadd.f32 %v1808, %v1821
  %v1831 = vadd.f32 %v1809, %v1822
  %v1832 = vadd.f32 %v1810, %v1823
  %v1833 = vadd.f32 %v1811, %v1824
  %v1834 = vadd.f32 %v1812, %v1825
  %v1835 = vadd.f32 %v1813, %v1826
  %v1836 = vadd.f32 %v1814, %v1827
  %1837 = vset.pattern.permute.xlu0 28
  %1838 = vperm.xlu0 %1837, %v38
  %v1839 = vpop.permute.xlu0 %1838
  %v1841 = vmul.f32 %v1839, %v381
  %v1842 = vmul.f32 %v1839, %v385
  %v1843 = vmul.f32 %v1839, %v389
  %v1844 = vmul.f32 %v1839, %v393
  %v1845 = vmul.f32 %v1839, %v397
  %v1846 = vmul.f32 %v1839, %v401
  %v1847 = vmul.f32 %v1839, %v405
  %v1848 = vmul.f32 %v1839, %v409
  %v1849 = vmul.f32 %v1839, %v413
  %v1850 = vadd.f32 %v1828, %v1841
  %v1851 = vadd.f32 %v1829, %v1842
  %v1852 = vadd.f32 %v1830, %v1843
  %v1853 = vadd.f32 %v1831, %v1844
  %v1854 = vadd.f32 %v1832, %v1845
  %v1855 = vadd.f32 %v1833, %v1846
  %v1856 = vadd.f32 %v1834, %v1847
  %v1857 = vadd.f32 %v1835, %v1848
  %v1858 = vadd.f32 %v1836, %v1849
  %1859 = vset.pattern.permute.xlu0 37
  %1860 = vperm.xlu0 %1859, %v38
  %v1861 = vpop.permute.xlu0 %1860
  %v1863 = vmul.f32 %v1861, %v454
  %v1864 = vmul.f32 %v1861, %v458
  %v1865 = vmul.f32 %v1861, %v462
  %v1866 = vmul.f32 %v1861, %v466
  %v1867 = vmul.f32 %v1861, %v470
  %v1868 = vmul.f32 %v1861, %v474
  %v1869 = vmul.f32 %v1861, %v478
  %v1870 = vmul.f32 %v1861, %v482
  %v1871 = vmul.f32 %v1861, %v486
  %v1872 = vadd.f32 %v1850, %v1863
  %v1873 = vadd.f32 %v1851, %v1864
  %v1874 = vadd.f32 %v1852, %v1865
  %v1875 = vadd.f32 %v1853, %v1866
  %v1876 = vadd.f32 %v1854, %v1867
  %v1877 = vadd.f32 %v1855, %v1868
  %v1878 = vadd.f32 %v1856, %v1869
  %v1879 = vadd.f32 %v1857, %v1870
  %v1880 = vadd.f32 %v1858, %v1871
  %1881 = vset.pattern.permute.xlu0 46
  %1882 = vperm.xlu0 %1881, %v38
  %v1883 = vpop.permute.xlu0 %1882
  %v1885 = vmul.f32 %v1883, %v527
  %v1886 = vmul.f32 %v1883, %v531
  %v1887 = vmul.f32 %v1883, %v535
  %v1888 = vmul.f32 %v1883, %v539
  %v1889 = vmul.f32 %v1883, %v543
  %v1890 = vmul.f32 %v1883, %v547
  %v1891 = vmul.f32 %v1883, %v551
  %v1892 = vmul.f32 %v1883, %v555
  %v1893 = vmul.f32 %v1883, %v559
  %v1894 = vadd.f32 %v1872, %v1885
  %v1895 = vadd.f32 %v1873, %v1886
  %v1896 = vadd.f32 %v1874, %v1887
  %v1897 = vadd.f32 %v1875, %v1888
  %v1898 = vadd.f32 %v1876, %v1889
  %v1899 = vadd.f32 %v1877, %v1890
  %v1900 = vadd.f32 %v1878, %v1891
  %v1901 = vadd.f32 %v1879, %v1892
  %v1902 = vadd.f32 %v1880, %v1893
  %v1903 = vld [vmem:[%s984] ss:$4 sm:$0xff]
  %1904 = vset.pattern.permute.xlu0 4
  %1905 = vperm.xlu0 %1904, %v38
  %v1906 = vpop.permute.xlu0 %1905
  %v1909 = vlaneseq
  %v1910 = vshrl.u32 %v1909, 7
  %v1911 = vsub.s32 0, %v1910
  %v1912 = vrot.slane %v1903, %v1911
  %v1913 = vlaneseq
  %v1914 = vshrl.u32 %v1913, 7
  %v1915 = vsub.s32 1, %v1914
  %v1916 = vrot.slane %v1903, %v1915
  %v1917 = vlaneseq
  %v1918 = vshrl.u32 %v1917, 7
  %v1919 = vsub.s32 2, %v1918
  %v1920 = vrot.slane %v1903, %v1919
  %v1921 = vlaneseq
  %v1922 = vshrl.u32 %v1921, 7
  %v1923 = vsub.s32 3, %v1922
  %v1924 = vrot.slane %v1903, %v1923
  %v1925 = vlaneseq
  %v1926 = vshrl.u32 %v1925, 7
  %v1927 = vsub.s32 4, %v1926
  %v1928 = vrot.slane %v1903, %v1927
  %v1929 = vlaneseq
  %v1930 = vshrl.u32 %v1929, 7
  %v1931 = vsub.s32 5, %v1930
  %v1932 = vrot.slane %v1903, %v1931
  %v1933 = vlaneseq
  %v1934 = vshrl.u32 %v1933, 7
  %v1935 = vsub.s32 6, %v1934
  %v1936 = vrot.slane %v1903, %v1935
  %v1937 = vlaneseq
  %v1938 = vshrl.u32 %v1937, 7
  %v1939 = vsub.s32 7, %v1938
  %v1940 = vrot.slane %v1903, %v1939
  %v1949 = vmul.f32 %v1906, %v1912
  %v1950 = vmul.f32 %v1906, %v1916
  %v1951 = vmul.f32 %v1906, %v1920
  %v1952 = vmul.f32 %v1906, %v1924
  %v1953 = vmul.f32 %v1906, %v1928
  %v1954 = vmul.f32 %v1906, %v1932
  %v1955 = vmul.f32 %v1906, %v1936
  %v1956 = vmul.f32 %v1906, %v1940
  %1965 = vrot.lane.b32.xlu0 %v1949, 96
  %v1966 = vpop.permute.xlu0 %1965
  %1967 = vrot.lane.b32.xlu0 %v1950, 96
  %v1968 = vpop.permute.xlu0 %1967
  %1969 = vrot.lane.b32.xlu0 %v1951, 96
  %v1970 = vpop.permute.xlu0 %1969
  %1971 = vrot.lane.b32.xlu0 %v1952, 96
  %v1972 = vpop.permute.xlu0 %1971
  %1973 = vrot.lane.b32.xlu0 %v1953, 96
  %v1974 = vpop.permute.xlu0 %1973
  %1975 = vrot.lane.b32.xlu0 %v1954, 96
  %v1976 = vpop.permute.xlu0 %1975
  %1977 = vrot.lane.b32.xlu0 %v1955, 96
  %v1978 = vpop.permute.xlu0 %1977
  %1979 = vrot.lane.b32.xlu0 %v1956, 96
  %v1980 = vpop.permute.xlu0 %1979
  %v1981 = vsel %vm627, %v1966, %v1968
  %v1982 = vsel %vm627, %v1968, %v1970
  %v1983 = vsel %vm627, %v1970, %v1972
  %v1984 = vsel %vm627, %v1972, %v1974
  %v1985 = vsel %vm627, %v1974, %v1976
  %v1986 = vsel %vm627, %v1976, %v1978
  %v1987 = vsel %vm627, %v1978, %v1980
  %v1997 = vadd.f32 %v1894, %v1966
  %v1998 = vadd.f32 %v1895, %v1981
  %v1999 = vadd.f32 %v1896, %v1982
  %v2000 = vadd.f32 %v1897, %v1983
  %v2001 = vadd.f32 %v1898, %v1984
  %v2002 = vadd.f32 %v1899, %v1985
  %v2003 = vadd.f32 %v1900, %v1986
  %v2004 = vadd.f32 %v1901, %v1987
  %v2005 = vadd.f32 %v1902, %v1980
  %v2006 = vld [vmem:[%s1102] ss:$4 sm:$0xff]
  %2007 = vset.pattern.permute.xlu0 13
  %2008 = vperm.xlu0 %2007, %v38
  %v2009 = vpop.permute.xlu0 %2008
  %v2012 = vlaneseq
  %v2013 = vshrl.u32 %v2012, 7
  %v2014 = vsub.s32 0, %v2013
  %v2015 = vrot.slane %v2006, %v2014
  %v2016 = vlaneseq
  %v2017 = vshrl.u32 %v2016, 7
  %v2018 = vsub.s32 1, %v2017
  %v2019 = vrot.slane %v2006, %v2018
  %v2020 = vlaneseq
  %v2021 = vshrl.u32 %v2020, 7
  %v2022 = vsub.s32 2, %v2021
  %v2023 = vrot.slane %v2006, %v2022
  %v2024 = vlaneseq
  %v2025 = vshrl.u32 %v2024, 7
  %v2026 = vsub.s32 3, %v2025
  %v2027 = vrot.slane %v2006, %v2026
  %v2028 = vlaneseq
  %v2029 = vshrl.u32 %v2028, 7
  %v2030 = vsub.s32 4, %v2029
  %v2031 = vrot.slane %v2006, %v2030
  %v2032 = vlaneseq
  %v2033 = vshrl.u32 %v2032, 7
  %v2034 = vsub.s32 5, %v2033
  %v2035 = vrot.slane %v2006, %v2034
  %v2036 = vlaneseq
  %v2037 = vshrl.u32 %v2036, 7
  %v2038 = vsub.s32 6, %v2037
  %v2039 = vrot.slane %v2006, %v2038
  %v2040 = vlaneseq
  %v2041 = vshrl.u32 %v2040, 7
  %v2042 = vsub.s32 7, %v2041
  %v2043 = vrot.slane %v2006, %v2042
  %v2052 = vmul.f32 %v2009, %v2015
  %v2053 = vmul.f32 %v2009, %v2019
  %v2054 = vmul.f32 %v2009, %v2023
  %v2055 = vmul.f32 %v2009, %v2027
  %v2056 = vmul.f32 %v2009, %v2031
  %v2057 = vmul.f32 %v2009, %v2035
  %v2058 = vmul.f32 %v2009, %v2039
  %v2059 = vmul.f32 %v2009, %v2043
  %2068 = vrot.lane.b32.xlu0 %v2052, 96
  %v2069 = vpop.permute.xlu0 %2068
  %2070 = vrot.lane.b32.xlu0 %v2053, 96
  %v2071 = vpop.permute.xlu0 %2070
  %2072 = vrot.lane.b32.xlu0 %v2054, 96
  %v2073 = vpop.permute.xlu0 %2072
  %2074 = vrot.lane.b32.xlu0 %v2055, 96
  %v2075 = vpop.permute.xlu0 %2074
  %2076 = vrot.lane.b32.xlu0 %v2056, 96
  %v2077 = vpop.permute.xlu0 %2076
  %2078 = vrot.lane.b32.xlu0 %v2057, 96
  %v2079 = vpop.permute.xlu0 %2078
  %2080 = vrot.lane.b32.xlu0 %v2058, 96
  %v2081 = vpop.permute.xlu0 %2080
  %2082 = vrot.lane.b32.xlu0 %v2059, 96
  %v2083 = vpop.permute.xlu0 %2082
  %v2084 = vsel %vm627, %v2069, %v2071
  %v2085 = vsel %vm627, %v2071, %v2073
  %v2086 = vsel %vm627, %v2073, %v2075
  %v2087 = vsel %vm627, %v2075, %v2077
  %v2088 = vsel %vm627, %v2077, %v2079
  %v2089 = vsel %vm627, %v2079, %v2081
  %v2090 = vsel %vm627, %v2081, %v2083
  %v2100 = vadd.f32 %v1997, %v2069
  %v2101 = vadd.f32 %v1998, %v2084
  %v2102 = vadd.f32 %v1999, %v2085
  %v2103 = vadd.f32 %v2000, %v2086
  %v2104 = vadd.f32 %v2001, %v2087
  %v2105 = vadd.f32 %v2002, %v2088
  %v2106 = vadd.f32 %v2003, %v2089
  %v2107 = vadd.f32 %v2004, %v2090
  %v2108 = vadd.f32 %v2005, %v2083
  %v2109 = vld [vmem:[%s1219] ss:$4 sm:$0xff]
  %2110 = vset.pattern.permute.xlu0 22
  %2111 = vperm.xlu0 %2110, %v38
  %v2112 = vpop.permute.xlu0 %2111
  %v2115 = vlaneseq
  %v2116 = vshrl.u32 %v2115, 7
  %v2117 = vsub.s32 0, %v2116
  %v2118 = vrot.slane %v2109, %v2117
  %v2119 = vlaneseq
  %v2120 = vshrl.u32 %v2119, 7
  %v2121 = vsub.s32 1, %v2120
  %v2122 = vrot.slane %v2109, %v2121
  %v2123 = vlaneseq
  %v2124 = vshrl.u32 %v2123, 7
  %v2125 = vsub.s32 2, %v2124
  %v2126 = vrot.slane %v2109, %v2125
  %v2127 = vlaneseq
  %v2128 = vshrl.u32 %v2127, 7
  %v2129 = vsub.s32 3, %v2128
  %v2130 = vrot.slane %v2109, %v2129
  %v2131 = vlaneseq
  %v2132 = vshrl.u32 %v2131, 7
  %v2133 = vsub.s32 4, %v2132
  %v2134 = vrot.slane %v2109, %v2133
  %v2135 = vlaneseq
  %v2136 = vshrl.u32 %v2135, 7
  %v2137 = vsub.s32 5, %v2136
  %v2138 = vrot.slane %v2109, %v2137
  %v2139 = vlaneseq
  %v2140 = vshrl.u32 %v2139, 7
  %v2141 = vsub.s32 6, %v2140
  %v2142 = vrot.slane %v2109, %v2141
  %v2143 = vlaneseq
  %v2144 = vshrl.u32 %v2143, 7
  %v2145 = vsub.s32 7, %v2144
  %v2146 = vrot.slane %v2109, %v2145
  %v2155 = vmul.f32 %v2112, %v2118
  %v2156 = vmul.f32 %v2112, %v2122
  %v2157 = vmul.f32 %v2112, %v2126
  %v2158 = vmul.f32 %v2112, %v2130
  %v2159 = vmul.f32 %v2112, %v2134
  %v2160 = vmul.f32 %v2112, %v2138
  %v2161 = vmul.f32 %v2112, %v2142
  %v2162 = vmul.f32 %v2112, %v2146
  %2171 = vrot.lane.b32.xlu0 %v2155, 96
  %v2172 = vpop.permute.xlu0 %2171
  %2173 = vrot.lane.b32.xlu0 %v2156, 96
  %v2174 = vpop.permute.xlu0 %2173
  %2175 = vrot.lane.b32.xlu0 %v2157, 96
  %v2176 = vpop.permute.xlu0 %2175
  %2177 = vrot.lane.b32.xlu0 %v2158, 96
  %v2178 = vpop.permute.xlu0 %2177
  %2179 = vrot.lane.b32.xlu0 %v2159, 96
  %v2180 = vpop.permute.xlu0 %2179
  %2181 = vrot.lane.b32.xlu0 %v2160, 96
  %v2182 = vpop.permute.xlu0 %2181
  %2183 = vrot.lane.b32.xlu0 %v2161, 96
  %v2184 = vpop.permute.xlu0 %2183
  %2185 = vrot.lane.b32.xlu0 %v2162, 96
  %v2186 = vpop.permute.xlu0 %2185
  %v2187 = vsel %vm627, %v2172, %v2174
  %v2188 = vsel %vm627, %v2174, %v2176
  %v2189 = vsel %vm627, %v2176, %v2178
  %v2190 = vsel %vm627, %v2178, %v2180
  %v2191 = vsel %vm627, %v2180, %v2182
  %v2192 = vsel %vm627, %v2182, %v2184
  %v2193 = vsel %vm627, %v2184, %v2186
  %v2203 = vadd.f32 %v2100, %v2172
  %v2204 = vadd.f32 %v2101, %v2187
  %v2205 = vadd.f32 %v2102, %v2188
  %v2206 = vadd.f32 %v2103, %v2189
  %v2207 = vadd.f32 %v2104, %v2190
  %v2208 = vadd.f32 %v2105, %v2191
  %v2209 = vadd.f32 %v2106, %v2192
  %v2210 = vadd.f32 %v2107, %v2193
  %v2211 = vadd.f32 %v2108, %v2186
  %v2212 = vld [vmem:[%s1336] ss:$4 sm:$0xff]
  %2213 = vset.pattern.permute.xlu0 31
  %2214 = vperm.xlu0 %2213, %v38
  %v2215 = vpop.permute.xlu0 %2214
  %v2218 = vlaneseq
  %v2219 = vshrl.u32 %v2218, 7
  %v2220 = vsub.s32 0, %v2219
  %v2221 = vrot.slane %v2212, %v2220
  %v2222 = vlaneseq
  %v2223 = vshrl.u32 %v2222, 7
  %v2224 = vsub.s32 1, %v2223
  %v2225 = vrot.slane %v2212, %v2224
  %v2226 = vlaneseq
  %v2227 = vshrl.u32 %v2226, 7
  %v2228 = vsub.s32 2, %v2227
  %v2229 = vrot.slane %v2212, %v2228
  %v2230 = vlaneseq
  %v2231 = vshrl.u32 %v2230, 7
  %v2232 = vsub.s32 3, %v2231
  %v2233 = vrot.slane %v2212, %v2232
  %v2234 = vlaneseq
  %v2235 = vshrl.u32 %v2234, 7
  %v2236 = vsub.s32 4, %v2235
  %v2237 = vrot.slane %v2212, %v2236
  %v2238 = vlaneseq
  %v2239 = vshrl.u32 %v2238, 7
  %v2240 = vsub.s32 5, %v2239
  %v2241 = vrot.slane %v2212, %v2240
  %v2242 = vlaneseq
  %v2243 = vshrl.u32 %v2242, 7
  %v2244 = vsub.s32 6, %v2243
  %v2245 = vrot.slane %v2212, %v2244
  %v2246 = vlaneseq
  %v2247 = vshrl.u32 %v2246, 7
  %v2248 = vsub.s32 7, %v2247
  %v2249 = vrot.slane %v2212, %v2248
  %v2258 = vmul.f32 %v2215, %v2221
  %v2259 = vmul.f32 %v2215, %v2225
  %v2260 = vmul.f32 %v2215, %v2229
  %v2261 = vmul.f32 %v2215, %v2233
  %v2262 = vmul.f32 %v2215, %v2237
  %v2263 = vmul.f32 %v2215, %v2241
  %v2264 = vmul.f32 %v2215, %v2245
  %v2265 = vmul.f32 %v2215, %v2249
  %2274 = vrot.lane.b32.xlu0 %v2258, 96
  %v2275 = vpop.permute.xlu0 %2274
  %2276 = vrot.lane.b32.xlu0 %v2259, 96
  %v2277 = vpop.permute.xlu0 %2276
  %2278 = vrot.lane.b32.xlu0 %v2260, 96
  %v2279 = vpop.permute.xlu0 %2278
  %2280 = vrot.lane.b32.xlu0 %v2261, 96
  %v2281 = vpop.permute.xlu0 %2280
  %2282 = vrot.lane.b32.xlu0 %v2262, 96
  %v2283 = vpop.permute.xlu0 %2282
  %2284 = vrot.lane.b32.xlu0 %v2263, 96
  %v2285 = vpop.permute.xlu0 %2284
  %2286 = vrot.lane.b32.xlu0 %v2264, 96
  %v2287 = vpop.permute.xlu0 %2286
  %2288 = vrot.lane.b32.xlu0 %v2265, 96
  %v2289 = vpop.permute.xlu0 %2288
  %v2290 = vsel %vm627, %v2275, %v2277
  %v2291 = vsel %vm627, %v2277, %v2279
  %v2292 = vsel %vm627, %v2279, %v2281
  %v2293 = vsel %vm627, %v2281, %v2283
  %v2294 = vsel %vm627, %v2283, %v2285
  %v2295 = vsel %vm627, %v2285, %v2287
  %v2296 = vsel %vm627, %v2287, %v2289
  %v2306 = vadd.f32 %v2203, %v2275
  %v2307 = vadd.f32 %v2204, %v2290
  %v2308 = vadd.f32 %v2205, %v2291
  %v2309 = vadd.f32 %v2206, %v2292
  %v2310 = vadd.f32 %v2207, %v2293
  %v2311 = vadd.f32 %v2208, %v2294
  %v2312 = vadd.f32 %v2209, %v2295
  %v2313 = vadd.f32 %v2210, %v2296
  %v2314 = vadd.f32 %v2211, %v2289
  %v2315 = vld [vmem:[%s1453] ss:$4 sm:$0xff]
  %2316 = vset.pattern.permute.xlu0 40
  %2317 = vperm.xlu0 %2316, %v38
  %v2318 = vpop.permute.xlu0 %2317
  %v2321 = vlaneseq
  %v2322 = vshrl.u32 %v2321, 7
  %v2323 = vsub.s32 0, %v2322
  %v2324 = vrot.slane %v2315, %v2323
  %v2325 = vlaneseq
  %v2326 = vshrl.u32 %v2325, 7
  %v2327 = vsub.s32 1, %v2326
  %v2328 = vrot.slane %v2315, %v2327
  %v2329 = vlaneseq
  %v2330 = vshrl.u32 %v2329, 7
  %v2331 = vsub.s32 2, %v2330
  %v2332 = vrot.slane %v2315, %v2331
  %v2333 = vlaneseq
  %v2334 = vshrl.u32 %v2333, 7
  %v2335 = vsub.s32 3, %v2334
  %v2336 = vrot.slane %v2315, %v2335
  %v2337 = vlaneseq
  %v2338 = vshrl.u32 %v2337, 7
  %v2339 = vsub.s32 4, %v2338
  %v2340 = vrot.slane %v2315, %v2339
  %v2341 = vlaneseq
  %v2342 = vshrl.u32 %v2341, 7
  %v2343 = vsub.s32 5, %v2342
  %v2344 = vrot.slane %v2315, %v2343
  %v2345 = vlaneseq
  %v2346 = vshrl.u32 %v2345, 7
  %v2347 = vsub.s32 6, %v2346
  %v2348 = vrot.slane %v2315, %v2347
  %v2349 = vlaneseq
  %v2350 = vshrl.u32 %v2349, 7
  %v2351 = vsub.s32 7, %v2350
  %v2352 = vrot.slane %v2315, %v2351
  %v2361 = vmul.f32 %v2318, %v2324
  %v2362 = vmul.f32 %v2318, %v2328
  %v2363 = vmul.f32 %v2318, %v2332
  %v2364 = vmul.f32 %v2318, %v2336
  %v2365 = vmul.f32 %v2318, %v2340
  %v2366 = vmul.f32 %v2318, %v2344
  %v2367 = vmul.f32 %v2318, %v2348
  %v2368 = vmul.f32 %v2318, %v2352
  %2377 = vrot.lane.b32.xlu0 %v2361, 96
  %v2378 = vpop.permute.xlu0 %2377
  %2379 = vrot.lane.b32.xlu0 %v2362, 96
  %v2380 = vpop.permute.xlu0 %2379
  %2381 = vrot.lane.b32.xlu0 %v2363, 96
  %v2382 = vpop.permute.xlu0 %2381
  %2383 = vrot.lane.b32.xlu0 %v2364, 96
  %v2384 = vpop.permute.xlu0 %2383
  %2385 = vrot.lane.b32.xlu0 %v2365, 96
  %v2386 = vpop.permute.xlu0 %2385
  %2387 = vrot.lane.b32.xlu0 %v2366, 96
  %v2388 = vpop.permute.xlu0 %2387
  %2389 = vrot.lane.b32.xlu0 %v2367, 96
  %v2390 = vpop.permute.xlu0 %2389
  %2391 = vrot.lane.b32.xlu0 %v2368, 96
  %v2392 = vpop.permute.xlu0 %2391
  %v2393 = vsel %vm627, %v2378, %v2380
  %v2394 = vsel %vm627, %v2380, %v2382
  %v2395 = vsel %vm627, %v2382, %v2384
  %v2396 = vsel %vm627, %v2384, %v2386
  %v2397 = vsel %vm627, %v2386, %v2388
  %v2398 = vsel %vm627, %v2388, %v2390
  %v2399 = vsel %vm627, %v2390, %v2392
  %v2409 = vadd.f32 %v2306, %v2378
  %v2410 = vadd.f32 %v2307, %v2393
  %v2411 = vadd.f32 %v2308, %v2394
  %v2412 = vadd.f32 %v2309, %v2395
  %v2413 = vadd.f32 %v2310, %v2396
  %v2414 = vadd.f32 %v2311, %v2397
  %v2415 = vadd.f32 %v2312, %v2398
  %v2416 = vadd.f32 %v2313, %v2399
  %v2417 = vadd.f32 %v2314, %v2392
  %v2418 = vld [vmem:[%s1570] ss:$4 sm:$0xff]
  %2419 = vset.pattern.permute.xlu0 49
  %2420 = vperm.xlu0 %2419, %v38
  %v2421 = vpop.permute.xlu0 %2420
  %v2424 = vlaneseq
  %v2425 = vshrl.u32 %v2424, 7
  %v2426 = vsub.s32 0, %v2425
  %v2427 = vrot.slane %v2418, %v2426
  %v2428 = vlaneseq
  %v2429 = vshrl.u32 %v2428, 7
  %v2430 = vsub.s32 1, %v2429
  %v2431 = vrot.slane %v2418, %v2430
  %v2432 = vlaneseq
  %v2433 = vshrl.u32 %v2432, 7
  %v2434 = vsub.s32 2, %v2433
  %v2435 = vrot.slane %v2418, %v2434
  %v2436 = vlaneseq
  %v2437 = vshrl.u32 %v2436, 7
  %v2438 = vsub.s32 3, %v2437
  %v2439 = vrot.slane %v2418, %v2438
  %v2440 = vlaneseq
  %v2441 = vshrl.u32 %v2440, 7
  %v2442 = vsub.s32 4, %v2441
  %v2443 = vrot.slane %v2418, %v2442
  %v2444 = vlaneseq
  %v2445 = vshrl.u32 %v2444, 7
  %v2446 = vsub.s32 5, %v2445
  %v2447 = vrot.slane %v2418, %v2446
  %v2448 = vlaneseq
  %v2449 = vshrl.u32 %v2448, 7
  %v2450 = vsub.s32 6, %v2449
  %v2451 = vrot.slane %v2418, %v2450
  %v2452 = vlaneseq
  %v2453 = vshrl.u32 %v2452, 7
  %v2454 = vsub.s32 7, %v2453
  %v2455 = vrot.slane %v2418, %v2454
  %v2464 = vmul.f32 %v2421, %v2427
  %v2465 = vmul.f32 %v2421, %v2431
  %v2466 = vmul.f32 %v2421, %v2435
  %v2467 = vmul.f32 %v2421, %v2439
  %v2468 = vmul.f32 %v2421, %v2443
  %v2469 = vmul.f32 %v2421, %v2447
  %v2470 = vmul.f32 %v2421, %v2451
  %v2471 = vmul.f32 %v2421, %v2455
  %2480 = vrot.lane.b32.xlu0 %v2464, 96
  %v2481 = vpop.permute.xlu0 %2480
  %2482 = vrot.lane.b32.xlu0 %v2465, 96
  %v2483 = vpop.permute.xlu0 %2482
  %2484 = vrot.lane.b32.xlu0 %v2466, 96
  %v2485 = vpop.permute.xlu0 %2484
  %2486 = vrot.lane.b32.xlu0 %v2467, 96
  %v2487 = vpop.permute.xlu0 %2486
  %2488 = vrot.lane.b32.xlu0 %v2468, 96
  %v2489 = vpop.permute.xlu0 %2488
  %2490 = vrot.lane.b32.xlu0 %v2469, 96
  %v2491 = vpop.permute.xlu0 %2490
  %2492 = vrot.lane.b32.xlu0 %v2470, 96
  %v2493 = vpop.permute.xlu0 %2492
  %2494 = vrot.lane.b32.xlu0 %v2471, 96
  %v2495 = vpop.permute.xlu0 %2494
  %v2496 = vsel %vm627, %v2481, %v2483
  %v2497 = vsel %vm627, %v2483, %v2485
  %v2498 = vsel %vm627, %v2485, %v2487
  %v2499 = vsel %vm627, %v2487, %v2489
  %v2500 = vsel %vm627, %v2489, %v2491
  %v2501 = vsel %vm627, %v2491, %v2493
  %v2502 = vsel %vm627, %v2493, %v2495
  %v2512 = vadd.f32 %v2409, %v2481
  %v2513 = vadd.f32 %v2410, %v2496
  %v2514 = vadd.f32 %v2411, %v2497
  %v2515 = vadd.f32 %v2412, %v2498
  %v2516 = vadd.f32 %v2413, %v2499
  %v2517 = vadd.f32 %v2414, %v2500
  %v2518 = vadd.f32 %v2415, %v2501
  %v2519 = vadd.f32 %v2416, %v2502
  %v2520 = vadd.f32 %v2417, %v2495
  %2521 = vset.pattern.permute.xlu0 7
  %2522 = vperm.xlu0 %2521, %v38
  %v2523 = vpop.permute.xlu0 %2522
  %v2525 = vmul.f32 %v2523, %v997
  %v2526 = vmul.f32 %v2523, %v1001
  %v2527 = vmul.f32 %v2523, %v1005
  %v2528 = vmul.f32 %v2523, %v1009
  %v2529 = vmul.f32 %v2523, %v1013
  %v2530 = vmul.f32 %v2523, %v1017
  %v2531 = vmul.f32 %v2523, %v1021
  %v2532 = vmul.f32 %v2523, %v1025
  %v2533 = vmul.f32 %v2523, %v1029
  %2543 = vrot.lane.b32.xlu0 %v2525, 64
  %v2544 = vpop.permute.xlu0 %2543
  %2545 = vrot.lane.b32.xlu0 %v2526, 64
  %v2546 = vpop.permute.xlu0 %2545
  %2547 = vrot.lane.b32.xlu0 %v2527, 64
  %v2548 = vpop.permute.xlu0 %2547
  %2549 = vrot.lane.b32.xlu0 %v2528, 64
  %v2550 = vpop.permute.xlu0 %2549
  %2551 = vrot.lane.b32.xlu0 %v2529, 64
  %v2552 = vpop.permute.xlu0 %2551
  %2553 = vrot.lane.b32.xlu0 %v2530, 64
  %v2554 = vpop.permute.xlu0 %2553
  %2555 = vrot.lane.b32.xlu0 %v2531, 64
  %v2556 = vpop.permute.xlu0 %2555
  %2557 = vrot.lane.b32.xlu0 %v2532, 64
  %v2558 = vpop.permute.xlu0 %2557
  %2559 = vrot.lane.b32.xlu0 %v2533, 64
  %v2560 = vpop.permute.xlu0 %2559
  %v2561 = vsel %vm1075, %v2544, %v2546
  %v2562 = vsel %vm1075, %v2546, %v2548
  %v2563 = vsel %vm1075, %v2548, %v2550
  %v2564 = vsel %vm1075, %v2550, %v2552
  %v2565 = vsel %vm1075, %v2552, %v2554
  %v2566 = vsel %vm1075, %v2554, %v2556
  %v2567 = vsel %vm1075, %v2556, %v2558
  %v2568 = vsel %vm1075, %v2558, %v2560
  %v2578 = vadd.f32 %v2512, %v2544
  %v2579 = vadd.f32 %v2513, %v2561
  %v2580 = vadd.f32 %v2514, %v2562
  %v2581 = vadd.f32 %v2515, %v2563
  %v2582 = vadd.f32 %v2516, %v2564
  %v2583 = vadd.f32 %v2517, %v2565
  %v2584 = vadd.f32 %v2518, %v2566
  %v2585 = vadd.f32 %v2519, %v2567
  %v2586 = vadd.f32 %v2520, %v2568
  %2587 = vset.pattern.permute.xlu0 16
  %2588 = vperm.xlu0 %2587, %v38
  %v2589 = vpop.permute.xlu0 %2588
  %v2591 = vmul.f32 %v2589, %v1115
  %v2592 = vmul.f32 %v2589, %v1119
  %v2593 = vmul.f32 %v2589, %v1123
  %v2594 = vmul.f32 %v2589, %v1127
  %v2595 = vmul.f32 %v2589, %v1131
  %v2596 = vmul.f32 %v2589, %v1135
  %v2597 = vmul.f32 %v2589, %v1139
  %v2598 = vmul.f32 %v2589, %v1143
  %v2599 = vmul.f32 %v2589, %v1147
  %2609 = vrot.lane.b32.xlu0 %v2591, 64
  %v2610 = vpop.permute.xlu0 %2609
  %2611 = vrot.lane.b32.xlu0 %v2592, 64
  %v2612 = vpop.permute.xlu0 %2611
  %2613 = vrot.lane.b32.xlu0 %v2593, 64
  %v2614 = vpop.permute.xlu0 %2613
  %2615 = vrot.lane.b32.xlu0 %v2594, 64
  %v2616 = vpop.permute.xlu0 %2615
  %2617 = vrot.lane.b32.xlu0 %v2595, 64
  %v2618 = vpop.permute.xlu0 %2617
  %2619 = vrot.lane.b32.xlu0 %v2596, 64
  %v2620 = vpop.permute.xlu0 %2619
  %2621 = vrot.lane.b32.xlu0 %v2597, 64
  %v2622 = vpop.permute.xlu0 %2621
  %2623 = vrot.lane.b32.xlu0 %v2598, 64
  %v2624 = vpop.permute.xlu0 %2623
  %2625 = vrot.lane.b32.xlu0 %v2599, 64
  %v2626 = vpop.permute.xlu0 %2625
  %v2627 = vsel %vm1075, %v2610, %v2612
  %v2628 = vsel %vm1075, %v2612, %v2614
  %v2629 = vsel %vm1075, %v2614, %v2616
  %v2630 = vsel %vm1075, %v2616, %v2618
  %v2631 = vsel %vm1075, %v2618, %v2620
  %v2632 = vsel %vm1075, %v2620, %v2622
  %v2633 = vsel %vm1075, %v2622, %v2624
  %v2634 = vsel %vm1075, %v2624, %v2626
  %v2644 = vadd.f32 %v2578, %v2610
  %v2645 = vadd.f32 %v2579, %v2627
  %v2646 = vadd.f32 %v2580, %v2628
  %v2647 = vadd.f32 %v2581, %v2629
  %v2648 = vadd.f32 %v2582, %v2630
  %v2649 = vadd.f32 %v2583, %v2631
  %v2650 = vadd.f32 %v2584, %v2632
  %v2651 = vadd.f32 %v2585, %v2633
  %v2652 = vadd.f32 %v2586, %v2634
  %2653 = vset.pattern.permute.xlu0 25
  %2654 = vperm.xlu0 %2653, %v38
  %v2655 = vpop.permute.xlu0 %2654
  %v2657 = vmul.f32 %v2655, %v1232
  %v2658 = vmul.f32 %v2655, %v1236
  %v2659 = vmul.f32 %v2655, %v1240
  %v2660 = vmul.f32 %v2655, %v1244
  %v2661 = vmul.f32 %v2655, %v1248
  %v2662 = vmul.f32 %v2655, %v1252
  %v2663 = vmul.f32 %v2655, %v1256
  %v2664 = vmul.f32 %v2655, %v1260
  %v2665 = vmul.f32 %v2655, %v1264
  %2675 = vrot.lane.b32.xlu0 %v2657, 64
  %v2676 = vpop.permute.xlu0 %2675
  %2677 = vrot.lane.b32.xlu0 %v2658, 64
  %v2678 = vpop.permute.xlu0 %2677
  %2679 = vrot.lane.b32.xlu0 %v2659, 64
  %v2680 = vpop.permute.xlu0 %2679
  %2681 = vrot.lane.b32.xlu0 %v2660, 64
  %v2682 = vpop.permute.xlu0 %2681
  %2683 = vrot.lane.b32.xlu0 %v2661, 64
  %v2684 = vpop.permute.xlu0 %2683
  %2685 = vrot.lane.b32.xlu0 %v2662, 64
  %v2686 = vpop.permute.xlu0 %2685
  %2687 = vrot.lane.b32.xlu0 %v2663, 64
  %v2688 = vpop.permute.xlu0 %2687
  %2689 = vrot.lane.b32.xlu0 %v2664, 64
  %v2690 = vpop.permute.xlu0 %2689
  %2691 = vrot.lane.b32.xlu0 %v2665, 64
  %v2692 = vpop.permute.xlu0 %2691
  %v2693 = vsel %vm1075, %v2676, %v2678
  %v2694 = vsel %vm1075, %v2678, %v2680
  %v2695 = vsel %vm1075, %v2680, %v2682
  %v2696 = vsel %vm1075, %v2682, %v2684
  %v2697 = vsel %vm1075, %v2684, %v2686
  %v2698 = vsel %vm1075, %v2686, %v2688
  %v2699 = vsel %vm1075, %v2688, %v2690
  %v2700 = vsel %vm1075, %v2690, %v2692
  %v2710 = vadd.f32 %v2644, %v2676
  %v2711 = vadd.f32 %v2645, %v2693
  %v2712 = vadd.f32 %v2646, %v2694
  %v2713 = vadd.f32 %v2647, %v2695
  %v2714 = vadd.f32 %v2648, %v2696
  %v2715 = vadd.f32 %v2649, %v2697
  %v2716 = vadd.f32 %v2650, %v2698
  %v2717 = vadd.f32 %v2651, %v2699
  %v2718 = vadd.f32 %v2652, %v2700
  %2719 = vset.pattern.permute.xlu0 34
  %2720 = vperm.xlu0 %2719, %v38
  %v2721 = vpop.permute.xlu0 %2720
  %v2723 = vmul.f32 %v2721, %v1349
  %v2724 = vmul.f32 %v2721, %v1353
  %v2725 = vmul.f32 %v2721, %v1357
  %v2726 = vmul.f32 %v2721, %v1361
  %v2727 = vmul.f32 %v2721, %v1365
  %v2728 = vmul.f32 %v2721, %v1369
  %v2729 = vmul.f32 %v2721, %v1373
  %v2730 = vmul.f32 %v2721, %v1377
  %v2731 = vmul.f32 %v2721, %v1381
  %2741 = vrot.lane.b32.xlu0 %v2723, 64
  %v2742 = vpop.permute.xlu0 %2741
  %2743 = vrot.lane.b32.xlu0 %v2724, 64
  %v2744 = vpop.permute.xlu0 %2743
  %2745 = vrot.lane.b32.xlu0 %v2725, 64
  %v2746 = vpop.permute.xlu0 %2745
  %2747 = vrot.lane.b32.xlu0 %v2726, 64
  %v2748 = vpop.permute.xlu0 %2747
  %2749 = vrot.lane.b32.xlu0 %v2727, 64
  %v2750 = vpop.permute.xlu0 %2749
  %2751 = vrot.lane.b32.xlu0 %v2728, 64
  %v2752 = vpop.permute.xlu0 %2751
  %2753 = vrot.lane.b32.xlu0 %v2729, 64
  %v2754 = vpop.permute.xlu0 %2753
  %2755 = vrot.lane.b32.xlu0 %v2730, 64
  %v2756 = vpop.permute.xlu0 %2755
  %2757 = vrot.lane.b32.xlu0 %v2731, 64
  %v2758 = vpop.permute.xlu0 %2757
  %v2759 = vsel %vm1075, %v2742, %v2744
  %v2760 = vsel %vm1075, %v2744, %v2746
  %v2761 = vsel %vm1075, %v2746, %v2748
  %v2762 = vsel %vm1075, %v2748, %v2750
  %v2763 = vsel %vm1075, %v2750, %v2752
  %v2764 = vsel %vm1075, %v2752, %v2754
  %v2765 = vsel %vm1075, %v2754, %v2756
  %v2766 = vsel %vm1075, %v2756, %v2758
  %v2776 = vadd.f32 %v2710, %v2742
  %v2777 = vadd.f32 %v2711, %v2759
  %v2778 = vadd.f32 %v2712, %v2760
  %v2779 = vadd.f32 %v2713, %v2761
  %v2780 = vadd.f32 %v2714, %v2762
  %v2781 = vadd.f32 %v2715, %v2763
  %v2782 = vadd.f32 %v2716, %v2764
  %v2783 = vadd.f32 %v2717, %v2765
  %v2784 = vadd.f32 %v2718, %v2766
  %2785 = vset.pattern.permute.xlu0 43
  %2786 = vperm.xlu0 %2785, %v38
  %v2787 = vpop.permute.xlu0 %2786
  %v2789 = vmul.f32 %v2787, %v1466
  %v2790 = vmul.f32 %v2787, %v1470
  %v2791 = vmul.f32 %v2787, %v1474
  %v2792 = vmul.f32 %v2787, %v1478
  %v2793 = vmul.f32 %v2787, %v1482
  %v2794 = vmul.f32 %v2787, %v1486
  %v2795 = vmul.f32 %v2787, %v1490
  %v2796 = vmul.f32 %v2787, %v1494
  %v2797 = vmul.f32 %v2787, %v1498
  %2807 = vrot.lane.b32.xlu0 %v2789, 64
  %v2808 = vpop.permute.xlu0 %2807
  %2809 = vrot.lane.b32.xlu0 %v2790, 64
  %v2810 = vpop.permute.xlu0 %2809
  %2811 = vrot.lane.b32.xlu0 %v2791, 64
  %v2812 = vpop.permute.xlu0 %2811
  %2813 = vrot.lane.b32.xlu0 %v2792, 64
  %v2814 = vpop.permute.xlu0 %2813
  %2815 = vrot.lane.b32.xlu0 %v2793, 64
  %v2816 = vpop.permute.xlu0 %2815
  %2817 = vrot.lane.b32.xlu0 %v2794, 64
  %v2818 = vpop.permute.xlu0 %2817
  %2819 = vrot.lane.b32.xlu0 %v2795, 64
  %v2820 = vpop.permute.xlu0 %2819
  %2821 = vrot.lane.b32.xlu0 %v2796, 64
  %v2822 = vpop.permute.xlu0 %2821
  %2823 = vrot.lane.b32.xlu0 %v2797, 64
  %v2824 = vpop.permute.xlu0 %2823
  %v2825 = vsel %vm1075, %v2808, %v2810
  %v2826 = vsel %vm1075, %v2810, %v2812
  %v2827 = vsel %vm1075, %v2812, %v2814
  %v2828 = vsel %vm1075, %v2814, %v2816
  %v2829 = vsel %vm1075, %v2816, %v2818
  %v2830 = vsel %vm1075, %v2818, %v2820
  %v2831 = vsel %vm1075, %v2820, %v2822
  %v2832 = vsel %vm1075, %v2822, %v2824
  %v2842 = vadd.f32 %v2776, %v2808
  %v2843 = vadd.f32 %v2777, %v2825
  %v2844 = vadd.f32 %v2778, %v2826
  %v2845 = vadd.f32 %v2779, %v2827
  %v2846 = vadd.f32 %v2780, %v2828
  %v2847 = vadd.f32 %v2781, %v2829
  %v2848 = vadd.f32 %v2782, %v2830
  %v2849 = vadd.f32 %v2783, %v2831
  %v2850 = vadd.f32 %v2784, %v2832
  %2851 = vset.pattern.permute.xlu0 52
  %2852 = vperm.xlu0 %2851, %v38
  %v2853 = vpop.permute.xlu0 %2852
  %v2855 = vmul.f32 %v2853, %v1583
  %v2856 = vmul.f32 %v2853, %v1587
  %v2857 = vmul.f32 %v2853, %v1591
  %v2858 = vmul.f32 %v2853, %v1595
  %v2859 = vmul.f32 %v2853, %v1599
  %v2860 = vmul.f32 %v2853, %v1603
  %v2861 = vmul.f32 %v2853, %v1607
  %v2862 = vmul.f32 %v2853, %v1611
  %v2863 = vmul.f32 %v2853, %v1615
  %2873 = vrot.lane.b32.xlu0 %v2855, 64
  %v2874 = vpop.permute.xlu0 %2873
  %2875 = vrot.lane.b32.xlu0 %v2856, 64
  %v2876 = vpop.permute.xlu0 %2875
  %2877 = vrot.lane.b32.xlu0 %v2857, 64
  %v2878 = vpop.permute.xlu0 %2877
  %2879 = vrot.lane.b32.xlu0 %v2858, 64
  %v2880 = vpop.permute.xlu0 %2879
  %2881 = vrot.lane.b32.xlu0 %v2859, 64
  %v2882 = vpop.permute.xlu0 %2881
  %2883 = vrot.lane.b32.xlu0 %v2860, 64
  %v2884 = vpop.permute.xlu0 %2883
  %2885 = vrot.lane.b32.xlu0 %v2861, 64
  %v2886 = vpop.permute.xlu0 %2885
  %2887 = vrot.lane.b32.xlu0 %v2862, 64
  %v2888 = vpop.permute.xlu0 %2887
  %2889 = vrot.lane.b32.xlu0 %v2863, 64
  %v2890 = vpop.permute.xlu0 %2889
  %v2891 = vsel %vm1075, %v2874, %v2876
  %v2892 = vsel %vm1075, %v2876, %v2878
  %v2893 = vsel %vm1075, %v2878, %v2880
  %v2894 = vsel %vm1075, %v2880, %v2882
  %v2895 = vsel %vm1075, %v2882, %v2884
  %v2896 = vsel %vm1075, %v2884, %v2886
  %v2897 = vsel %vm1075, %v2886, %v2888
  %v2898 = vsel %vm1075, %v2888, %v2890
  %v2908 = vadd.f32 %v2842, %v2874
  %v2909 = vadd.f32 %v2843, %v2891
  %v2910 = vadd.f32 %v2844, %v2892
  %v2911 = vadd.f32 %v2845, %v2893
  %v2912 = vadd.f32 %v2846, %v2894
  %v2913 = vadd.f32 %v2847, %v2895
  %v2914 = vadd.f32 %v2848, %v2896
  %v2915 = vadd.f32 %v2849, %v2897
  %v2916 = vadd.f32 %v2850, %v2898
  %2926 = vrot.lane.b32.xlu0 %v2908, 32
  %v2927 = vpop.permute.xlu0 %2926
  %2928 = vrot.lane.b32.xlu0 %v2909, 32
  %v2929 = vpop.permute.xlu0 %2928
  %2930 = vrot.lane.b32.xlu0 %v2910, 32
  %v2931 = vpop.permute.xlu0 %2930
  %2932 = vrot.lane.b32.xlu0 %v2911, 32
  %v2933 = vpop.permute.xlu0 %2932
  %2934 = vrot.lane.b32.xlu0 %v2912, 32
  %v2935 = vpop.permute.xlu0 %2934
  %2936 = vrot.lane.b32.xlu0 %v2913, 32
  %v2937 = vpop.permute.xlu0 %2936
  %2938 = vrot.lane.b32.xlu0 %v2914, 32
  %v2939 = vpop.permute.xlu0 %2938
  %2940 = vrot.lane.b32.xlu0 %v2915, 32
  %v2941 = vpop.permute.xlu0 %2940
  %2942 = vrot.lane.b32.xlu0 %v2916, 32
  %v2943 = vpop.permute.xlu0 %2942
  %vm2944 = vcmask 261120
  %v2945 = vsel %vm2944, %v2927, %v2929
  %v2946 = vsel %vm2944, %v2929, %v2931
  %v2947 = vsel %vm2944, %v2931, %v2933
  %v2948 = vsel %vm2944, %v2933, %v2935
  %v2949 = vsel %vm2944, %v2935, %v2937
  %v2950 = vsel %vm2944, %v2937, %v2939
  %v2951 = vsel %vm2944, %v2939, %v2941
  %v2952 = vsel %vm2944, %v2941, %v2943
  %v2961 = vadd.f32 %v1763, %v2945
  %v2962 = vadd.f32 %v1764, %v2946
  %v2963 = vadd.f32 %v1765, %v2947
  %v2964 = vadd.f32 %v1766, %v2948
  %v2965 = vadd.f32 %v1767, %v2949
  %v2966 = vadd.f32 %v1768, %v2950
  %v2967 = vadd.f32 %v1769, %v2951
  %v2968 = vadd.f32 %v1770, %v2952
  %2969 = vset.pattern.permute.xlu0 2
  %2970 = vperm.xlu0 %2969, %v38
  %v2971 = vpop.permute.xlu0 %2970
  %v2973 = vmul.f32 %v2971, %v163
  %v2974 = vmul.f32 %v2971, %v167
  %v2975 = vmul.f32 %v2971, %v171
  %v2976 = vmul.f32 %v2971, %v175
  %v2977 = vmul.f32 %v2971, %v179
  %v2978 = vmul.f32 %v2971, %v183
  %v2979 = vmul.f32 %v2971, %v187
  %v2980 = vmul.f32 %v2971, %v191
  %v2981 = vmul.f32 %v2971, %v195
  %v2982 = vadd.f32 %v2973, 0.0
  %v2983 = vadd.f32 %v2974, 0.0
  %v2984 = vadd.f32 %v2975, 0.0
  %v2985 = vadd.f32 %v2976, 0.0
  %v2986 = vadd.f32 %v2977, 0.0
  %v2987 = vadd.f32 %v2978, 0.0
  %v2988 = vadd.f32 %v2979, 0.0
  %v2989 = vadd.f32 %v2980, 0.0
  %v2990 = vadd.f32 %v2981, 0.0
  %2991 = vset.pattern.permute.xlu0 11
  %2992 = vperm.xlu0 %2991, %v38
  %v2993 = vpop.permute.xlu0 %2992
  %v2995 = vmul.f32 %v2993, %v236
  %v2996 = vmul.f32 %v2993, %v240
  %v2997 = vmul.f32 %v2993, %v244
  %v2998 = vmul.f32 %v2993, %v248
  %v2999 = vmul.f32 %v2993, %v252
  %v3000 = vmul.f32 %v2993, %v256
  %v3001 = vmul.f32 %v2993, %v260
  %v3002 = vmul.f32 %v2993, %v264
  %v3003 = vmul.f32 %v2993, %v268
  %v3004 = vadd.f32 %v2982, %v2995
  %v3005 = vadd.f32 %v2983, %v2996
  %v3006 = vadd.f32 %v2984, %v2997
  %v3007 = vadd.f32 %v2985, %v2998
  %v3008 = vadd.f32 %v2986, %v2999
  %v3009 = vadd.f32 %v2987, %v3000
  %v3010 = vadd.f32 %v2988, %v3001
  %v3011 = vadd.f32 %v2989, %v3002
  %v3012 = vadd.f32 %v2990, %v3003
  %3013 = vset.pattern.permute.xlu0 20
  %3014 = vperm.xlu0 %3013, %v38
  %v3015 = vpop.permute.xlu0 %3014
  %v3017 = vmul.f32 %v3015, %v309
  %v3018 = vmul.f32 %v3015, %v313
  %v3019 = vmul.f32 %v3015, %v317
  %v3020 = vmul.f32 %v3015, %v321
  %v3021 = vmul.f32 %v3015, %v325
  %v3022 = vmul.f32 %v3015, %v329
  %v3023 = vmul.f32 %v3015, %v333
  %v3024 = vmul.f32 %v3015, %v337
  %v3025 = vmul.f32 %v3015, %v341
  %v3026 = vadd.f32 %v3004, %v3017
  %v3027 = vadd.f32 %v3005, %v3018
  %v3028 = vadd.f32 %v3006, %v3019
  %v3029 = vadd.f32 %v3007, %v3020
  %v3030 = vadd.f32 %v3008, %v3021
  %v3031 = vadd.f32 %v3009, %v3022
  %v3032 = vadd.f32 %v3010, %v3023
  %v3033 = vadd.f32 %v3011, %v3024
  %v3034 = vadd.f32 %v3012, %v3025
  %3035 = vset.pattern.permute.xlu0 29
  %3036 = vperm.xlu0 %3035, %v38
  %v3037 = vpop.permute.xlu0 %3036
  %v3039 = vmul.f32 %v3037, %v381
  %v3040 = vmul.f32 %v3037, %v385
  %v3041 = vmul.f32 %v3037, %v389
  %v3042 = vmul.f32 %v3037, %v393
  %v3043 = vmul.f32 %v3037, %v397
  %v3044 = vmul.f32 %v3037, %v401
  %v3045 = vmul.f32 %v3037, %v405
  %v3046 = vmul.f32 %v3037, %v409
  %v3047 = vmul.f32 %v3037, %v413
  %v3048 = vadd.f32 %v3026, %v3039
  %v3049 = vadd.f32 %v3027, %v3040
  %v3050 = vadd.f32 %v3028, %v3041
  %v3051 = vadd.f32 %v3029, %v3042
  %v3052 = vadd.f32 %v3030, %v3043
  %v3053 = vadd.f32 %v3031, %v3044
  %v3054 = vadd.f32 %v3032, %v3045
  %v3055 = vadd.f32 %v3033, %v3046
  %v3056 = vadd.f32 %v3034, %v3047
  %3057 = vset.pattern.permute.xlu0 38
  %3058 = vperm.xlu0 %3057, %v38
  %v3059 = vpop.permute.xlu0 %3058
  %v3061 = vmul.f32 %v3059, %v454
  %v3062 = vmul.f32 %v3059, %v458
  %v3063 = vmul.f32 %v3059, %v462
  %v3064 = vmul.f32 %v3059, %v466
  %v3065 = vmul.f32 %v3059, %v470
  %v3066 = vmul.f32 %v3059, %v474
  %v3067 = vmul.f32 %v3059, %v478
  %v3068 = vmul.f32 %v3059, %v482
  %v3069 = vmul.f32 %v3059, %v486
  %v3070 = vadd.f32 %v3048, %v3061
  %v3071 = vadd.f32 %v3049, %v3062
  %v3072 = vadd.f32 %v3050, %v3063
  %v3073 = vadd.f32 %v3051, %v3064
  %v3074 = vadd.f32 %v3052, %v3065
  %v3075 = vadd.f32 %v3053, %v3066
  %v3076 = vadd.f32 %v3054, %v3067
  %v3077 = vadd.f32 %v3055, %v3068
  %v3078 = vadd.f32 %v3056, %v3069
  %3079 = vset.pattern.permute.xlu0 47
  %3080 = vperm.xlu0 %3079, %v38
  %v3081 = vpop.permute.xlu0 %3080
  %v3083 = vmul.f32 %v3081, %v527
  %v3084 = vmul.f32 %v3081, %v531
  %v3085 = vmul.f32 %v3081, %v535
  %v3086 = vmul.f32 %v3081, %v539
  %v3087 = vmul.f32 %v3081, %v543
  %v3088 = vmul.f32 %v3081, %v547
  %v3089 = vmul.f32 %v3081, %v551
  %v3090 = vmul.f32 %v3081, %v555
  %v3091 = vmul.f32 %v3081, %v559
  %v3092 = vadd.f32 %v3070, %v3083
  %v3093 = vadd.f32 %v3071, %v3084
  %v3094 = vadd.f32 %v3072, %v3085
  %v3095 = vadd.f32 %v3073, %v3086
  %v3096 = vadd.f32 %v3074, %v3087
  %v3097 = vadd.f32 %v3075, %v3088
  %v3098 = vadd.f32 %v3076, %v3089
  %v3099 = vadd.f32 %v3077, %v3090
  %v3100 = vadd.f32 %v3078, %v3091
  %3101 = vset.pattern.permute.xlu0 5
  %3102 = vperm.xlu0 %3101, %v38
  %v3103 = vpop.permute.xlu0 %3102
  %v3105 = vmul.f32 %v3103, %v997
  %v3106 = vmul.f32 %v3103, %v1001
  %v3107 = vmul.f32 %v3103, %v1005
  %v3108 = vmul.f32 %v3103, %v1009
  %v3109 = vmul.f32 %v3103, %v1013
  %v3110 = vmul.f32 %v3103, %v1017
  %v3111 = vmul.f32 %v3103, %v1021
  %v3112 = vmul.f32 %v3103, %v1025
  %v3113 = vmul.f32 %v3103, %v1029
  %3123 = vrot.lane.b32.xlu0 %v3105, 96
  %v3124 = vpop.permute.xlu0 %3123
  %3125 = vrot.lane.b32.xlu0 %v3106, 96
  %v3126 = vpop.permute.xlu0 %3125
  %3127 = vrot.lane.b32.xlu0 %v3107, 96
  %v3128 = vpop.permute.xlu0 %3127
  %3129 = vrot.lane.b32.xlu0 %v3108, 96
  %v3130 = vpop.permute.xlu0 %3129
  %3131 = vrot.lane.b32.xlu0 %v3109, 96
  %v3132 = vpop.permute.xlu0 %3131
  %3133 = vrot.lane.b32.xlu0 %v3110, 96
  %v3134 = vpop.permute.xlu0 %3133
  %3135 = vrot.lane.b32.xlu0 %v3111, 96
  %v3136 = vpop.permute.xlu0 %3135
  %3137 = vrot.lane.b32.xlu0 %v3112, 96
  %v3138 = vpop.permute.xlu0 %3137
  %3139 = vrot.lane.b32.xlu0 %v3113, 96
  %v3140 = vpop.permute.xlu0 %3139
  %v3141 = vsel %vm627, %v3124, %v3126
  %v3142 = vsel %vm627, %v3126, %v3128
  %v3143 = vsel %vm627, %v3128, %v3130
  %v3144 = vsel %vm627, %v3130, %v3132
  %v3145 = vsel %vm627, %v3132, %v3134
  %v3146 = vsel %vm627, %v3134, %v3136
  %v3147 = vsel %vm627, %v3136, %v3138
  %v3148 = vsel %vm627, %v3138, %v3140
  %v3158 = vadd.f32 %v3092, %v3124
  %v3159 = vadd.f32 %v3093, %v3141
  %v3160 = vadd.f32 %v3094, %v3142
  %v3161 = vadd.f32 %v3095, %v3143
  %v3162 = vadd.f32 %v3096, %v3144
  %v3163 = vadd.f32 %v3097, %v3145
  %v3164 = vadd.f32 %v3098, %v3146
  %v3165 = vadd.f32 %v3099, %v3147
  %v3166 = vadd.f32 %v3100, %v3148
  %3167 = vset.pattern.permute.xlu0 14
  %3168 = vperm.xlu0 %3167, %v38
  %v3169 = vpop.permute.xlu0 %3168
  %v3171 = vmul.f32 %v3169, %v1115
  %v3172 = vmul.f32 %v3169, %v1119
  %v3173 = vmul.f32 %v3169, %v1123
  %v3174 = vmul.f32 %v3169, %v1127
  %v3175 = vmul.f32 %v3169, %v1131
  %v3176 = vmul.f32 %v3169, %v1135
  %v3177 = vmul.f32 %v3169, %v1139
  %v3178 = vmul.f32 %v3169, %v1143
  %v3179 = vmul.f32 %v3169, %v1147
  %3189 = vrot.lane.b32.xlu0 %v3171, 96
  %v3190 = vpop.permute.xlu0 %3189
  %3191 = vrot.lane.b32.xlu0 %v3172, 96
  %v3192 = vpop.permute.xlu0 %3191
  %3193 = vrot.lane.b32.xlu0 %v3173, 96
  %v3194 = vpop.permute.xlu0 %3193
  %3195 = vrot.lane.b32.xlu0 %v3174, 96
  %v3196 = vpop.permute.xlu0 %3195
  %3197 = vrot.lane.b32.xlu0 %v3175, 96
  %v3198 = vpop.permute.xlu0 %3197
  %3199 = vrot.lane.b32.xlu0 %v3176, 96
  %v3200 = vpop.permute.xlu0 %3199
  %3201 = vrot.lane.b32.xlu0 %v3177, 96
  %v3202 = vpop.permute.xlu0 %3201
  %3203 = vrot.lane.b32.xlu0 %v3178, 96
  %v3204 = vpop.permute.xlu0 %3203
  %3205 = vrot.lane.b32.xlu0 %v3179, 96
  %v3206 = vpop.permute.xlu0 %3205
  %v3207 = vsel %vm627, %v3190, %v3192
  %v3208 = vsel %vm627, %v3192, %v3194
  %v3209 = vsel %vm627, %v3194, %v3196
  %v3210 = vsel %vm627, %v3196, %v3198
  %v3211 = vsel %vm627, %v3198, %v3200
  %v3212 = vsel %vm627, %v3200, %v3202
  %v3213 = vsel %vm627, %v3202, %v3204
  %v3214 = vsel %vm627, %v3204, %v3206
  %v3224 = vadd.f32 %v3158, %v3190
  %v3225 = vadd.f32 %v3159, %v3207
  %v3226 = vadd.f32 %v3160, %v3208
  %v3227 = vadd.f32 %v3161, %v3209
  %v3228 = vadd.f32 %v3162, %v3210
  %v3229 = vadd.f32 %v3163, %v3211
  %v3230 = vadd.f32 %v3164, %v3212
  %v3231 = vadd.f32 %v3165, %v3213
  %v3232 = vadd.f32 %v3166, %v3214
  %3233 = vset.pattern.permute.xlu0 23
  %3234 = vperm.xlu0 %3233, %v38
  %v3235 = vpop.permute.xlu0 %3234
  %v3237 = vmul.f32 %v3235, %v1232
  %v3238 = vmul.f32 %v3235, %v1236
  %v3239 = vmul.f32 %v3235, %v1240
  %v3240 = vmul.f32 %v3235, %v1244
  %v3241 = vmul.f32 %v3235, %v1248
  %v3242 = vmul.f32 %v3235, %v1252
  %v3243 = vmul.f32 %v3235, %v1256
  %v3244 = vmul.f32 %v3235, %v1260
  %v3245 = vmul.f32 %v3235, %v1264
  %3255 = vrot.lane.b32.xlu0 %v3237, 96
  %v3256 = vpop.permute.xlu0 %3255
  %3257 = vrot.lane.b32.xlu0 %v3238, 96
  %v3258 = vpop.permute.xlu0 %3257
  %3259 = vrot.lane.b32.xlu0 %v3239, 96
  %v3260 = vpop.permute.xlu0 %3259
  %3261 = vrot.lane.b32.xlu0 %v3240, 96
  %v3262 = vpop.permute.xlu0 %3261
  %3263 = vrot.lane.b32.xlu0 %v3241, 96
  %v3264 = vpop.permute.xlu0 %3263
  %3265 = vrot.lane.b32.xlu0 %v3242, 96
  %v3266 = vpop.permute.xlu0 %3265
  %3267 = vrot.lane.b32.xlu0 %v3243, 96
  %v3268 = vpop.permute.xlu0 %3267
  %3269 = vrot.lane.b32.xlu0 %v3244, 96
  %v3270 = vpop.permute.xlu0 %3269
  %3271 = vrot.lane.b32.xlu0 %v3245, 96
  %v3272 = vpop.permute.xlu0 %3271
  %v3273 = vsel %vm627, %v3256, %v3258
  %v3274 = vsel %vm627, %v3258, %v3260
  %v3275 = vsel %vm627, %v3260, %v3262
  %v3276 = vsel %vm627, %v3262, %v3264
  %v3277 = vsel %vm627, %v3264, %v3266
  %v3278 = vsel %vm627, %v3266, %v3268
  %v3279 = vsel %vm627, %v3268, %v3270
  %v3280 = vsel %vm627, %v3270, %v3272
  %v3290 = vadd.f32 %v3224, %v3256
  %v3291 = vadd.f32 %v3225, %v3273
  %v3292 = vadd.f32 %v3226, %v3274
  %v3293 = vadd.f32 %v3227, %v3275
  %v3294 = vadd.f32 %v3228, %v3276
  %v3295 = vadd.f32 %v3229, %v3277
  %v3296 = vadd.f32 %v3230, %v3278
  %v3297 = vadd.f32 %v3231, %v3279
  %v3298 = vadd.f32 %v3232, %v3280
  %3299 = vset.pattern.permute.xlu0 32
  %3300 = vperm.xlu0 %3299, %v38
  %v3301 = vpop.permute.xlu0 %3300
  %v3303 = vmul.f32 %v3301, %v1349
  %v3304 = vmul.f32 %v3301, %v1353
  %v3305 = vmul.f32 %v3301, %v1357
  %v3306 = vmul.f32 %v3301, %v1361
  %v3307 = vmul.f32 %v3301, %v1365
  %v3308 = vmul.f32 %v3301, %v1369
  %v3309 = vmul.f32 %v3301, %v1373
  %v3310 = vmul.f32 %v3301, %v1377
  %v3311 = vmul.f32 %v3301, %v1381
  %3321 = vrot.lane.b32.xlu0 %v3303, 96
  %v3322 = vpop.permute.xlu0 %3321
  %3323 = vrot.lane.b32.xlu0 %v3304, 96
  %v3324 = vpop.permute.xlu0 %3323
  %3325 = vrot.lane.b32.xlu0 %v3305, 96
  %v3326 = vpop.permute.xlu0 %3325
  %3327 = vrot.lane.b32.xlu0 %v3306, 96
  %v3328 = vpop.permute.xlu0 %3327
  %3329 = vrot.lane.b32.xlu0 %v3307, 96
  %v3330 = vpop.permute.xlu0 %3329
  %3331 = vrot.lane.b32.xlu0 %v3308, 96
  %v3332 = vpop.permute.xlu0 %3331
  %3333 = vrot.lane.b32.xlu0 %v3309, 96
  %v3334 = vpop.permute.xlu0 %3333
  %3335 = vrot.lane.b32.xlu0 %v3310, 96
  %v3336 = vpop.permute.xlu0 %3335
  %3337 = vrot.lane.b32.xlu0 %v3311, 96
  %v3338 = vpop.permute.xlu0 %3337
  %v3339 = vsel %vm627, %v3322, %v3324
  %v3340 = vsel %vm627, %v3324, %v3326
  %v3341 = vsel %vm627, %v3326, %v3328
  %v3342 = vsel %vm627, %v3328, %v3330
  %v3343 = vsel %vm627, %v3330, %v3332
  %v3344 = vsel %vm627, %v3332, %v3334
  %v3345 = vsel %vm627, %v3334, %v3336
  %v3346 = vsel %vm627, %v3336, %v3338
  %v3356 = vadd.f32 %v3290, %v3322
  %v3357 = vadd.f32 %v3291, %v3339
  %v3358 = vadd.f32 %v3292, %v3340
  %v3359 = vadd.f32 %v3293, %v3341
  %v3360 = vadd.f32 %v3294, %v3342
  %v3361 = vadd.f32 %v3295, %v3343
  %v3362 = vadd.f32 %v3296, %v3344
  %v3363 = vadd.f32 %v3297, %v3345
  %v3364 = vadd.f32 %v3298, %v3346
  %3365 = vset.pattern.permute.xlu0 41
  %3366 = vperm.xlu0 %3365, %v38
  %v3367 = vpop.permute.xlu0 %3366
  %v3369 = vmul.f32 %v3367, %v1466
  %v3370 = vmul.f32 %v3367, %v1470
  %v3371 = vmul.f32 %v3367, %v1474
  %v3372 = vmul.f32 %v3367, %v1478
  %v3373 = vmul.f32 %v3367, %v1482
  %v3374 = vmul.f32 %v3367, %v1486
  %v3375 = vmul.f32 %v3367, %v1490
  %v3376 = vmul.f32 %v3367, %v1494
  %v3377 = vmul.f32 %v3367, %v1498
  %3387 = vrot.lane.b32.xlu0 %v3369, 96
  %v3388 = vpop.permute.xlu0 %3387
  %3389 = vrot.lane.b32.xlu0 %v3370, 96
  %v3390 = vpop.permute.xlu0 %3389
  %3391 = vrot.lane.b32.xlu0 %v3371, 96
  %v3392 = vpop.permute.xlu0 %3391
  %3393 = vrot.lane.b32.xlu0 %v3372, 96
  %v3394 = vpop.permute.xlu0 %3393
  %3395 = vrot.lane.b32.xlu0 %v3373, 96
  %v3396 = vpop.permute.xlu0 %3395
  %3397 = vrot.lane.b32.xlu0 %v3374, 96
  %v3398 = vpop.permute.xlu0 %3397
  %3399 = vrot.lane.b32.xlu0 %v3375, 96
  %v3400 = vpop.permute.xlu0 %3399
  %3401 = vrot.lane.b32.xlu0 %v3376, 96
  %v3402 = vpop.permute.xlu0 %3401
  %3403 = vrot.lane.b32.xlu0 %v3377, 96
  %v3404 = vpop.permute.xlu0 %3403
  %v3405 = vsel %vm627, %v3388, %v3390
  %v3406 = vsel %vm627, %v3390, %v3392
  %v3407 = vsel %vm627, %v3392, %v3394
  %v3408 = vsel %vm627, %v3394, %v3396
  %v3409 = vsel %vm627, %v3396, %v3398
  %v3410 = vsel %vm627, %v3398, %v3400
  %v3411 = vsel %vm627, %v3400, %v3402
  %v3412 = vsel %vm627, %v3402, %v3404
  %v3422 = vadd.f32 %v3356, %v3388
  %v3423 = vadd.f32 %v3357, %v3405
  %v3424 = vadd.f32 %v3358, %v3406
  %v3425 = vadd.f32 %v3359, %v3407
  %v3426 = vadd.f32 %v3360, %v3408
  %v3427 = vadd.f32 %v3361, %v3409
  %v3428 = vadd.f32 %v3362, %v3410
  %v3429 = vadd.f32 %v3363, %v3411
  %v3430 = vadd.f32 %v3364, %v3412
  %3431 = vset.pattern.permute.xlu0 50
  %3432 = vperm.xlu0 %3431, %v38
  %v3433 = vpop.permute.xlu0 %3432
  %v3435 = vmul.f32 %v3433, %v1583
  %v3436 = vmul.f32 %v3433, %v1587
  %v3437 = vmul.f32 %v3433, %v1591
  %v3438 = vmul.f32 %v3433, %v1595
  %v3439 = vmul.f32 %v3433, %v1599
  %v3440 = vmul.f32 %v3433, %v1603
  %v3441 = vmul.f32 %v3433, %v1607
  %v3442 = vmul.f32 %v3433, %v1611
  %v3443 = vmul.f32 %v3433, %v1615
  %3453 = vrot.lane.b32.xlu0 %v3435, 96
  %v3454 = vpop.permute.xlu0 %3453
  %3455 = vrot.lane.b32.xlu0 %v3436, 96
  %v3456 = vpop.permute.xlu0 %3455
  %3457 = vrot.lane.b32.xlu0 %v3437, 96
  %v3458 = vpop.permute.xlu0 %3457
  %3459 = vrot.lane.b32.xlu0 %v3438, 96
  %v3460 = vpop.permute.xlu0 %3459
  %3461 = vrot.lane.b32.xlu0 %v3439, 96
  %v3462 = vpop.permute.xlu0 %3461
  %3463 = vrot.lane.b32.xlu0 %v3440, 96
  %v3464 = vpop.permute.xlu0 %3463
  %3465 = vrot.lane.b32.xlu0 %v3441, 96
  %v3466 = vpop.permute.xlu0 %3465
  %3467 = vrot.lane.b32.xlu0 %v3442, 96
  %v3468 = vpop.permute.xlu0 %3467
  %3469 = vrot.lane.b32.xlu0 %v3443, 96
  %v3470 = vpop.permute.xlu0 %3469
  %v3471 = vsel %vm627, %v3454, %v3456
  %v3472 = vsel %vm627, %v3456, %v3458
  %v3473 = vsel %vm627, %v3458, %v3460
  %v3474 = vsel %vm627, %v3460, %v3462
  %v3475 = vsel %vm627, %v3462, %v3464
  %v3476 = vsel %vm627, %v3464, %v3466
  %v3477 = vsel %vm627, %v3466, %v3468
  %v3478 = vsel %vm627, %v3468, %v3470
  %v3488 = vadd.f32 %v3422, %v3454
  %v3489 = vadd.f32 %v3423, %v3471
  %v3490 = vadd.f32 %v3424, %v3472
  %v3491 = vadd.f32 %v3425, %v3473
  %v3492 = vadd.f32 %v3426, %v3474
  %v3493 = vadd.f32 %v3427, %v3475
  %v3494 = vadd.f32 %v3428, %v3476
  %v3495 = vadd.f32 %v3429, %v3477
  %v3496 = vadd.f32 %v3430, %v3478
  %3497 = vset.pattern.permute.xlu0 8
  %3498 = vperm.xlu0 %3497, %v38
  %v3499 = vpop.permute.xlu0 %3498
  %v3501 = vmul.f32 %v3499, %v997
  %v3502 = vmul.f32 %v3499, %v1001
  %v3503 = vmul.f32 %v3499, %v1005
  %v3504 = vmul.f32 %v3499, %v1009
  %v3505 = vmul.f32 %v3499, %v1013
  %v3506 = vmul.f32 %v3499, %v1017
  %v3507 = vmul.f32 %v3499, %v1021
  %v3508 = vmul.f32 %v3499, %v1025
  %v3509 = vmul.f32 %v3499, %v1029
  %3519 = vrot.lane.b32.xlu0 %v3501, 64
  %v3520 = vpop.permute.xlu0 %3519
  %3521 = vrot.lane.b32.xlu0 %v3502, 64
  %v3522 = vpop.permute.xlu0 %3521
  %3523 = vrot.lane.b32.xlu0 %v3503, 64
  %v3524 = vpop.permute.xlu0 %3523
  %3525 = vrot.lane.b32.xlu0 %v3504, 64
  %v3526 = vpop.permute.xlu0 %3525
  %3527 = vrot.lane.b32.xlu0 %v3505, 64
  %v3528 = vpop.permute.xlu0 %3527
  %3529 = vrot.lane.b32.xlu0 %v3506, 64
  %v3530 = vpop.permute.xlu0 %3529
  %3531 = vrot.lane.b32.xlu0 %v3507, 64
  %v3532 = vpop.permute.xlu0 %3531
  %3533 = vrot.lane.b32.xlu0 %v3508, 64
  %v3534 = vpop.permute.xlu0 %3533
  %3535 = vrot.lane.b32.xlu0 %v3509, 64
  %v3536 = vpop.permute.xlu0 %3535
  %v3537 = vsel %vm1075, %v3520, %v3522
  %v3538 = vsel %vm1075, %v3522, %v3524
  %v3539 = vsel %vm1075, %v3524, %v3526
  %v3540 = vsel %vm1075, %v3526, %v3528
  %v3541 = vsel %vm1075, %v3528, %v3530
  %v3542 = vsel %vm1075, %v3530, %v3532
  %v3543 = vsel %vm1075, %v3532, %v3534
  %v3544 = vsel %vm1075, %v3534, %v3536
  %v3554 = vadd.f32 %v3488, %v3520
  %v3555 = vadd.f32 %v3489, %v3537
  %v3556 = vadd.f32 %v3490, %v3538
  %v3557 = vadd.f32 %v3491, %v3539
  %v3558 = vadd.f32 %v3492, %v3540
  %v3559 = vadd.f32 %v3493, %v3541
  %v3560 = vadd.f32 %v3494, %v3542
  %v3561 = vadd.f32 %v3495, %v3543
  %v3562 = vadd.f32 %v3496, %v3544
  %3563 = vset.pattern.permute.xlu0 17
  %3564 = vperm.xlu0 %3563, %v38
  %v3565 = vpop.permute.xlu0 %3564
  %v3567 = vmul.f32 %v3565, %v1115
  %v3568 = vmul.f32 %v3565, %v1119
  %v3569 = vmul.f32 %v3565, %v1123
  %v3570 = vmul.f32 %v3565, %v1127
  %v3571 = vmul.f32 %v3565, %v1131
  %v3572 = vmul.f32 %v3565, %v1135
  %v3573 = vmul.f32 %v3565, %v1139
  %v3574 = vmul.f32 %v3565, %v1143
  %v3575 = vmul.f32 %v3565, %v1147
  %3585 = vrot.lane.b32.xlu0 %v3567, 64
  %v3586 = vpop.permute.xlu0 %3585
  %3587 = vrot.lane.b32.xlu0 %v3568, 64
  %v3588 = vpop.permute.xlu0 %3587
  %3589 = vrot.lane.b32.xlu0 %v3569, 64
  %v3590 = vpop.permute.xlu0 %3589
  %3591 = vrot.lane.b32.xlu0 %v3570, 64
  %v3592 = vpop.permute.xlu0 %3591
  %3593 = vrot.lane.b32.xlu0 %v3571, 64
  %v3594 = vpop.permute.xlu0 %3593
  %3595 = vrot.lane.b32.xlu0 %v3572, 64
  %v3596 = vpop.permute.xlu0 %3595
  %3597 = vrot.lane.b32.xlu0 %v3573, 64
  %v3598 = vpop.permute.xlu0 %3597
  %3599 = vrot.lane.b32.xlu0 %v3574, 64
  %v3600 = vpop.permute.xlu0 %3599
  %3601 = vrot.lane.b32.xlu0 %v3575, 64
  %v3602 = vpop.permute.xlu0 %3601
  %v3603 = vsel %vm1075, %v3586, %v3588
  %v3604 = vsel %vm1075, %v3588, %v3590
  %v3605 = vsel %vm1075, %v3590, %v3592
  %v3606 = vsel %vm1075, %v3592, %v3594
  %v3607 = vsel %vm1075, %v3594, %v3596
  %v3608 = vsel %vm1075, %v3596, %v3598
  %v3609 = vsel %vm1075, %v3598, %v3600
  %v3610 = vsel %vm1075, %v3600, %v3602
  %v3620 = vadd.f32 %v3554, %v3586
  %v3621 = vadd.f32 %v3555, %v3603
  %v3622 = vadd.f32 %v3556, %v3604
  %v3623 = vadd.f32 %v3557, %v3605
  %v3624 = vadd.f32 %v3558, %v3606
  %v3625 = vadd.f32 %v3559, %v3607
  %v3626 = vadd.f32 %v3560, %v3608
  %v3627 = vadd.f32 %v3561, %v3609
  %v3628 = vadd.f32 %v3562, %v3610
  %3629 = vset.pattern.permute.xlu0 26
  %3630 = vperm.xlu0 %3629, %v38
  %v3631 = vpop.permute.xlu0 %3630
  %v3633 = vmul.f32 %v3631, %v1232
  %v3634 = vmul.f32 %v3631, %v1236
  %v3635 = vmul.f32 %v3631, %v1240
  %v3636 = vmul.f32 %v3631, %v1244
  %v3637 = vmul.f32 %v3631, %v1248
  %v3638 = vmul.f32 %v3631, %v1252
  %v3639 = vmul.f32 %v3631, %v1256
  %v3640 = vmul.f32 %v3631, %v1260
  %v3641 = vmul.f32 %v3631, %v1264
  %3651 = vrot.lane.b32.xlu0 %v3633, 64
  %v3652 = vpop.permute.xlu0 %3651
  %3653 = vrot.lane.b32.xlu0 %v3634, 64
  %v3654 = vpop.permute.xlu0 %3653
  %3655 = vrot.lane.b32.xlu0 %v3635, 64
  %v3656 = vpop.permute.xlu0 %3655
  %3657 = vrot.lane.b32.xlu0 %v3636, 64
  %v3658 = vpop.permute.xlu0 %3657
  %3659 = vrot.lane.b32.xlu0 %v3637, 64
  %v3660 = vpop.permute.xlu0 %3659
  %3661 = vrot.lane.b32.xlu0 %v3638, 64
  %v3662 = vpop.permute.xlu0 %3661
  %3663 = vrot.lane.b32.xlu0 %v3639, 64
  %v3664 = vpop.permute.xlu0 %3663
  %3665 = vrot.lane.b32.xlu0 %v3640, 64
  %v3666 = vpop.permute.xlu0 %3665
  %3667 = vrot.lane.b32.xlu0 %v3641, 64
  %v3668 = vpop.permute.xlu0 %3667
  %v3669 = vsel %vm1075, %v3652, %v3654
  %v3670 = vsel %vm1075, %v3654, %v3656
  %v3671 = vsel %vm1075, %v3656, %v3658
  %v3672 = vsel %vm1075, %v3658, %v3660
  %v3673 = vsel %vm1075, %v3660, %v3662
  %v3674 = vsel %vm1075, %v3662, %v3664
  %v3675 = vsel %vm1075, %v3664, %v3666
  %v3676 = vsel %vm1075, %v3666, %v3668
  %v3686 = vadd.f32 %v3620, %v3652
  %v3687 = vadd.f32 %v3621, %v3669
  %v3688 = vadd.f32 %v3622, %v3670
  %v3689 = vadd.f32 %v3623, %v3671
  %v3690 = vadd.f32 %v3624, %v3672
  %v3691 = vadd.f32 %v3625, %v3673
  %v3692 = vadd.f32 %v3626, %v3674
  %v3693 = vadd.f32 %v3627, %v3675
  %v3694 = vadd.f32 %v3628, %v3676
  %3695 = vset.pattern.permute.xlu0 35
  %3696 = vperm.xlu0 %3695, %v38
  %v3697 = vpop.permute.xlu0 %3696
  %v3699 = vmul.f32 %v3697, %v1349
  %v3700 = vmul.f32 %v3697, %v1353
  %v3701 = vmul.f32 %v3697, %v1357
  %v3702 = vmul.f32 %v3697, %v1361
  %v3703 = vmul.f32 %v3697, %v1365
  %v3704 = vmul.f32 %v3697, %v1369
  %v3705 = vmul.f32 %v3697, %v1373
  %v3706 = vmul.f32 %v3697, %v1377
  %v3707 = vmul.f32 %v3697, %v1381
  %3717 = vrot.lane.b32.xlu0 %v3699, 64
  %v3718 = vpop.permute.xlu0 %3717
  %3719 = vrot.lane.b32.xlu0 %v3700, 64
  %v3720 = vpop.permute.xlu0 %3719
  %3721 = vrot.lane.b32.xlu0 %v3701, 64
  %v3722 = vpop.permute.xlu0 %3721
  %3723 = vrot.lane.b32.xlu0 %v3702, 64
  %v3724 = vpop.permute.xlu0 %3723
  %3725 = vrot.lane.b32.xlu0 %v3703, 64
  %v3726 = vpop.permute.xlu0 %3725
  %3727 = vrot.lane.b32.xlu0 %v3704, 64
  %v3728 = vpop.permute.xlu0 %3727
  %3729 = vrot.lane.b32.xlu0 %v3705, 64
  %v3730 = vpop.permute.xlu0 %3729
  %3731 = vrot.lane.b32.xlu0 %v3706, 64
  %v3732 = vpop.permute.xlu0 %3731
  %3733 = vrot.lane.b32.xlu0 %v3707, 64
  %v3734 = vpop.permute.xlu0 %3733
  %v3735 = vsel %vm1075, %v3718, %v3720
  %v3736 = vsel %vm1075, %v3720, %v3722
  %v3737 = vsel %vm1075, %v3722, %v3724
  %v3738 = vsel %vm1075, %v3724, %v3726
  %v3739 = vsel %vm1075, %v3726, %v3728
  %v3740 = vsel %vm1075, %v3728, %v3730
  %v3741 = vsel %vm1075, %v3730, %v3732
  %v3742 = vsel %vm1075, %v3732, %v3734
  %v3752 = vadd.f32 %v3686, %v3718
  %v3753 = vadd.f32 %v3687, %v3735
  %v3754 = vadd.f32 %v3688, %v3736
  %v3755 = vadd.f32 %v3689, %v3737
  %v3756 = vadd.f32 %v3690, %v3738
  %v3757 = vadd.f32 %v3691, %v3739
  %v3758 = vadd.f32 %v3692, %v3740
  %v3759 = vadd.f32 %v3693, %v3741
  %v3760 = vadd.f32 %v3694, %v3742
  %3761 = vset.pattern.permute.xlu0 44
  %3762 = vperm.xlu0 %3761, %v38
  %v3763 = vpop.permute.xlu0 %3762
  %v3765 = vmul.f32 %v3763, %v1466
  %v3766 = vmul.f32 %v3763, %v1470
  %v3767 = vmul.f32 %v3763, %v1474
  %v3768 = vmul.f32 %v3763, %v1478
  %v3769 = vmul.f32 %v3763, %v1482
  %v3770 = vmul.f32 %v3763, %v1486
  %v3771 = vmul.f32 %v3763, %v1490
  %v3772 = vmul.f32 %v3763, %v1494
  %v3773 = vmul.f32 %v3763, %v1498
  %3783 = vrot.lane.b32.xlu0 %v3765, 64
  %v3784 = vpop.permute.xlu0 %3783
  %3785 = vrot.lane.b32.xlu0 %v3766, 64
  %v3786 = vpop.permute.xlu0 %3785
  %3787 = vrot.lane.b32.xlu0 %v3767, 64
  %v3788 = vpop.permute.xlu0 %3787
  %3789 = vrot.lane.b32.xlu0 %v3768, 64
  %v3790 = vpop.permute.xlu0 %3789
  %3791 = vrot.lane.b32.xlu0 %v3769, 64
  %v3792 = vpop.permute.xlu0 %3791
  %3793 = vrot.lane.b32.xlu0 %v3770, 64
  %v3794 = vpop.permute.xlu0 %3793
  %3795 = vrot.lane.b32.xlu0 %v3771, 64
  %v3796 = vpop.permute.xlu0 %3795
  %3797 = vrot.lane.b32.xlu0 %v3772, 64
  %v3798 = vpop.permute.xlu0 %3797
  %3799 = vrot.lane.b32.xlu0 %v3773, 64
  %v3800 = vpop.permute.xlu0 %3799
  %v3801 = vsel %vm1075, %v3784, %v3786
  %v3802 = vsel %vm1075, %v3786, %v3788
  %v3803 = vsel %vm1075, %v3788, %v3790
  %v3804 = vsel %vm1075, %v3790, %v3792
  %v3805 = vsel %vm1075, %v3792, %v3794
  %v3806 = vsel %vm1075, %v3794, %v3796
  %v3807 = vsel %vm1075, %v3796, %v3798
  %v3808 = vsel %vm1075, %v3798, %v3800
  %v3818 = vadd.f32 %v3752, %v3784
  %v3819 = vadd.f32 %v3753, %v3801
  %v3820 = vadd.f32 %v3754, %v3802
  %v3821 = vadd.f32 %v3755, %v3803
  %v3822 = vadd.f32 %v3756, %v3804
  %v3823 = vadd.f32 %v3757, %v3805
  %v3824 = vadd.f32 %v3758, %v3806
  %v3825 = vadd.f32 %v3759, %v3807
  %v3826 = vadd.f32 %v3760, %v3808
  %3827 = vset.pattern.permute.xlu0 53
  %3828 = vperm.xlu0 %3827, %v38
  %v3829 = vpop.permute.xlu0 %3828
  %v3831 = vmul.f32 %v3829, %v1583
  %v3832 = vmul.f32 %v3829, %v1587
  %v3833 = vmul.f32 %v3829, %v1591
  %v3834 = vmul.f32 %v3829, %v1595
  %v3835 = vmul.f32 %v3829, %v1599
  %v3836 = vmul.f32 %v3829, %v1603
  %v3837 = vmul.f32 %v3829, %v1607
  %v3838 = vmul.f32 %v3829, %v1611
  %v3839 = vmul.f32 %v3829, %v1615
  %3849 = vrot.lane.b32.xlu0 %v3831, 64
  %v3850 = vpop.permute.xlu0 %3849
  %3851 = vrot.lane.b32.xlu0 %v3832, 64
  %v3852 = vpop.permute.xlu0 %3851
  %3853 = vrot.lane.b32.xlu0 %v3833, 64
  %v3854 = vpop.permute.xlu0 %3853
  %3855 = vrot.lane.b32.xlu0 %v3834, 64
  %v3856 = vpop.permute.xlu0 %3855
  %3857 = vrot.lane.b32.xlu0 %v3835, 64
  %v3858 = vpop.permute.xlu0 %3857
  %3859 = vrot.lane.b32.xlu0 %v3836, 64
  %v3860 = vpop.permute.xlu0 %3859
  %3861 = vrot.lane.b32.xlu0 %v3837, 64
  %v3862 = vpop.permute.xlu0 %3861
  %3863 = vrot.lane.b32.xlu0 %v3838, 64
  %v3864 = vpop.permute.xlu0 %3863
  %3865 = vrot.lane.b32.xlu0 %v3839, 64
  %v3866 = vpop.permute.xlu0 %3865
  %v3867 = vsel %vm1075, %v3850, %v3852
  %v3868 = vsel %vm1075, %v3852, %v3854
  %v3869 = vsel %vm1075, %v3854, %v3856
  %v3870 = vsel %vm1075, %v3856, %v3858
  %v3871 = vsel %vm1075, %v3858, %v3860
  %v3872 = vsel %vm1075, %v3860, %v3862
  %v3873 = vsel %vm1075, %v3862, %v3864
  %v3874 = vsel %vm1075, %v3864, %v3866
  %v3884 = vadd.f32 %v3818, %v3850
  %v3885 = vadd.f32 %v3819, %v3867
  %v3886 = vadd.f32 %v3820, %v3868
  %v3887 = vadd.f32 %v3821, %v3869
  %v3888 = vadd.f32 %v3822, %v3870
  %v3889 = vadd.f32 %v3823, %v3871
  %v3890 = vadd.f32 %v3824, %v3872
  %v3891 = vadd.f32 %v3825, %v3873
  %v3892 = vadd.f32 %v3826, %v3874
  %vm3893 = vcmp.ne.s32.totalorder %v137, 31
  %vm3894 = vcmp.ne.s32.totalorder %v138, 31
  %vm3895 = vcmp.ne.s32.totalorder %v139, 31
  %vm3896 = vcmp.ne.s32.totalorder %v140, 31
  %vm3897 = vcmp.ne.s32.totalorder %v141, 31
  %vm3898 = vcmp.ne.s32.totalorder %v142, 31
  %vm3899 = vcmp.ne.s32.totalorder %v143, 31
  %vm3900 = vcmp.ne.s32.totalorder %v144, 31
  %v3901 = vsel %vm3893, 1, 0
  %v3902 = vsel %vm3894, 1, 0
  %v3903 = vsel %vm3895, 1, 0
  %v3904 = vsel %vm3896, 1, 0
  %v3905 = vsel %vm3897, 1, 0
  %v3906 = vsel %vm3898, 1, 0
  %v3907 = vsel %vm3899, 1, 0
  %v3908 = vsel %vm3900, 1, 0
  %vm3909 = vcmp.eq.s32.totalorder %v3901, 1
  %vm3910 = vcmp.eq.s32.totalorder %v3902, 1
  %vm3911 = vcmp.eq.s32.totalorder %v3903, 1
  %vm3912 = vcmp.eq.s32.totalorder %v3904, 1
  %vm3913 = vcmp.eq.s32.totalorder %v3905, 1
  %vm3914 = vcmp.eq.s32.totalorder %v3906, 1
  %vm3915 = vcmp.eq.s32.totalorder %v3907, 1
  %vm3916 = vcmp.eq.s32.totalorder %v3908, 1
  %3926 = vrot.lane.b32.xlu0 %v3884, 31
  %v3927 = vpop.permute.xlu0 %3926
  %3928 = vrot.lane.b32.xlu0 %v3885, 31
  %v3929 = vpop.permute.xlu0 %3928
  %3930 = vrot.lane.b32.xlu0 %v3886, 31
  %v3931 = vpop.permute.xlu0 %3930
  %3932 = vrot.lane.b32.xlu0 %v3887, 31
  %v3933 = vpop.permute.xlu0 %3932
  %3934 = vrot.lane.b32.xlu0 %v3888, 31
  %v3935 = vpop.permute.xlu0 %3934
  %3936 = vrot.lane.b32.xlu0 %v3889, 31
  %v3937 = vpop.permute.xlu0 %3936
  %3938 = vrot.lane.b32.xlu0 %v3890, 31
  %v3939 = vpop.permute.xlu0 %3938
  %3940 = vrot.lane.b32.xlu0 %v3891, 31
  %v3941 = vpop.permute.xlu0 %3940
  %3942 = vrot.lane.b32.xlu0 %v3892, 31
  %v3943 = vpop.permute.xlu0 %3942
  %vm3944 = vcmask 252928
  %v3945 = vsel %vm3944, %v3927, %v3929
  %v3946 = vsel %vm3944, %v3929, %v3931
  %v3947 = vsel %vm3944, %v3931, %v3933
  %v3948 = vsel %vm3944, %v3933, %v3935
  %v3949 = vsel %vm3944, %v3935, %v3937
  %v3950 = vsel %vm3944, %v3937, %v3939
  %v3951 = vsel %vm3944, %v3939, %v3941
  %v3952 = vsel %vm3944, %v3941, %v3943
  %v3961 = vsel %vm3909, %v3945, 0.0
  %v3962 = vsel %vm3910, %v3946, 0.0
  %v3963 = vsel %vm3911, %v3947, 0.0
  %v3964 = vsel %vm3912, %v3948, 0.0
  %v3965 = vsel %vm3913, %v3949, 0.0
  %v3966 = vsel %vm3914, %v3950, 0.0
  %v3967 = vsel %vm3915, %v3951, 0.0
  %v3968 = vsel %vm3916, %v3952, 0.0
  %v3969 = vadd.f32 %v2961, %v3961
  %v3970 = vadd.f32 %v2962, %v3962
  %v3971 = vadd.f32 %v2963, %v3963
  %v3972 = vadd.f32 %v2964, %v3964
  %v3973 = vadd.f32 %v2965, %v3965
  %v3974 = vadd.f32 %v2966, %v3966
  %v3975 = vadd.f32 %v2967, %v3967
  %v3976 = vadd.f32 %v2968, %v3968
  %3977 = vst [vmem:[%s4] sm:$0xff] %v3969
  %3978 = vst [vmem:[%s4 + $0x8] sm:$0xff] %v3970
  %3979 = vst [vmem:[%s4 + $0x10] sm:$0xff] %v3971
  %3980 = vst [vmem:[%s4 + $0x18] sm:$0xff] %v3972
  %3981 = vst [vmem:[%s4 + $0x20] sm:$0xff] %v3973
  %3982 = vst [vmem:[%s4 + $0x28] sm:$0xff] %v3974
  %3983 = vst [vmem:[%s4 + $0x30] sm:$0xff] %v3975
  %3984 = vst [vmem:[%s4 + $0x38] sm:$0xff] %v3976
  // Predicated region
  $region18: #{conv_conv_add.1} parent=0 // pred_check
    _
  $region19: #{conv_conv_add.1} parent=0 // pred_check_branch
    %3986 = sbr.rel (0) target = $region21
  $region20: #{conv_conv_add.1} parent=0 // pred_region
    _
  $region21: #{conv_conv_add.1} parent=0 // pred_fallthru
    _
  // Predicated region
  $region22: #{conv_conv_add.1} parent=0 // pred_check
    _
  $region23: #{conv_conv_add.1} parent=0 // pred_check_branch
    %3988 = sbr.rel (0) target = $region25
  $region24: #{conv_conv_add.1} parent=0 // pred_region
    _
  $region25: #{conv_conv_add.1} parent=0 // pred_fallthru
    _

</llo_original>
